<compile_context>
chip_gen: v7x
topology: tpu7x:2x2x1
jax: 0.10.0
libtpu: 0.0.40
codegen_flags: <defaults>
</compile_context>

<pallas_src>
import jax
import jax.numpy as jnp
from jax import lax
from jax.experimental import pallas as pl
from jax.experimental.pallas import tpu as pltpu


def _round_up(n, m):
    return ((n + m - 1) // m) * m


def make_generator_kernel(num_layers, T, B_tile, H_pad, max_unroll_t=8):
    """Builds the Pallas kernel body for the given (static) sizes."""
    H4 = 4 * H_pad

    def kernel(*refs):
        # refs: pre0, whh0, (w_ih, w_hh, b) per upper layer, fc_w, fc_b,
        #       out, h_scr, pre_scr
        pre0_ref = refs[0]                 # (T, B_tile, 4*H_pad) f32
        whh0_ref = refs[1]                 # (H_pad, 4*H_pad) bf16
        idx = 2
        upper_layers = []
        for _ in range(num_layers - 1):
            upper_layers.append((refs[idx], refs[idx + 1], refs[idx + 2]))
            idx += 3
        fcw_ref, fcb_ref = refs[idx], refs[idx + 1]
        out_ref = refs[idx + 2]            # (T, B_tile, H_pad) f32
        h_scr = refs[idx + 3]              # (T*B_tile, H_pad)   bf16
        pre_scr = refs[idx + 4]            # (T*B_tile, 4*H_pad) f32

        def row_slice(t):
            r = t * B_tile
            if not isinstance(r, int):     # dynamic t (fori_loop path)
                r = pl.multiple_of(r, B_tile)
            return pl.ds(r, B_tile)

        def run_layer(read_pre, whh_ref):
            """One LSTM layer over T steps; writes hidden states into h_scr."""

            def step(t, carry):
                h, c = carry
                g = read_pre(t) + jnp.dot(h.astype(jnp.bfloat16), whh_ref[...],
                                          preferred_element_type=jnp.float32)
                # Fused i/f sigmoid: one EUP call over 2*H_pad lanes.
                sif = jax.nn.sigmoid(g[:, 0:2 * H_pad])
                i_g = sif[:, 0:H_pad]
                f_g = sif[:, H_pad:2 * H_pad]
                g_g = jnp.tanh(g[:, 2 * H_pad:3 * H_pad])
                o_g = jax.nn.sigmoid(g[:, 3 * H_pad:4 * H_pad])
                c = f_g * c + i_g * g_g
                h = o_g * jnp.tanh(c)
                h_scr[row_slice(t), :] = h.astype(jnp.bfloat16)
                return h, c

            h0 = jnp.zeros((B_tile, H_pad), jnp.float32)
            c0 = jnp.zeros((B_tile, H_pad), jnp.float32)
            if T <= max_unroll_t:
                carry = (h0, c0)
                for t in range(T):
                    carry = step(t, carry)
            else:
                lax.fori_loop(0, T, step, (h0, c0), unroll=2)

        # ---- layer 0: pre-activations were computed in the wrapper ----------
        run_layer(lambda t: pre0_ref[t], whh0_ref)

        # ---- layers 1..L-1: one big MXU input projection per layer, staged
        # through explicit VMEM scratch so it never sits live across the serial
        # time recurrence (bounded vreg pressure, predictable VMEM). ----------
        for (wih_ref, whh_ref, b_ref) in upper_layers:
            layer_in = h_scr[...]                                      # bf16
            pre = jnp.dot(layer_in, wih_ref[...],
                          preferred_element_type=jnp.float32) + b_ref[...]
            pre_scr[...] = pre
            run_layer(lambda t: pre_scr[row_slice(t), :], whh_ref)

        # ---- final Linear + ReLU over all T*B_tile hidden vectors -----------
        h_all = h_scr[...]                                             # bf16
        y = jnp.dot(h_all, fcw_ref[...],
                    preferred_element_type=jnp.float32) + fcb_ref[...]
        out_ref[...] = jnp.maximum(y, 0.0).reshape(T, B_tile, H_pad)

    return kernel


def generator_forward(x, lstm_params, fc_w, fc_b, hidden_dim):
    """x: (B, T, noise_dim) float32, batch_first like the PyTorch module.

    lstm_params: list of (w_ih (4H,in), w_hh (4H,H), b_ih (4H,), b_hh (4H,))
    fc_w: (H, H), fc_b: (H,)  — raw PyTorch layouts.
    """
    B, T, D = x.shape
    H = hidden_dim
    num_layers = len(lstm_params)

    LANE, SUBLANE = 128, 8
    H_pad = _round_up(H, LANE)              # per-gate padded hidden width
    B_pad = _round_up(B, SUBLANE)

    # Batch tiling: >= 2 grid steps once B_pad >= 16 (both v7x TCs get work),
    # tiles capped at 128 rows (fills MXU rows in the recurrence matmul).
    if B_pad >= 2 * SUBLANE:
        B_tile = min(128, max(SUBLANE, _round_up(B_pad // 2, SUBLANE)))
    else:
        B_tile = B_pad
    B_pad = _round_up(B_pad, B_tile)
    grid = (B_pad // B_tile,)

    # ---- gate-padding helpers (PyTorch gate order i, f, g, o; zero pads) ----
    def pad_gate_cols(w):                   # (in, 4H) -> (in, 4*H_pad)
        blocks = [w[:, k * H:(k + 1) * H] for k in range(4)]
        blocks = [jnp.pad(blk, ((0, 0), (0, H_pad - H))) for blk in blocks]
        return jnp.concatenate(blocks, axis=1)

    def pad_gate_bias(b):                   # (4H,) -> (4*H_pad,)
        blocks = [b[k * H:(k + 1) * H] for k in range(4)]
        blocks = [jnp.pad(blk, (0, H_pad - H)) for blk in blocks]
        return jnp.concatenate(blocks, axis=0)

    # ---- layer 0: hoist input projection + fused bias to XLA (unpadded D) ---
    w_ih0, w_hh0, b_ih0, b_hh0 = lstm_params[0]
    wih0 = pad_gate_cols(w_ih0.T)                                    # (D, 4*H_pad)
    bias0 = pad_gate_bias(b_ih0 + b_hh0)                             # (4*H_pad,)
    x_tm = jnp.transpose(x, (1, 0, 2)).reshape(T * B, D)             # time-major
    pre0 = jnp.dot(x_tm.astype(jnp.bfloat16), wih0.astype(jnp.bfloat16),
                   preferred_element_type=jnp.float32) + bias0[None, :]
    pre0 = pre0.reshape(T, B, 4 * H_pad)
    pre0 = jnp.pad(pre0, ((0, 0), (0, B_pad - B), (0, 0)))           # (T, B_pad, 4*H_pad)

    whh0 = jnp.pad(pad_gate_cols(w_hh0.T),
                   ((0, H_pad - H), (0, 0))).astype(jnp.bfloat16)    # (H_pad, 4*H_pad)

    inputs = [pre0, whh0]
    for (w_ih, w_hh, b_ih, b_hh) in lstm_params[1:]:
        wih = jnp.pad(pad_gate_cols(w_ih.T),
                      ((0, H_pad - H), (0, 0))).astype(jnp.bfloat16)
        whh = jnp.pad(pad_gate_cols(w_hh.T),
                      ((0, H_pad - H), (0, 0))).astype(jnp.bfloat16)
        b = pad_gate_bias(b_ih + b_hh)[None, :]                      # (1, 4*H_pad) f32
        inputs += [wih, whh, b]

    fcw = jnp.pad(fc_w.T, ((0, H_pad - H), (0, H_pad - H))).astype(jnp.bfloat16)
    fcb = jnp.pad(fc_b, (0, H_pad - H))[None, :]                     # (1, H_pad) f32
    inputs += [fcw, fcb]

    # ---- BlockSpecs: batch-tiled pre0/out, single-buffered invariant weights
    def invariant(shape):
        return pl.BlockSpec(shape, lambda b, _n=len(shape): (0,) * _n,
                            pipeline_mode=pl.Buffered(1))

    in_specs = [pl.BlockSpec((T, B_tile, 4 * H_pad), lambda b: (0, b, 0)),
                invariant((H_pad, 4 * H_pad))]
    for _ in range(num_layers - 1):
        in_specs += [invariant((H_pad, 4 * H_pad)),
                     invariant((H_pad, 4 * H_pad)),
                     invariant((1, 4 * H_pad))]
    in_specs += [invariant((H_pad, H_pad)), invariant((1, H_pad))]
    out_spec = pl.BlockSpec((T, B_tile, H_pad), lambda b: (0, b, 0))

    # ---- explicit VMEM inventory -> vmem_limit_bytes (checked on v7x 64 MiB)
    f32b, bf16b = 4, 2
    vmem_needed = (
        2 * T * B_tile * 4 * H_pad * f32b            # pre0 tile (double-buffered in)
        + 2 * T * B_tile * H_pad * f32b              # out tile (double-buffered out)
        + H_pad * 4 * H_pad * bf16b                  # whh0 (single-buffered)
        + (num_layers - 1) * (2 * H_pad * 4 * H_pad * bf16b + 4 * H_pad * f32b)
        + H_pad * H_pad * bf16b + H_pad * f32b       # fc weights
        + T * B_tile * H_pad * bf16b                 # h_scr
        + T * B_tile * 4 * H_pad * f32b)             # pre_scr
    vmem_limit = int(min(64 << 20, max(2 * vmem_needed, 16 << 20)))

    kernel = make_generator_kernel(num_layers, T, B_tile, H_pad)

    out_tm = pl.pallas_call(
        kernel,
        out_shape=jax.ShapeDtypeStruct((T, B_pad, H_pad), jnp.float32),
        grid_spec=pltpu.PrefetchScalarGridSpec(
            num_scalar_prefetch=0,
            grid=grid,
            in_specs=in_specs,
            out_specs=out_spec,
            scratch_shapes=[
                pltpu.VMEM((T * B_tile, H_pad), jnp.bfloat16),       # h_scr
                pltpu.VMEM((T * B_tile, 4 * H_pad), jnp.float32),    # pre_scr
            ],
        ),
        compiler_params=pltpu.CompilerParams(
            dimension_semantics=("parallel",),
            vmem_limit_bytes=vmem_limit),
    )(*inputs)

    out = jnp.transpose(out_tm, (1, 0, 2))            # (B_pad, T, H_pad)
    return out[:B, :, :H]


def generator_ref(x, lstm_params, fc_w, fc_b, matmul_dtype=jnp.float32):
    """Pure-JAX reference mirroring torch.nn.LSTM + Linear + ReLU."""
    B, T, D = x.shape

    def mm(a, b):
        return jnp.dot(a.astype(matmul_dtype), b.astype(matmul_dtype),
                       preferred_element_type=jnp.float32)

    cur = x
    for (w_ih, w_hh, b_ih, b_hh) in lstm_params:
        H = w_hh.shape[1]
        wih_t, whh_t = w_ih.T, w_hh.T
        bias = (b_ih + b_hh)[None, :]

        def step(carry, x_t, wih_t=wih_t, whh_t=whh_t, bias=bias, H=H):
            h, c = carry
            g = mm(x_t, wih_t) + bias + mm(h, whh_t)
            i_g = jax.nn.sigmoid(g[:, 0:H])
            f_g = jax.nn.sigmoid(g[:, H:2 * H])
            g_g = jnp.tanh(g[:, 2 * H:3 * H])
            o_g = jax.nn.sigmoid(g[:, 3 * H:4 * H])
            c_new = f_g * c + i_g * g_g
            h_new = o_g * jnp.tanh(c_new)
            return (h_new, c_new), h_new

        h0 = jnp.zeros((B, H), jnp.float32)
        c0 = jnp.zeros((B, H), jnp.float32)
        _, outs = lax.scan(step, (h0, c0), jnp.transpose(cur, (1, 0, 2)))
        cur = jnp.transpose(outs, (1, 0, 2))
    y = mm(cur, fc_w.T) + fc_b[None, :]
    return jnp.maximum(y, 0.0)


def init_params(key, noise_dim, hidden_dim, num_layers):
    """Deterministic synthetic init; mimics PyTorch U(-1/sqrt(H), 1/sqrt(H))."""
    H = hidden_dim
    k = 1.0 / jnp.sqrt(jnp.float32(H))
    lstm_params = []
    for l in range(num_layers):
        in_dim = noise_dim if l == 0 else H
        key, k1, k2, k3, k4 = jax.random.split(key, 5)
        w_ih = jax.random.uniform(k1, (4 * H, in_dim), jnp.float32, -k, k)
        w_hh = jax.random.uniform(k2, (4 * H, H), jnp.float32, -k, k)
        b_ih = jax.random.uniform(k3, (4 * H,), jnp.float32, -k, k)
        b_hh = jax.random.uniform(k4, (4 * H,), jnp.float32, -k, k)
        lstm_params.append((w_ih, w_hh, b_ih, b_hh))
    key, k5, k6 = jax.random.split(key, 3)
    fc_w = jax.random.uniform(k5, (H, H), jnp.float32, -k, k)
    fc_b = jax.random.uniform(k6, (H,), jnp.float32, -k, k)
    return lstm_params, fc_w, fc_b


if __name__ == "__main__":
    # Small shapes consistent with Generator(noise_dim, hidden_dim, num_layers)
    B, T = 2, 8
    noise_dim, hidden_dim, num_layers = 4, 32, 2

    key = jax.random.PRNGKey(0)
    key, kx = jax.random.split(key)
    x = jax.random.normal(kx, (B, T, noise_dim), dtype=jnp.float32)

    lstm_params, fc_w, fc_b = init_params(key, noise_dim, hidden_dim, num_layers)

    out = generator_forward(x, lstm_params, fc_w, fc_b, hidden_dim)
    out = jax.block_until_ready(out)
    assert out.shape == (B, T, hidden_dim)

    # Structural check against a reference using the same bf16 MXU operands
    # (loosened per review: accumulation order may differ across generations).
    ref_bf16 = generator_ref(x, lstm_params, fc_w, fc_b, matmul_dtype=jnp.bfloat16)
    assert jnp.max(jnp.abs(out - ref_bf16)) < 1e-2

    # Loose semantic check vs. the full-f32 reference (bf16 operand rounding
    # compounds slightly over the T-step recurrence and layer stack).
    ref_f32 = generator_ref(x, lstm_params, fc_w, fc_b)
    assert jnp.max(jnp.abs(out - ref_f32)) < 5e-2

    print("KERNEL_OK")
</pallas_src>

<mosaic_0001>
module attributes {stable_mosaic.version = 11 : i64} {
  func.func @kernel(%arg0: i32, %arg1: memref<8x8x512xf32, #tpu.memory_space<vmem>>, %arg2: memref<128x512xbf16, #tpu.memory_space<vmem>>, %arg3: memref<128x512xbf16, #tpu.memory_space<vmem>>, %arg4: memref<128x512xbf16, #tpu.memory_space<vmem>>, %arg5: memref<1x512xf32, #tpu.memory_space<vmem>>, %arg6: memref<128x128xbf16, #tpu.memory_space<vmem>>, %arg7: memref<1x128xf32, #tpu.memory_space<vmem>>, %arg8: memref<8x8x128xf32, #tpu.memory_space<vmem>>, %arg9: memref<64x128xbf16, #tpu.memory_space<vmem>>, %arg10: memref<64x512xf32, #tpu.memory_space<vmem>>) attributes {dimension_semantics = [#tpu.dimension_semantics<parallel>], iteration_bounds = array<i64: 1>, scalar_prefetch = 0 : i64, scratch_operands = 2 : i64, tpu.core_type = #tpu.core_type<tc>, window_params = [{transform_indices = @transform_0, window_bounds = array<i64: 8, 8, 512>}, {pipeline_mode = #tpu.pipeline_mode<synchronous>, transform_indices = @transform_1, window_bounds = array<i64: 128, 512>}, {pipeline_mode = #tpu.pipeline_mode<synchronous>, transform_indices = @transform_2, window_bounds = array<i64: 128, 512>}, {pipeline_mode = #tpu.pipeline_mode<synchronous>, transform_indices = @transform_3, window_bounds = array<i64: 128, 512>}, {pipeline_mode = #tpu.pipeline_mode<synchronous>, transform_indices = @transform_4, window_bounds = array<i64: 1, 512>}, {pipeline_mode = #tpu.pipeline_mode<synchronous>, transform_indices = @transform_5, window_bounds = array<i64: 128, 128>}, {pipeline_mode = #tpu.pipeline_mode<synchronous>, transform_indices = @transform_6, window_bounds = array<i64: 1, 128>}, {transform_indices = @transform_7, window_bounds = array<i64: 8, 8, 128>}]} {
    %cst = arith.constant 0.000000e+00 : f32
    %0 = vector.broadcast %cst : f32 to vector<8x128xf32>
    %cst_0 = arith.constant 0.000000e+00 : f32
    %1 = vector.broadcast %cst_0 : f32 to vector<8x128xf32>
    %c0 = arith.constant 0 : index
    %c0_1 = arith.constant 0 : index
    %c0_2 = arith.constant 0 : index
    %2 = vector.load %arg1[%c0, %c0_1, %c0_2] : memref<8x8x512xf32, #tpu.memory_space<vmem>>, vector<1x8x512xf32>
    %3 = vector.shape_cast %2 : vector<1x8x512xf32> to vector<8x512xf32>
    %4 = arith.truncf %0 : vector<8x128xf32> to vector<8x128xbf16>
    %c0_3 = arith.constant 0 : index
    %c0_4 = arith.constant 0 : index
    %5 = vector.load %arg2[%c0_3, %c0_4] : memref<128x512xbf16, #tpu.memory_space<vmem>>, vector<128x512xbf16>
    %cst_5 = arith.constant dense<0.000000e+00> : vector<8x512xf32>
    %6 = tpu.matmul %4, %5, %cst_5 {dimension_numbers = #tpu.dot_dimension_numbers<[1], [0], [0], [1], [0, 0, 1, 1], [], []>} : vector<8x128xbf16>, vector<128x512xbf16>, vector<8x512xf32> -> vector<8x512xf32>
    %7 = arith.addf %3, %6 : vector<8x512xf32>
    %8 = vector.extract_strided_slice %7 {offsets = [0, 0], sizes = [8, 256], strides = [1, 1]} : vector<8x512xf32> to vector<8x256xf32>
    %9 = arith.negf %8 : vector<8x256xf32>
    %10 = math.exp %9 : vector<8x256xf32>
    %cst_6 = arith.constant 1.000000e+00 : f32
    %11 = vector.broadcast %cst_6 : f32 to vector<8x256xf32>
    %12 = arith.addf %11, %10 : vector<8x256xf32>
    %13 = arith.divf %11, %12 : vector<8x256xf32>
    %14 = vector.extract_strided_slice %13 {offsets = [0, 0], sizes = [8, 128], strides = [1, 1]} : vector<8x256xf32> to vector<8x128xf32>
    %15 = vector.extract_strided_slice %13 {offsets = [0, 128], sizes = [8, 128], strides = [1, 1]} : vector<8x256xf32> to vector<8x128xf32>
    %16 = vector.extract_strided_slice %7 {offsets = [0, 256], sizes = [8, 128], strides = [1, 1]} : vector<8x512xf32> to vector<8x128xf32>
    %17 = math.tanh %16 : vector<8x128xf32>
    %18 = vector.extract_strided_slice %7 {offsets = [0, 384], sizes = [8, 128], strides = [1, 1]} : vector<8x512xf32> to vector<8x128xf32>
    %19 = arith.negf %18 : vector<8x128xf32>
    %20 = math.exp %19 : vector<8x128xf32>
    %cst_7 = arith.constant 1.000000e+00 : f32
    %21 = vector.broadcast %cst_7 : f32 to vector<8x128xf32>
    %22 = arith.addf %21, %20 : vector<8x128xf32>
    %23 = arith.divf %21, %22 : vector<8x128xf32>
    %24 = arith.mulf %15, %1 : vector<8x128xf32>
    %25 = arith.mulf %14, %17 : vector<8x128xf32>
    %26 = arith.addf %24, %25 : vector<8x128xf32>
    %27 = math.tanh %26 : vector<8x128xf32>
    %28 = arith.mulf %23, %27 : vector<8x128xf32>
    %29 = arith.truncf %28 : vector<8x128xf32> to vector<8x128xbf16>
    %c0_8 = arith.constant 0 : index
    %c0_9 = arith.constant 0 : index
    %30 = vector.load %arg9[%c0_8, %c0_9] : memref<64x128xbf16, #tpu.memory_space<vmem>>, vector<8x128xbf16>
    tpu.vector_store %arg9[%c0_8, %c0_9], %29 {strides = array<i32>} : memref<64x128xbf16, #tpu.memory_space<vmem>>, vector<8x128xbf16>,
    %c1 = arith.constant 1 : index
    %c0_10 = arith.constant 0 : index
    %c0_11 = arith.constant 0 : index
    %31 = vector.load %arg1[%c1, %c0_10, %c0_11] : memref<8x8x512xf32, #tpu.memory_space<vmem>>, vector<1x8x512xf32>
    %32 = vector.shape_cast %31 : vector<1x8x512xf32> to vector<8x512xf32>
    %33 = arith.truncf %28 : vector<8x128xf32> to vector<8x128xbf16>
    %c0_12 = arith.constant 0 : index
    %c0_13 = arith.constant 0 : index
    %34 = vector.load %arg2[%c0_12, %c0_13] : memref<128x512xbf16, #tpu.memory_space<vmem>>, vector<128x512xbf16>
    %cst_14 = arith.constant dense<0.000000e+00> : vector<8x512xf32>
    %35 = tpu.matmul %33, %34, %cst_14 {dimension_numbers = #tpu.dot_dimension_numbers<[1], [0], [0], [1], [0, 0, 1, 1], [], []>} : vector<8x128xbf16>, vector<128x512xbf16>, vector<8x512xf32> -> vector<8x512xf32>
    %36 = arith.addf %32, %35 : vector<8x512xf32>
    %37 = vector.extract_strided_slice %36 {offsets = [0, 0], sizes = [8, 256], strides = [1, 1]} : vector<8x512xf32> to vector<8x256xf32>
    %38 = arith.negf %37 : vector<8x256xf32>
    %39 = math.exp %38 : vector<8x256xf32>
    %cst_15 = arith.constant 1.000000e+00 : f32
    %40 = vector.broadcast %cst_15 : f32 to vector<8x256xf32>
    %41 = arith.addf %40, %39 : vector<8x256xf32>
    %42 = arith.divf %40, %41 : vector<8x256xf32>
    %43 = vector.extract_strided_slice %42 {offsets = [0, 0], sizes = [8, 128], strides = [1, 1]} : vector<8x256xf32> to vector<8x128xf32>
    %44 = vector.extract_strided_slice %42 {offsets = [0, 128], sizes = [8, 128], strides = [1, 1]} : vector<8x256xf32> to vector<8x128xf32>
    %45 = vector.extract_strided_slice %36 {offsets = [0, 256], sizes = [8, 128], strides = [1, 1]} : vector<8x512xf32> to vector<8x128xf32>
    %46 = math.tanh %45 : vector<8x128xf32>
    %47 = vector.extract_strided_slice %36 {offsets = [0, 384], sizes = [8, 128], strides = [1, 1]} : vector<8x512xf32> to vector<8x128xf32>
    %48 = arith.negf %47 : vector<8x128xf32>
    %49 = math.exp %48 : vector<8x128xf32>
    %cst_16 = arith.constant 1.000000e+00 : f32
    %50 = vector.broadcast %cst_16 : f32 to vector<8x128xf32>
    %51 = arith.addf %50, %49 : vector<8x128xf32>
    %52 = arith.divf %50, %51 : vector<8x128xf32>
    %53 = arith.mulf %44, %26 : vector<8x128xf32>
    %54 = arith.mulf %43, %46 : vector<8x128xf32>
    %55 = arith.addf %53, %54 : vector<8x128xf32>
    %56 = math.tanh %55 : vector<8x128xf32>
    %57 = arith.mulf %52, %56 : vector<8x128xf32>
    %58 = arith.truncf %57 : vector<8x128xf32> to vector<8x128xbf16>
    %c8 = arith.constant 8 : index
    %c0_17 = arith.constant 0 : index
    %59 = vector.load %arg9[%c8, %c0_17] : memref<64x128xbf16, #tpu.memory_space<vmem>>, vector<8x128xbf16>
    tpu.vector_store %arg9[%c8, %c0_17], %58 {strides = array<i32>} : memref<64x128xbf16, #tpu.memory_space<vmem>>, vector<8x128xbf16>,
    %c2 = arith.constant 2 : index
    %c0_18 = arith.constant 0 : index
    %c0_19 = arith.constant 0 : index
    %60 = vector.load %arg1[%c2, %c0_18, %c0_19] : memref<8x8x512xf32, #tpu.memory_space<vmem>>, vector<1x8x512xf32>
    %61 = vector.shape_cast %60 : vector<1x8x512xf32> to vector<8x512xf32>
    %62 = arith.truncf %57 : vector<8x128xf32> to vector<8x128xbf16>
    %c0_20 = arith.constant 0 : index
    %c0_21 = arith.constant 0 : index
    %63 = vector.load %arg2[%c0_20, %c0_21] : memref<128x512xbf16, #tpu.memory_space<vmem>>, vector<128x512xbf16>
    %cst_22 = arith.constant dense<0.000000e+00> : vector<8x512xf32>
    %64 = tpu.matmul %62, %63, %cst_22 {dimension_numbers = #tpu.dot_dimension_numbers<[1], [0], [0], [1], [0, 0, 1, 1], [], []>} : vector<8x128xbf16>, vector<128x512xbf16>, vector<8x512xf32> -> vector<8x512xf32>
    %65 = arith.addf %61, %64 : vector<8x512xf32>
    %66 = vector.extract_strided_slice %65 {offsets = [0, 0], sizes = [8, 256], strides = [1, 1]} : vector<8x512xf32> to vector<8x256xf32>
    %67 = arith.negf %66 : vector<8x256xf32>
    %68 = math.exp %67 : vector<8x256xf32>
    %cst_23 = arith.constant 1.000000e+00 : f32
    %69 = vector.broadcast %cst_23 : f32 to vector<8x256xf32>
    %70 = arith.addf %69, %68 : vector<8x256xf32>
    %71 = arith.divf %69, %70 : vector<8x256xf32>
    %72 = vector.extract_strided_slice %71 {offsets = [0, 0], sizes = [8, 128], strides = [1, 1]} : vector<8x256xf32> to vector<8x128xf32>
    %73 = vector.extract_strided_slice %71 {offsets = [0, 128], sizes = [8, 128], strides = [1, 1]} : vector<8x256xf32> to vector<8x128xf32>
    %74 = vector.extract_strided_slice %65 {offsets = [0, 256], sizes = [8, 128], strides = [1, 1]} : vector<8x512xf32> to vector<8x128xf32>
    %75 = math.tanh %74 : vector<8x128xf32>
    %76 = vector.extract_strided_slice %65 {offsets = [0, 384], sizes = [8, 128], strides = [1, 1]} : vector<8x512xf32> to vector<8x128xf32>
    %77 = arith.negf %76 : vector<8x128xf32>
    %78 = math.exp %77 : vector<8x128xf32>
    %cst_24 = arith.constant 1.000000e+00 : f32
    %79 = vector.broadcast %cst_24 : f32 to vector<8x128xf32>
    %80 = arith.addf %79, %78 : vector<8x128xf32>
    %81 = arith.divf %79, %80 : vector<8x128xf32>
    %82 = arith.mulf %73, %55 : vector<8x128xf32>
    %83 = arith.mulf %72, %75 : vector<8x128xf32>
    %84 = arith.addf %82, %83 : vector<8x128xf32>
    %85 = math.tanh %84 : vector<8x128xf32>
    %86 = arith.mulf %81, %85 : vector<8x128xf32>
    %87 = arith.truncf %86 : vector<8x128xf32> to vector<8x128xbf16>
    %c16 = arith.constant 16 : index
    %c0_25 = arith.constant 0 : index
    %88 = vector.load %arg9[%c16, %c0_25] : memref<64x128xbf16, #tpu.memory_space<vmem>>, vector<8x128xbf16>
    tpu.vector_store %arg9[%c16, %c0_25], %87 {strides = array<i32>} : memref<64x128xbf16, #tpu.memory_space<vmem>>, vector<8x128xbf16>,
    %c3 = arith.constant 3 : index
    %c0_26 = arith.constant 0 : index
    %c0_27 = arith.constant 0 : index
    %89 = vector.load %arg1[%c3, %c0_26, %c0_27] : memref<8x8x512xf32, #tpu.memory_space<vmem>>, vector<1x8x512xf32>
    %90 = vector.shape_cast %89 : vector<1x8x512xf32> to vector<8x512xf32>
    %91 = arith.truncf %86 : vector<8x128xf32> to vector<8x128xbf16>
    %c0_28 = arith.constant 0 : index
    %c0_29 = arith.constant 0 : index
    %92 = vector.load %arg2[%c0_28, %c0_29] : memref<128x512xbf16, #tpu.memory_space<vmem>>, vector<128x512xbf16>
    %cst_30 = arith.constant dense<0.000000e+00> : vector<8x512xf32>
    %93 = tpu.matmul %91, %92, %cst_30 {dimension_numbers = #tpu.dot_dimension_numbers<[1], [0], [0], [1], [0, 0, 1, 1], [], []>} : vector<8x128xbf16>, vector<128x512xbf16>, vector<8x512xf32> -> vector<8x512xf32>
    %94 = arith.addf %90, %93 : vector<8x512xf32>
    %95 = vector.extract_strided_slice %94 {offsets = [0, 0], sizes = [8, 256], strides = [1, 1]} : vector<8x512xf32> to vector<8x256xf32>
    %96 = arith.negf %95 : vector<8x256xf32>
    %97 = math.exp %96 : vector<8x256xf32>
    %cst_31 = arith.constant 1.000000e+00 : f32
    %98 = vector.broadcast %cst_31 : f32 to vector<8x256xf32>
    %99 = arith.addf %98, %97 : vector<8x256xf32>
    %100 = arith.divf %98, %99 : vector<8x256xf32>
    %101 = vector.extract_strided_slice %100 {offsets = [0, 0], sizes = [8, 128], strides = [1, 1]} : vector<8x256xf32> to vector<8x128xf32>
    %102 = vector.extract_strided_slice %100 {offsets = [0, 128], sizes = [8, 128], strides = [1, 1]} : vector<8x256xf32> to vector<8x128xf32>
    %103 = vector.extract_strided_slice %94 {offsets = [0, 256], sizes = [8, 128], strides = [1, 1]} : vector<8x512xf32> to vector<8x128xf32>
    %104 = math.tanh %103 : vector<8x128xf32>
    %105 = vector.extract_strided_slice %94 {offsets = [0, 384], sizes = [8, 128], strides = [1, 1]} : vector<8x512xf32> to vector<8x128xf32>
    %106 = arith.negf %105 : vector<8x128xf32>
    %107 = math.exp %106 : vector<8x128xf32>
    %cst_32 = arith.constant 1.000000e+00 : f32
    %108 = vector.broadcast %cst_32 : f32 to vector<8x128xf32>
    %109 = arith.addf %108, %107 : vector<8x128xf32>
    %110 = arith.divf %108, %109 : vector<8x128xf32>
    %111 = arith.mulf %102, %84 : vector<8x128xf32>
    %112 = arith.mulf %101, %104 : vector<8x128xf32>
    %113 = arith.addf %111, %112 : vector<8x128xf32>
    %114 = math.tanh %113 : vector<8x128xf32>
    %115 = arith.mulf %110, %114 : vector<8x128xf32>
    %116 = arith.truncf %115 : vector<8x128xf32> to vector<8x128xbf16>
    %c24 = arith.constant 24 : index
    %c0_33 = arith.constant 0 : index
    %117 = vector.load %arg9[%c24, %c0_33] : memref<64x128xbf16, #tpu.memory_space<vmem>>, vector<8x128xbf16>
    tpu.vector_store %arg9[%c24, %c0_33], %116 {strides = array<i32>} : memref<64x128xbf16, #tpu.memory_space<vmem>>, vector<8x128xbf16>,
    %c4 = arith.constant 4 : index
    %c0_34 = arith.constant 0 : index
    %c0_35 = arith.constant 0 : index
    %118 = vector.load %arg1[%c4, %c0_34, %c0_35] : memref<8x8x512xf32, #tpu.memory_space<vmem>>, vector<1x8x512xf32>
    %119 = vector.shape_cast %118 : vector<1x8x512xf32> to vector<8x512xf32>
    %120 = arith.truncf %115 : vector<8x128xf32> to vector<8x128xbf16>
    %c0_36 = arith.constant 0 : index
    %c0_37 = arith.constant 0 : index
    %121 = vector.load %arg2[%c0_36, %c0_37] : memref<128x512xbf16, #tpu.memory_space<vmem>>, vector<128x512xbf16>
    %cst_38 = arith.constant dense<0.000000e+00> : vector<8x512xf32>
    %122 = tpu.matmul %120, %121, %cst_38 {dimension_numbers = #tpu.dot_dimension_numbers<[1], [0], [0], [1], [0, 0, 1, 1], [], []>} : vector<8x128xbf16>, vector<128x512xbf16>, vector<8x512xf32> -> vector<8x512xf32>
    %123 = arith.addf %119, %122 : vector<8x512xf32>
    %124 = vector.extract_strided_slice %123 {offsets = [0, 0], sizes = [8, 256], strides = [1, 1]} : vector<8x512xf32> to vector<8x256xf32>
    %125 = arith.negf %124 : vector<8x256xf32>
    %126 = math.exp %125 : vector<8x256xf32>
    %cst_39 = arith.constant 1.000000e+00 : f32
    %127 = vector.broadcast %cst_39 : f32 to vector<8x256xf32>
    %128 = arith.addf %127, %126 : vector<8x256xf32>
    %129 = arith.divf %127, %128 : vector<8x256xf32>
    %130 = vector.extract_strided_slice %129 {offsets = [0, 0], sizes = [8, 128], strides = [1, 1]} : vector<8x256xf32> to vector<8x128xf32>
    %131 = vector.extract_strided_slice %129 {offsets = [0, 128], sizes = [8, 128], strides = [1, 1]} : vector<8x256xf32> to vector<8x128xf32>
    %132 = vector.extract_strided_slice %123 {offsets = [0, 256], sizes = [8, 128], strides = [1, 1]} : vector<8x512xf32> to vector<8x128xf32>
    %133 = math.tanh %132 : vector<8x128xf32>
    %134 = vector.extract_strided_slice %123 {offsets = [0, 384], sizes = [8, 128], strides = [1, 1]} : vector<8x512xf32> to vector<8x128xf32>
    %135 = arith.negf %134 : vector<8x128xf32>
    %136 = math.exp %135 : vector<8x128xf32>
    %cst_40 = arith.constant 1.000000e+00 : f32
    %137 = vector.broadcast %cst_40 : f32 to vector<8x128xf32>
    %138 = arith.addf %137, %136 : vector<8x128xf32>
    %139 = arith.divf %137, %138 : vector<8x128xf32>
    %140 = arith.mulf %131, %113 : vector<8x128xf32>
    %141 = arith.mulf %130, %133 : vector<8x128xf32>
    %142 = arith.addf %140, %141 : vector<8x128xf32>
    %143 = math.tanh %142 : vector<8x128xf32>
    %144 = arith.mulf %139, %143 : vector<8x128xf32>
    %145 = arith.truncf %144 : vector<8x128xf32> to vector<8x128xbf16>
    %c32 = arith.constant 32 : index
    %c0_41 = arith.constant 0 : index
    %146 = vector.load %arg9[%c32, %c0_41] : memref<64x128xbf16, #tpu.memory_space<vmem>>, vector<8x128xbf16>
    tpu.vector_store %arg9[%c32, %c0_41], %145 {strides = array<i32>} : memref<64x128xbf16, #tpu.memory_space<vmem>>, vector<8x128xbf16>,
    %c5 = arith.constant 5 : index
    %c0_42 = arith.constant 0 : index
    %c0_43 = arith.constant 0 : index
    %147 = vector.load %arg1[%c5, %c0_42, %c0_43] : memref<8x8x512xf32, #tpu.memory_space<vmem>>, vector<1x8x512xf32>
    %148 = vector.shape_cast %147 : vector<1x8x512xf32> to vector<8x512xf32>
    %149 = arith.truncf %144 : vector<8x128xf32> to vector<8x128xbf16>
    %c0_44 = arith.constant 0 : index
    %c0_45 = arith.constant 0 : index
    %150 = vector.load %arg2[%c0_44, %c0_45] : memref<128x512xbf16, #tpu.memory_space<vmem>>, vector<128x512xbf16>
    %cst_46 = arith.constant dense<0.000000e+00> : vector<8x512xf32>
    %151 = tpu.matmul %149, %150, %cst_46 {dimension_numbers = #tpu.dot_dimension_numbers<[1], [0], [0], [1], [0, 0, 1, 1], [], []>} : vector<8x128xbf16>, vector<128x512xbf16>, vector<8x512xf32> -> vector<8x512xf32>
    %152 = arith.addf %148, %151 : vector<8x512xf32>
    %153 = vector.extract_strided_slice %152 {offsets = [0, 0], sizes = [8, 256], strides = [1, 1]} : vector<8x512xf32> to vector<8x256xf32>
    %154 = arith.negf %153 : vector<8x256xf32>
    %155 = math.exp %154 : vector<8x256xf32>
    %cst_47 = arith.constant 1.000000e+00 : f32
    %156 = vector.broadcast %cst_47 : f32 to vector<8x256xf32>
    %157 = arith.addf %156, %155 : vector<8x256xf32>
    %158 = arith.divf %156, %157 : vector<8x256xf32>
    %159 = vector.extract_strided_slice %158 {offsets = [0, 0], sizes = [8, 128], strides = [1, 1]} : vector<8x256xf32> to vector<8x128xf32>
    %160 = vector.extract_strided_slice %158 {offsets = [0, 128], sizes = [8, 128], strides = [1, 1]} : vector<8x256xf32> to vector<8x128xf32>
    %161 = vector.extract_strided_slice %152 {offsets = [0, 256], sizes = [8, 128], strides = [1, 1]} : vector<8x512xf32> to vector<8x128xf32>
    %162 = math.tanh %161 : vector<8x128xf32>
    %163 = vector.extract_strided_slice %152 {offsets = [0, 384], sizes = [8, 128], strides = [1, 1]} : vector<8x512xf32> to vector<8x128xf32>
    %164 = arith.negf %163 : vector<8x128xf32>
    %165 = math.exp %164 : vector<8x128xf32>
    %cst_48 = arith.constant 1.000000e+00 : f32
    %166 = vector.broadcast %cst_48 : f32 to vector<8x128xf32>
    %167 = arith.addf %166, %165 : vector<8x128xf32>
    %168 = arith.divf %166, %167 : vector<8x128xf32>
    %169 = arith.mulf %160, %142 : vector<8x128xf32>
    %170 = arith.mulf %159, %162 : vector<8x128xf32>
    %171 = arith.addf %169, %170 : vector<8x128xf32>
    %172 = math.tanh %171 : vector<8x128xf32>
    %173 = arith.mulf %168, %172 : vector<8x128xf32>
    %174 = arith.truncf %173 : vector<8x128xf32> to vector<8x128xbf16>
    %c40 = arith.constant 40 : index
    %c0_49 = arith.constant 0 : index
    %175 = vector.load %arg9[%c40, %c0_49] : memref<64x128xbf16, #tpu.memory_space<vmem>>, vector<8x128xbf16>
    tpu.vector_store %arg9[%c40, %c0_49], %174 {strides = array<i32>} : memref<64x128xbf16, #tpu.memory_space<vmem>>, vector<8x128xbf16>,
    %c6 = arith.constant 6 : index
    %c0_50 = arith.constant 0 : index
    %c0_51 = arith.constant 0 : index
    %176 = vector.load %arg1[%c6, %c0_50, %c0_51] : memref<8x8x512xf32, #tpu.memory_space<vmem>>, vector<1x8x512xf32>
    %177 = vector.shape_cast %176 : vector<1x8x512xf32> to vector<8x512xf32>
    %178 = arith.truncf %173 : vector<8x128xf32> to vector<8x128xbf16>
    %c0_52 = arith.constant 0 : index
    %c0_53 = arith.constant 0 : index
    %179 = vector.load %arg2[%c0_52, %c0_53] : memref<128x512xbf16, #tpu.memory_space<vmem>>, vector<128x512xbf16>
    %cst_54 = arith.constant dense<0.000000e+00> : vector<8x512xf32>
    %180 = tpu.matmul %178, %179, %cst_54 {dimension_numbers = #tpu.dot_dimension_numbers<[1], [0], [0], [1], [0, 0, 1, 1], [], []>} : vector<8x128xbf16>, vector<128x512xbf16>, vector<8x512xf32> -> vector<8x512xf32>
    %181 = arith.addf %177, %180 : vector<8x512xf32>
    %182 = vector.extract_strided_slice %181 {offsets = [0, 0], sizes = [8, 256], strides = [1, 1]} : vector<8x512xf32> to vector<8x256xf32>
    %183 = arith.negf %182 : vector<8x256xf32>
    %184 = math.exp %183 : vector<8x256xf32>
    %cst_55 = arith.constant 1.000000e+00 : f32
    %185 = vector.broadcast %cst_55 : f32 to vector<8x256xf32>
    %186 = arith.addf %185, %184 : vector<8x256xf32>
    %187 = arith.divf %185, %186 : vector<8x256xf32>
    %188 = vector.extract_strided_slice %187 {offsets = [0, 0], sizes = [8, 128], strides = [1, 1]} : vector<8x256xf32> to vector<8x128xf32>
    %189 = vector.extract_strided_slice %187 {offsets = [0, 128], sizes = [8, 128], strides = [1, 1]} : vector<8x256xf32> to vector<8x128xf32>
    %190 = vector.extract_strided_slice %181 {offsets = [0, 256], sizes = [8, 128], strides = [1, 1]} : vector<8x512xf32> to vector<8x128xf32>
    %191 = math.tanh %190 : vector<8x128xf32>
    %192 = vector.extract_strided_slice %181 {offsets = [0, 384], sizes = [8, 128], strides = [1, 1]} : vector<8x512xf32> to vector<8x128xf32>
    %193 = arith.negf %192 : vector<8x128xf32>
    %194 = math.exp %193 : vector<8x128xf32>
    %cst_56 = arith.constant 1.000000e+00 : f32
    %195 = vector.broadcast %cst_56 : f32 to vector<8x128xf32>
    %196 = arith.addf %195, %194 : vector<8x128xf32>
    %197 = arith.divf %195, %196 : vector<8x128xf32>
    %198 = arith.mulf %189, %171 : vector<8x128xf32>
    %199 = arith.mulf %188, %191 : vector<8x128xf32>
    %200 = arith.addf %198, %199 : vector<8x128xf32>
    %201 = math.tanh %200 : vector<8x128xf32>
    %202 = arith.mulf %197, %201 : vector<8x128xf32>
    %203 = arith.truncf %202 : vector<8x128xf32> to vector<8x128xbf16>
    %c48 = arith.constant 48 : index
    %c0_57 = arith.constant 0 : index
    %204 = vector.load %arg9[%c48, %c0_57] : memref<64x128xbf16, #tpu.memory_space<vmem>>, vector<8x128xbf16>
    tpu.vector_store %arg9[%c48, %c0_57], %203 {strides = array<i32>} : memref<64x128xbf16, #tpu.memory_space<vmem>>, vector<8x128xbf16>,
    %c7 = arith.constant 7 : index
    %c0_58 = arith.constant 0 : index
    %c0_59 = arith.constant 0 : index
    %205 = vector.load %arg1[%c7, %c0_58, %c0_59] : memref<8x8x512xf32, #tpu.memory_space<vmem>>, vector<1x8x512xf32>
    %206 = vector.shape_cast %205 : vector<1x8x512xf32> to vector<8x512xf32>
    %207 = arith.truncf %202 : vector<8x128xf32> to vector<8x128xbf16>
    %c0_60 = arith.constant 0 : index
    %c0_61 = arith.constant 0 : index
    %208 = vector.load %arg2[%c0_60, %c0_61] : memref<128x512xbf16, #tpu.memory_space<vmem>>, vector<128x512xbf16>
    %cst_62 = arith.constant dense<0.000000e+00> : vector<8x512xf32>
    %209 = tpu.matmul %207, %208, %cst_62 {dimension_numbers = #tpu.dot_dimension_numbers<[1], [0], [0], [1], [0, 0, 1, 1], [], []>} : vector<8x128xbf16>, vector<128x512xbf16>, vector<8x512xf32> -> vector<8x512xf32>
    %210 = arith.addf %206, %209 : vector<8x512xf32>
    %211 = vector.extract_strided_slice %210 {offsets = [0, 0], sizes = [8, 256], strides = [1, 1]} : vector<8x512xf32> to vector<8x256xf32>
    %212 = arith.negf %211 : vector<8x256xf32>
    %213 = math.exp %212 : vector<8x256xf32>
    %cst_63 = arith.constant 1.000000e+00 : f32
    %214 = vector.broadcast %cst_63 : f32 to vector<8x256xf32>
    %215 = arith.addf %214, %213 : vector<8x256xf32>
    %216 = arith.divf %214, %215 : vector<8x256xf32>
    %217 = vector.extract_strided_slice %216 {offsets = [0, 0], sizes = [8, 128], strides = [1, 1]} : vector<8x256xf32> to vector<8x128xf32>
    %218 = vector.extract_strided_slice %216 {offsets = [0, 128], sizes = [8, 128], strides = [1, 1]} : vector<8x256xf32> to vector<8x128xf32>
    %219 = vector.extract_strided_slice %210 {offsets = [0, 256], sizes = [8, 128], strides = [1, 1]} : vector<8x512xf32> to vector<8x128xf32>
    %220 = math.tanh %219 : vector<8x128xf32>
    %221 = vector.extract_strided_slice %210 {offsets = [0, 384], sizes = [8, 128], strides = [1, 1]} : vector<8x512xf32> to vector<8x128xf32>
    %222 = arith.negf %221 : vector<8x128xf32>
    %223 = math.exp %222 : vector<8x128xf32>
    %cst_64 = arith.constant 1.000000e+00 : f32
    %224 = vector.broadcast %cst_64 : f32 to vector<8x128xf32>
    %225 = arith.addf %224, %223 : vector<8x128xf32>
    %226 = arith.divf %224, %225 : vector<8x128xf32>
    %227 = arith.mulf %218, %200 : vector<8x128xf32>
    %228 = arith.mulf %217, %220 : vector<8x128xf32>
    %229 = arith.addf %227, %228 : vector<8x128xf32>
    %230 = math.tanh %229 : vector<8x128xf32>
    %231 = arith.mulf %226, %230 : vector<8x128xf32>
    %232 = arith.truncf %231 : vector<8x128xf32> to vector<8x128xbf16>
    %c56 = arith.constant 56 : index
    %c0_65 = arith.constant 0 : index
    %233 = vector.load %arg9[%c56, %c0_65] : memref<64x128xbf16, #tpu.memory_space<vmem>>, vector<8x128xbf16>
    tpu.vector_store %arg9[%c56, %c0_65], %232 {strides = array<i32>} : memref<64x128xbf16, #tpu.memory_space<vmem>>, vector<8x128xbf16>,
    %c0_66 = arith.constant 0 : index
    %c0_67 = arith.constant 0 : index
    %234 = vector.load %arg9[%c0_66, %c0_67] : memref<64x128xbf16, #tpu.memory_space<vmem>>, vector<64x128xbf16>
    %c0_68 = arith.constant 0 : index
    %c0_69 = arith.constant 0 : index
    %235 = vector.load %arg3[%c0_68, %c0_69] : memref<128x512xbf16, #tpu.memory_space<vmem>>, vector<128x512xbf16>
    %cst_70 = arith.constant dense<0.000000e+00> : vector<64x512xf32>
    %236 = tpu.matmul %234, %235, %cst_70 {dimension_numbers = #tpu.dot_dimension_numbers<[1], [0], [0], [1], [0, 0, 1, 1], [], []>} : vector<64x128xbf16>, vector<128x512xbf16>, vector<64x512xf32> -> vector<64x512xf32>
    %c0_71 = arith.constant 0 : index
    %c0_72 = arith.constant 0 : index
    %237 = vector.load %arg5[%c0_71, %c0_72] : memref<1x512xf32, #tpu.memory_space<vmem>>, vector<1x512xf32>
    %238 = vector.broadcast %237 : vector<1x512xf32> to vector<64x512xf32>
    %239 = arith.addf %236, %238 : vector<64x512xf32>
    %c0_73 = arith.constant 0 : index
    %c0_74 = arith.constant 0 : index
    %240 = vector.load %arg10[%c0_73, %c0_74] : memref<64x512xf32, #tpu.memory_space<vmem>>, vector<64x512xf32>
    tpu.vector_store %arg10[%c0_73, %c0_74], %239 {strides = array<i32>} : memref<64x512xf32, #tpu.memory_space<vmem>>, vector<64x512xf32>,
    %cst_75 = arith.constant 0.000000e+00 : f32
    %241 = vector.broadcast %cst_75 : f32 to vector<8x128xf32>
    %cst_76 = arith.constant 0.000000e+00 : f32
    %242 = vector.broadcast %cst_76 : f32 to vector<8x128xf32>
    %c0_77 = arith.constant 0 : index
    %c0_78 = arith.constant 0 : index
    %243 = vector.load %arg10[%c0_77, %c0_78] : memref<64x512xf32, #tpu.memory_space<vmem>>, vector<8x512xf32>
    %244 = arith.truncf %241 : vector<8x128xf32> to vector<8x128xbf16>
    %c0_79 = arith.constant 0 : index
    %c0_80 = arith.constant 0 : index
    %245 = vector.load %arg4[%c0_79, %c0_80] : memref<128x512xbf16, #tpu.memory_space<vmem>>, vector<128x512xbf16>
    %cst_81 = arith.constant dense<0.000000e+00> : vector<8x512xf32>
    %246 = tpu.matmul %244, %245, %cst_81 {dimension_numbers = #tpu.dot_dimension_numbers<[1], [0], [0], [1], [0, 0, 1, 1], [], []>} : vector<8x128xbf16>, vector<128x512xbf16>, vector<8x512xf32> -> vector<8x512xf32>
    %247 = arith.addf %243, %246 : vector<8x512xf32>
    %248 = vector.extract_strided_slice %247 {offsets = [0, 0], sizes = [8, 256], strides = [1, 1]} : vector<8x512xf32> to vector<8x256xf32>
    %249 = arith.negf %248 : vector<8x256xf32>
    %250 = math.exp %249 : vector<8x256xf32>
    %cst_82 = arith.constant 1.000000e+00 : f32
    %251 = vector.broadcast %cst_82 : f32 to vector<8x256xf32>
    %252 = arith.addf %251, %250 : vector<8x256xf32>
    %253 = arith.divf %251, %252 : vector<8x256xf32>
    %254 = vector.extract_strided_slice %253 {offsets = [0, 0], sizes = [8, 128], strides = [1, 1]} : vector<8x256xf32> to vector<8x128xf32>
    %255 = vector.extract_strided_slice %253 {offsets = [0, 128], sizes = [8, 128], strides = [1, 1]} : vector<8x256xf32> to vector<8x128xf32>
    %256 = vector.extract_strided_slice %247 {offsets = [0, 256], sizes = [8, 128], strides = [1, 1]} : vector<8x512xf32> to vector<8x128xf32>
    %257 = math.tanh %256 : vector<8x128xf32>
    %258 = vector.extract_strided_slice %247 {offsets = [0, 384], sizes = [8, 128], strides = [1, 1]} : vector<8x512xf32> to vector<8x128xf32>
    %259 = arith.negf %258 : vector<8x128xf32>
    %260 = math.exp %259 : vector<8x128xf32>
    %cst_83 = arith.constant 1.000000e+00 : f32
    %261 = vector.broadcast %cst_83 : f32 to vector<8x128xf32>
    %262 = arith.addf %261, %260 : vector<8x128xf32>
    %263 = arith.divf %261, %262 : vector<8x128xf32>
    %264 = arith.mulf %255, %242 : vector<8x128xf32>
    %265 = arith.mulf %254, %257 : vector<8x128xf32>
    %266 = arith.addf %264, %265 : vector<8x128xf32>
    %267 = math.tanh %266 : vector<8x128xf32>
    %268 = arith.mulf %263, %267 : vector<8x128xf32>
    %269 = arith.truncf %268 : vector<8x128xf32> to vector<8x128xbf16>
    %c0_84 = arith.constant 0 : index
    %c0_85 = arith.constant 0 : index
    %270 = vector.load %arg9[%c0_84, %c0_85] : memref<64x128xbf16, #tpu.memory_space<vmem>>, vector<8x128xbf16>
    tpu.vector_store %arg9[%c0_84, %c0_85], %269 {strides = array<i32>} : memref<64x128xbf16, #tpu.memory_space<vmem>>, vector<8x128xbf16>,
    %c8_86 = arith.constant 8 : index
    %c0_87 = arith.constant 0 : index
    %271 = vector.load %arg10[%c8_86, %c0_87] : memref<64x512xf32, #tpu.memory_space<vmem>>, vector<8x512xf32>
    %272 = arith.truncf %268 : vector<8x128xf32> to vector<8x128xbf16>
    %c0_88 = arith.constant 0 : index
    %c0_89 = arith.constant 0 : index
    %273 = vector.load %arg4[%c0_88, %c0_89] : memref<128x512xbf16, #tpu.memory_space<vmem>>, vector<128x512xbf16>
    %cst_90 = arith.constant dense<0.000000e+00> : vector<8x512xf32>
    %274 = tpu.matmul %272, %273, %cst_90 {dimension_numbers = #tpu.dot_dimension_numbers<[1], [0], [0], [1], [0, 0, 1, 1], [], []>} : vector<8x128xbf16>, vector<128x512xbf16>, vector<8x512xf32> -> vector<8x512xf32>
    %275 = arith.addf %271, %274 : vector<8x512xf32>
    %276 = vector.extract_strided_slice %275 {offsets = [0, 0], sizes = [8, 256], strides = [1, 1]} : vector<8x512xf32> to vector<8x256xf32>
    %277 = arith.negf %276 : vector<8x256xf32>
    %278 = math.exp %277 : vector<8x256xf32>
    %cst_91 = arith.constant 1.000000e+00 : f32
    %279 = vector.broadcast %cst_91 : f32 to vector<8x256xf32>
    %280 = arith.addf %279, %278 : vector<8x256xf32>
    %281 = arith.divf %279, %280 : vector<8x256xf32>
    %282 = vector.extract_strided_slice %281 {offsets = [0, 0], sizes = [8, 128], strides = [1, 1]} : vector<8x256xf32> to vector<8x128xf32>
    %283 = vector.extract_strided_slice %281 {offsets = [0, 128], sizes = [8, 128], strides = [1, 1]} : vector<8x256xf32> to vector<8x128xf32>
    %284 = vector.extract_strided_slice %275 {offsets = [0, 256], sizes = [8, 128], strides = [1, 1]} : vector<8x512xf32> to vector<8x128xf32>
    %285 = math.tanh %284 : vector<8x128xf32>
    %286 = vector.extract_strided_slice %275 {offsets = [0, 384], sizes = [8, 128], strides = [1, 1]} : vector<8x512xf32> to vector<8x128xf32>
    %287 = arith.negf %286 : vector<8x128xf32>
    %288 = math.exp %287 : vector<8x128xf32>
    %cst_92 = arith.constant 1.000000e+00 : f32
    %289 = vector.broadcast %cst_92 : f32 to vector<8x128xf32>
    %290 = arith.addf %289, %288 : vector<8x128xf32>
    %291 = arith.divf %289, %290 : vector<8x128xf32>
    %292 = arith.mulf %283, %266 : vector<8x128xf32>
    %293 = arith.mulf %282, %285 : vector<8x128xf32>
    %294 = arith.addf %292, %293 : vector<8x128xf32>
    %295 = math.tanh %294 : vector<8x128xf32>
    %296 = arith.mulf %291, %295 : vector<8x128xf32>
    %297 = arith.truncf %296 : vector<8x128xf32> to vector<8x128xbf16>
    %c8_93 = arith.constant 8 : index
    %c0_94 = arith.constant 0 : index
    %298 = vector.load %arg9[%c8_93, %c0_94] : memref<64x128xbf16, #tpu.memory_space<vmem>>, vector<8x128xbf16>
    tpu.vector_store %arg9[%c8_93, %c0_94], %297 {strides = array<i32>} : memref<64x128xbf16, #tpu.memory_space<vmem>>, vector<8x128xbf16>,
    %c16_95 = arith.constant 16 : index
    %c0_96 = arith.constant 0 : index
    %299 = vector.load %arg10[%c16_95, %c0_96] : memref<64x512xf32, #tpu.memory_space<vmem>>, vector<8x512xf32>
    %300 = arith.truncf %296 : vector<8x128xf32> to vector<8x128xbf16>
    %c0_97 = arith.constant 0 : index
    %c0_98 = arith.constant 0 : index
    %301 = vector.load %arg4[%c0_97, %c0_98] : memref<128x512xbf16, #tpu.memory_space<vmem>>, vector<128x512xbf16>
    %cst_99 = arith.constant dense<0.000000e+00> : vector<8x512xf32>
    %302 = tpu.matmul %300, %301, %cst_99 {dimension_numbers = #tpu.dot_dimension_numbers<[1], [0], [0], [1], [0, 0, 1, 1], [], []>} : vector<8x128xbf16>, vector<128x512xbf16>, vector<8x512xf32> -> vector<8x512xf32>
    %303 = arith.addf %299, %302 : vector<8x512xf32>
    %304 = vector.extract_strided_slice %303 {offsets = [0, 0], sizes = [8, 256], strides = [1, 1]} : vector<8x512xf32> to vector<8x256xf32>
    %305 = arith.negf %304 : vector<8x256xf32>
    %306 = math.exp %305 : vector<8x256xf32>
    %cst_100 = arith.constant 1.000000e+00 : f32
    %307 = vector.broadcast %cst_100 : f32 to vector<8x256xf32>
    %308 = arith.addf %307, %306 : vector<8x256xf32>
    %309 = arith.divf %307, %308 : vector<8x256xf32>
    %310 = vector.extract_strided_slice %309 {offsets = [0, 0], sizes = [8, 128], strides = [1, 1]} : vector<8x256xf32> to vector<8x128xf32>
    %311 = vector.extract_strided_slice %309 {offsets = [0, 128], sizes = [8, 128], strides = [1, 1]} : vector<8x256xf32> to vector<8x128xf32>
    %312 = vector.extract_strided_slice %303 {offsets = [0, 256], sizes = [8, 128], strides = [1, 1]} : vector<8x512xf32> to vector<8x128xf32>
    %313 = math.tanh %312 : vector<8x128xf32>
    %314 = vector.extract_strided_slice %303 {offsets = [0, 384], sizes = [8, 128], strides = [1, 1]} : vector<8x512xf32> to vector<8x128xf32>
    %315 = arith.negf %314 : vector<8x128xf32>
    %316 = math.exp %315 : vector<8x128xf32>
    %cst_101 = arith.constant 1.000000e+00 : f32
    %317 = vector.broadcast %cst_101 : f32 to vector<8x128xf32>
    %318 = arith.addf %317, %316 : vector<8x128xf32>
    %319 = arith.divf %317, %318 : vector<8x128xf32>
    %320 = arith.mulf %311, %294 : vector<8x128xf32>
    %321 = arith.mulf %310, %313 : vector<8x128xf32>
    %322 = arith.addf %320, %321 : vector<8x128xf32>
    %323 = math.tanh %322 : vector<8x128xf32>
    %324 = arith.mulf %319, %323 : vector<8x128xf32>
    %325 = arith.truncf %324 : vector<8x128xf32> to vector<8x128xbf16>
    %c16_102 = arith.constant 16 : index
    %c0_103 = arith.constant 0 : index
    %326 = vector.load %arg9[%c16_102, %c0_103] : memref<64x128xbf16, #tpu.memory_space<vmem>>, vector<8x128xbf16>
    tpu.vector_store %arg9[%c16_102, %c0_103], %325 {strides = array<i32>} : memref<64x128xbf16, #tpu.memory_space<vmem>>, vector<8x128xbf16>,
    %c24_104 = arith.constant 24 : index
    %c0_105 = arith.constant 0 : index
    %327 = vector.load %arg10[%c24_104, %c0_105] : memref<64x512xf32, #tpu.memory_space<vmem>>, vector<8x512xf32>
    %328 = arith.truncf %324 : vector<8x128xf32> to vector<8x128xbf16>
    %c0_106 = arith.constant 0 : index
    %c0_107 = arith.constant 0 : index
    %329 = vector.load %arg4[%c0_106, %c0_107] : memref<128x512xbf16, #tpu.memory_space<vmem>>, vector<128x512xbf16>
    %cst_108 = arith.constant dense<0.000000e+00> : vector<8x512xf32>
    %330 = tpu.matmul %328, %329, %cst_108 {dimension_numbers = #tpu.dot_dimension_numbers<[1], [0], [0], [1], [0, 0, 1, 1], [], []>} : vector<8x128xbf16>, vector<128x512xbf16>, vector<8x512xf32> -> vector<8x512xf32>
    %331 = arith.addf %327, %330 : vector<8x512xf32>
    %332 = vector.extract_strided_slice %331 {offsets = [0, 0], sizes = [8, 256], strides = [1, 1]} : vector<8x512xf32> to vector<8x256xf32>
    %333 = arith.negf %332 : vector<8x256xf32>
    %334 = math.exp %333 : vector<8x256xf32>
    %cst_109 = arith.constant 1.000000e+00 : f32
    %335 = vector.broadcast %cst_109 : f32 to vector<8x256xf32>
    %336 = arith.addf %335, %334 : vector<8x256xf32>
    %337 = arith.divf %335, %336 : vector<8x256xf32>
    %338 = vector.extract_strided_slice %337 {offsets = [0, 0], sizes = [8, 128], strides = [1, 1]} : vector<8x256xf32> to vector<8x128xf32>
    %339 = vector.extract_strided_slice %337 {offsets = [0, 128], sizes = [8, 128], strides = [1, 1]} : vector<8x256xf32> to vector<8x128xf32>
    %340 = vector.extract_strided_slice %331 {offsets = [0, 256], sizes = [8, 128], strides = [1, 1]} : vector<8x512xf32> to vector<8x128xf32>
    %341 = math.tanh %340 : vector<8x128xf32>
    %342 = vector.extract_strided_slice %331 {offsets = [0, 384], sizes = [8, 128], strides = [1, 1]} : vector<8x512xf32> to vector<8x128xf32>
    %343 = arith.negf %342 : vector<8x128xf32>
    %344 = math.exp %343 : vector<8x128xf32>
    %cst_110 = arith.constant 1.000000e+00 : f32
    %345 = vector.broadcast %cst_110 : f32 to vector<8x128xf32>
    %346 = arith.addf %345, %344 : vector<8x128xf32>
    %347 = arith.divf %345, %346 : vector<8x128xf32>
    %348 = arith.mulf %339, %322 : vector<8x128xf32>
    %349 = arith.mulf %338, %341 : vector<8x128xf32>
    %350 = arith.addf %348, %349 : vector<8x128xf32>
    %351 = math.tanh %350 : vector<8x128xf32>
    %352 = arith.mulf %347, %351 : vector<8x128xf32>
    %353 = arith.truncf %352 : vector<8x128xf32> to vector<8x128xbf16>
    %c24_111 = arith.constant 24 : index
    %c0_112 = arith.constant 0 : index
    %354 = vector.load %arg9[%c24_111, %c0_112] : memref<64x128xbf16, #tpu.memory_space<vmem>>, vector<8x128xbf16>
    tpu.vector_store %arg9[%c24_111, %c0_112], %353 {strides = array<i32>} : memref<64x128xbf16, #tpu.memory_space<vmem>>, vector<8x128xbf16>,
    %c32_113 = arith.constant 32 : index
    %c0_114 = arith.constant 0 : index
    %355 = vector.load %arg10[%c32_113, %c0_114] : memref<64x512xf32, #tpu.memory_space<vmem>>, vector<8x512xf32>
    %356 = arith.truncf %352 : vector<8x128xf32> to vector<8x128xbf16>
    %c0_115 = arith.constant 0 : index
    %c0_116 = arith.constant 0 : index
    %357 = vector.load %arg4[%c0_115, %c0_116] : memref<128x512xbf16, #tpu.memory_space<vmem>>, vector<128x512xbf16>
    %cst_117 = arith.constant dense<0.000000e+00> : vector<8x512xf32>
    %358 = tpu.matmul %356, %357, %cst_117 {dimension_numbers = #tpu.dot_dimension_numbers<[1], [0], [0], [1], [0, 0, 1, 1], [], []>} : vector<8x128xbf16>, vector<128x512xbf16>, vector<8x512xf32> -> vector<8x512xf32>
    %359 = arith.addf %355, %358 : vector<8x512xf32>
    %360 = vector.extract_strided_slice %359 {offsets = [0, 0], sizes = [8, 256], strides = [1, 1]} : vector<8x512xf32> to vector<8x256xf32>
    %361 = arith.negf %360 : vector<8x256xf32>
    %362 = math.exp %361 : vector<8x256xf32>
    %cst_118 = arith.constant 1.000000e+00 : f32
    %363 = vector.broadcast %cst_118 : f32 to vector<8x256xf32>
    %364 = arith.addf %363, %362 : vector<8x256xf32>
    %365 = arith.divf %363, %364 : vector<8x256xf32>
    %366 = vector.extract_strided_slice %365 {offsets = [0, 0], sizes = [8, 128], strides = [1, 1]} : vector<8x256xf32> to vector<8x128xf32>
    %367 = vector.extract_strided_slice %365 {offsets = [0, 128], sizes = [8, 128], strides = [1, 1]} : vector<8x256xf32> to vector<8x128xf32>
    %368 = vector.extract_strided_slice %359 {offsets = [0, 256], sizes = [8, 128], strides = [1, 1]} : vector<8x512xf32> to vector<8x128xf32>
    %369 = math.tanh %368 : vector<8x128xf32>
    %370 = vector.extract_strided_slice %359 {offsets = [0, 384], sizes = [8, 128], strides = [1, 1]} : vector<8x512xf32> to vector<8x128xf32>
    %371 = arith.negf %370 : vector<8x128xf32>
    %372 = math.exp %371 : vector<8x128xf32>
    %cst_119 = arith.constant 1.000000e+00 : f32
    %373 = vector.broadcast %cst_119 : f32 to vector<8x128xf32>
    %374 = arith.addf %373, %372 : vector<8x128xf32>
    %375 = arith.divf %373, %374 : vector<8x128xf32>
    %376 = arith.mulf %367, %350 : vector<8x128xf32>
    %377 = arith.mulf %366, %369 : vector<8x128xf32>
    %378 = arith.addf %376, %377 : vector<8x128xf32>
    %379 = math.tanh %378 : vector<8x128xf32>
    %380 = arith.mulf %375, %379 : vector<8x128xf32>
    %381 = arith.truncf %380 : vector<8x128xf32> to vector<8x128xbf16>
    %c32_120 = arith.constant 32 : index
    %c0_121 = arith.constant 0 : index
    %382 = vector.load %arg9[%c32_120, %c0_121] : memref<64x128xbf16, #tpu.memory_space<vmem>>, vector<8x128xbf16>
    tpu.vector_store %arg9[%c32_120, %c0_121], %381 {strides = array<i32>} : memref<64x128xbf16, #tpu.memory_space<vmem>>, vector<8x128xbf16>,
    %c40_122 = arith.constant 40 : index
    %c0_123 = arith.constant 0 : index
    %383 = vector.load %arg10[%c40_122, %c0_123] : memref<64x512xf32, #tpu.memory_space<vmem>>, vector<8x512xf32>
    %384 = arith.truncf %380 : vector<8x128xf32> to vector<8x128xbf16>
    %c0_124 = arith.constant 0 : index
    %c0_125 = arith.constant 0 : index
    %385 = vector.load %arg4[%c0_124, %c0_125] : memref<128x512xbf16, #tpu.memory_space<vmem>>, vector<128x512xbf16>
    %cst_126 = arith.constant dense<0.000000e+00> : vector<8x512xf32>
    %386 = tpu.matmul %384, %385, %cst_126 {dimension_numbers = #tpu.dot_dimension_numbers<[1], [0], [0], [1], [0, 0, 1, 1], [], []>} : vector<8x128xbf16>, vector<128x512xbf16>, vector<8x512xf32> -> vector<8x512xf32>
    %387 = arith.addf %383, %386 : vector<8x512xf32>
    %388 = vector.extract_strided_slice %387 {offsets = [0, 0], sizes = [8, 256], strides = [1, 1]} : vector<8x512xf32> to vector<8x256xf32>
    %389 = arith.negf %388 : vector<8x256xf32>
    %390 = math.exp %389 : vector<8x256xf32>
    %cst_127 = arith.constant 1.000000e+00 : f32
    %391 = vector.broadcast %cst_127 : f32 to vector<8x256xf32>
    %392 = arith.addf %391, %390 : vector<8x256xf32>
    %393 = arith.divf %391, %392 : vector<8x256xf32>
    %394 = vector.extract_strided_slice %393 {offsets = [0, 0], sizes = [8, 128], strides = [1, 1]} : vector<8x256xf32> to vector<8x128xf32>
    %395 = vector.extract_strided_slice %393 {offsets = [0, 128], sizes = [8, 128], strides = [1, 1]} : vector<8x256xf32> to vector<8x128xf32>
    %396 = vector.extract_strided_slice %387 {offsets = [0, 256], sizes = [8, 128], strides = [1, 1]} : vector<8x512xf32> to vector<8x128xf32>
    %397 = math.tanh %396 : vector<8x128xf32>
    %398 = vector.extract_strided_slice %387 {offsets = [0, 384], sizes = [8, 128], strides = [1, 1]} : vector<8x512xf32> to vector<8x128xf32>
    %399 = arith.negf %398 : vector<8x128xf32>
    %400 = math.exp %399 : vector<8x128xf32>
    %cst_128 = arith.constant 1.000000e+00 : f32
    %401 = vector.broadcast %cst_128 : f32 to vector<8x128xf32>
    %402 = arith.addf %401, %400 : vector<8x128xf32>
    %403 = arith.divf %401, %402 : vector<8x128xf32>
    %404 = arith.mulf %395, %378 : vector<8x128xf32>
    %405 = arith.mulf %394, %397 : vector<8x128xf32>
    %406 = arith.addf %404, %405 : vector<8x128xf32>
    %407 = math.tanh %406 : vector<8x128xf32>
    %408 = arith.mulf %403, %407 : vector<8x128xf32>
    %409 = arith.truncf %408 : vector<8x128xf32> to vector<8x128xbf16>
    %c40_129 = arith.constant 40 : index
    %c0_130 = arith.constant 0 : index
    %410 = vector.load %arg9[%c40_129, %c0_130] : memref<64x128xbf16, #tpu.memory_space<vmem>>, vector<8x128xbf16>
    tpu.vector_store %arg9[%c40_129, %c0_130], %409 {strides = array<i32>} : memref<64x128xbf16, #tpu.memory_space<vmem>>, vector<8x128xbf16>,
    %c48_131 = arith.constant 48 : index
    %c0_132 = arith.constant 0 : index
    %411 = vector.load %arg10[%c48_131, %c0_132] : memref<64x512xf32, #tpu.memory_space<vmem>>, vector<8x512xf32>
    %412 = arith.truncf %408 : vector<8x128xf32> to vector<8x128xbf16>
    %c0_133 = arith.constant 0 : index
    %c0_134 = arith.constant 0 : index
    %413 = vector.load %arg4[%c0_133, %c0_134] : memref<128x512xbf16, #tpu.memory_space<vmem>>, vector<128x512xbf16>
    %cst_135 = arith.constant dense<0.000000e+00> : vector<8x512xf32>
    %414 = tpu.matmul %412, %413, %cst_135 {dimension_numbers = #tpu.dot_dimension_numbers<[1], [0], [0], [1], [0, 0, 1, 1], [], []>} : vector<8x128xbf16>, vector<128x512xbf16>, vector<8x512xf32> -> vector<8x512xf32>
    %415 = arith.addf %411, %414 : vector<8x512xf32>
    %416 = vector.extract_strided_slice %415 {offsets = [0, 0], sizes = [8, 256], strides = [1, 1]} : vector<8x512xf32> to vector<8x256xf32>
    %417 = arith.negf %416 : vector<8x256xf32>
    %418 = math.exp %417 : vector<8x256xf32>
    %cst_136 = arith.constant 1.000000e+00 : f32
    %419 = vector.broadcast %cst_136 : f32 to vector<8x256xf32>
    %420 = arith.addf %419, %418 : vector<8x256xf32>
    %421 = arith.divf %419, %420 : vector<8x256xf32>
    %422 = vector.extract_strided_slice %421 {offsets = [0, 0], sizes = [8, 128], strides = [1, 1]} : vector<8x256xf32> to vector<8x128xf32>
    %423 = vector.extract_strided_slice %421 {offsets = [0, 128], sizes = [8, 128], strides = [1, 1]} : vector<8x256xf32> to vector<8x128xf32>
    %424 = vector.extract_strided_slice %415 {offsets = [0, 256], sizes = [8, 128], strides = [1, 1]} : vector<8x512xf32> to vector<8x128xf32>
    %425 = math.tanh %424 : vector<8x128xf32>
    %426 = vector.extract_strided_slice %415 {offsets = [0, 384], sizes = [8, 128], strides = [1, 1]} : vector<8x512xf32> to vector<8x128xf32>
    %427 = arith.negf %426 : vector<8x128xf32>
    %428 = math.exp %427 : vector<8x128xf32>
    %cst_137 = arith.constant 1.000000e+00 : f32
    %429 = vector.broadcast %cst_137 : f32 to vector<8x128xf32>
    %430 = arith.addf %429, %428 : vector<8x128xf32>
    %431 = arith.divf %429, %430 : vector<8x128xf32>
    %432 = arith.mulf %423, %406 : vector<8x128xf32>
    %433 = arith.mulf %422, %425 : vector<8x128xf32>
    %434 = arith.addf %432, %433 : vector<8x128xf32>
    %435 = math.tanh %434 : vector<8x128xf32>
    %436 = arith.mulf %431, %435 : vector<8x128xf32>
    %437 = arith.truncf %436 : vector<8x128xf32> to vector<8x128xbf16>
    %c48_138 = arith.constant 48 : index
    %c0_139 = arith.constant 0 : index
    %438 = vector.load %arg9[%c48_138, %c0_139] : memref<64x128xbf16, #tpu.memory_space<vmem>>, vector<8x128xbf16>
    tpu.vector_store %arg9[%c48_138, %c0_139], %437 {strides = array<i32>} : memref<64x128xbf16, #tpu.memory_space<vmem>>, vector<8x128xbf16>,
    %c56_140 = arith.constant 56 : index
    %c0_141 = arith.constant 0 : index
    %439 = vector.load %arg10[%c56_140, %c0_141] : memref<64x512xf32, #tpu.memory_space<vmem>>, vector<8x512xf32>
    %440 = arith.truncf %436 : vector<8x128xf32> to vector<8x128xbf16>
    %c0_142 = arith.constant 0 : index
    %c0_143 = arith.constant 0 : index
    %441 = vector.load %arg4[%c0_142, %c0_143] : memref<128x512xbf16, #tpu.memory_space<vmem>>, vector<128x512xbf16>
    %cst_144 = arith.constant dense<0.000000e+00> : vector<8x512xf32>
    %442 = tpu.matmul %440, %441, %cst_144 {dimension_numbers = #tpu.dot_dimension_numbers<[1], [0], [0], [1], [0, 0, 1, 1], [], []>} : vector<8x128xbf16>, vector<128x512xbf16>, vector<8x512xf32> -> vector<8x512xf32>
    %443 = arith.addf %439, %442 : vector<8x512xf32>
    %444 = vector.extract_strided_slice %443 {offsets = [0, 0], sizes = [8, 256], strides = [1, 1]} : vector<8x512xf32> to vector<8x256xf32>
    %445 = arith.negf %444 : vector<8x256xf32>
    %446 = math.exp %445 : vector<8x256xf32>
    %cst_145 = arith.constant 1.000000e+00 : f32
    %447 = vector.broadcast %cst_145 : f32 to vector<8x256xf32>
    %448 = arith.addf %447, %446 : vector<8x256xf32>
    %449 = arith.divf %447, %448 : vector<8x256xf32>
    %450 = vector.extract_strided_slice %449 {offsets = [0, 0], sizes = [8, 128], strides = [1, 1]} : vector<8x256xf32> to vector<8x128xf32>
    %451 = vector.extract_strided_slice %449 {offsets = [0, 128], sizes = [8, 128], strides = [1, 1]} : vector<8x256xf32> to vector<8x128xf32>
    %452 = vector.extract_strided_slice %443 {offsets = [0, 256], sizes = [8, 128], strides = [1, 1]} : vector<8x512xf32> to vector<8x128xf32>
    %453 = math.tanh %452 : vector<8x128xf32>
    %454 = vector.extract_strided_slice %443 {offsets = [0, 384], sizes = [8, 128], strides = [1, 1]} : vector<8x512xf32> to vector<8x128xf32>
    %455 = arith.negf %454 : vector<8x128xf32>
    %456 = math.exp %455 : vector<8x128xf32>
    %cst_146 = arith.constant 1.000000e+00 : f32
    %457 = vector.broadcast %cst_146 : f32 to vector<8x128xf32>
    %458 = arith.addf %457, %456 : vector<8x128xf32>
    %459 = arith.divf %457, %458 : vector<8x128xf32>
    %460 = arith.mulf %451, %434 : vector<8x128xf32>
    %461 = arith.mulf %450, %453 : vector<8x128xf32>
    %462 = arith.addf %460, %461 : vector<8x128xf32>
    %463 = math.tanh %462 : vector<8x128xf32>
    %464 = arith.mulf %459, %463 : vector<8x128xf32>
    %465 = arith.truncf %464 : vector<8x128xf32> to vector<8x128xbf16>
    %c56_147 = arith.constant 56 : index
    %c0_148 = arith.constant 0 : index
    %466 = vector.load %arg9[%c56_147, %c0_148] : memref<64x128xbf16, #tpu.memory_space<vmem>>, vector<8x128xbf16>
    tpu.vector_store %arg9[%c56_147, %c0_148], %465 {strides = array<i32>} : memref<64x128xbf16, #tpu.memory_space<vmem>>, vector<8x128xbf16>,
    %c0_149 = arith.constant 0 : index
    %c0_150 = arith.constant 0 : index
    %467 = vector.load %arg9[%c0_149, %c0_150] : memref<64x128xbf16, #tpu.memory_space<vmem>>, vector<64x128xbf16>
    %c0_151 = arith.constant 0 : index
    %c0_152 = arith.constant 0 : index
    %468 = vector.load %arg6[%c0_151, %c0_152] : memref<128x128xbf16, #tpu.memory_space<vmem>>, vector<128x128xbf16>
    %cst_153 = arith.constant dense<0.000000e+00> : vector<64x128xf32>
    %469 = tpu.matmul %467, %468, %cst_153 {dimension_numbers = #tpu.dot_dimension_numbers<[1], [0], [0], [1], [0, 0, 1, 1], [], []>} : vector<64x128xbf16>, vector<128x128xbf16>, vector<64x128xf32> -> vector<64x128xf32>
    %c0_154 = arith.constant 0 : index
    %c0_155 = arith.constant 0 : index
    %470 = vector.load %arg7[%c0_154, %c0_155] : memref<1x128xf32, #tpu.memory_space<vmem>>, vector<1x128xf32>
    %471 = vector.broadcast %470 : vector<1x128xf32> to vector<64x128xf32>
    %472 = arith.addf %469, %471 : vector<64x128xf32>
    %cst_156 = arith.constant 0.000000e+00 : f32
    %473 = vector.broadcast %cst_156 : f32 to vector<64x128xf32>
    %474 = arith.maximumf %472, %473 : vector<64x128xf32>
    %475 = vector.shape_cast %474 : vector<64x128xf32> to vector<8x8x128xf32>
    %c0_157 = arith.constant 0 : index
    %c0_158 = arith.constant 0 : index
    %c0_159 = arith.constant 0 : index
    %476 = vector.load %arg8[%c0_157, %c0_158, %c0_159] : memref<8x8x128xf32, #tpu.memory_space<vmem>>, vector<8x8x128xf32>
    tpu.vector_store %arg8[%c0_157, %c0_158, %c0_159], %475 {strides = array<i32>} : memref<8x8x128xf32, #tpu.memory_space<vmem>>, vector<8x8x128xf32>,
    return
  }
  func.func @transform_0(%arg0: i32) -> (i32, i32, i32) {
    %c0_i32 = arith.constant 0 : i32
    %c0_i32_0 = arith.constant 0 : i32
    %c0_i32_1 = arith.constant 0 : i32
    return %c0_i32, %arg0, %c0_i32_0 : i32, i32, i32
  }
  func.func @transform_1(%arg0: i32) -> (i32, i32) {
    %c0_i32 = arith.constant 0 : i32
    %c0_i32_0 = arith.constant 0 : i32
    %c0_i32_1 = arith.constant 0 : i32
    return %c0_i32, %c0_i32_0 : i32, i32
  }
  func.func @transform_2(%arg0: i32) -> (i32, i32) {
    %c0_i32 = arith.constant 0 : i32
    %c0_i32_0 = arith.constant 0 : i32
    %c0_i32_1 = arith.constant 0 : i32
    return %c0_i32, %c0_i32_0 : i32, i32
  }
  func.func @transform_3(%arg0: i32) -> (i32, i32) {
    %c0_i32 = arith.constant 0 : i32
    %c0_i32_0 = arith.constant 0 : i32
    %c0_i32_1 = arith.constant 0 : i32
    return %c0_i32, %c0_i32_0 : i32, i32
  }
  func.func @transform_4(%arg0: i32) -> (i32, i32) {
    %c0_i32 = arith.constant 0 : i32
    %c0_i32_0 = arith.constant 0 : i32
    %c0_i32_1 = arith.constant 0 : i32
    return %c0_i32, %c0_i32_0 : i32, i32
  }
  func.func @transform_5(%arg0: i32) -> (i32, i32) {
    %c0_i32 = arith.constant 0 : i32
    %c0_i32_0 = arith.constant 0 : i32
    %c0_i32_1 = arith.constant 0 : i32
    return %c0_i32, %c0_i32_0 : i32, i32
  }
  func.func @transform_6(%arg0: i32) -> (i32, i32) {
    %c0_i32 = arith.constant 0 : i32
    %c0_i32_0 = arith.constant 0 : i32
    %c0_i32_1 = arith.constant 0 : i32
    return %c0_i32, %c0_i32_0 : i32, i32
  }
  func.func @transform_7(%arg0: i32) -> (i32, i32, i32) {
    %c0_i32 = arith.constant 0 : i32
    %c0_i32_0 = arith.constant 0 : i32
    %c0_i32_1 = arith.constant 0 : i32
    return %c0_i32, %arg0, %c0_i32_0 : i32, i32, i32
  }
}

</mosaic_0001>

<llo_original>
// kernel: tpu_custom_call.1
$region0: #{tpu_custom_call.1}
  #allocation0 [shape = 'u32[]', space=smem, size = 0x4, offset = 0x4, fixed_abs, tag = 'smem constant byte address 0x4 - core index']
  #allocation1 [shape = 'u32[144,128]{1,0:T(1,128)}', space=vmem, size = 0x12000, scoped, tag = 'internal scratch']
  #allocation2 [shape = 'bf16[64,128]{1,0:T(16,128)(2,1)}', space=vmem, size = 0x4000, scoped, tag = 'scratch operand']
  #allocation3 [shape = 'f32[64,512]{1,0:T(8,128)}', space=vmem, size = 0x20000, scoped, tag = 'scratch operand']
  %s0 = inlined_call_operand.hbm [shape: f32[8,8,512], index: 0, kind: input, shape index: {}]
  %s1 = inlined_call_operand.hbm [shape: bf16[128,512], index: 1, kind: input, shape index: {}]
  %s2 = inlined_call_operand.hbm [shape: bf16[128,512], index: 2, kind: input, shape index: {}]
  %s3 = inlined_call_operand.hbm [shape: bf16[128,512], index: 3, kind: input, shape index: {}]
  %s4 = inlined_call_operand.vmem [shape: f32[1,512], index: 4, kind: input, shape index: {}]
  %s5 = inlined_call_operand.hbm [shape: bf16[128,128], index: 5, kind: input, shape index: {}]
  %s6 = inlined_call_operand.vmem [shape: f32[1,128], index: 6, kind: input, shape index: {}]
  %s7 = inlined_call_operand.hbm [shape: f32[8,8,128], index: 7, kind: output, shape index: {}]
  %s8 = sld [smem:[#allocation0]]
  $region58: #{tpu_custom_call.1} parent=0
    _
  %s10 = ssub.s32 1, %s8
  %s11 = scalar_select 0, %s10, %s8
  $region1: #{tpu_custom_call.1} parent=0
    #allocation4 [shape = 'u8[131072]{0}', space=vmem, size = 0x20000, scoped, tag = 'input window, operand 0, single buffered']
    #allocation5 [shape = 's32[1]{0}', space=sflag, size = 0x4, scoped, tag = 'scoped memory for tpu_custom_call.1']
    #allocation6 [shape = 's32[1]{0}', space=sflag, size = 0x4, scoped, tag = 'scoped memory for tpu_custom_call.1']
    #allocation7 [shape = 'u8[131072]{0}', space=vmem, size = 0x20000, scoped, tag = 'input window, operand 1, single buffered']
    #allocation8 [shape = 's32[1]{0}', space=sflag, size = 0x4, scoped, tag = 'scoped memory for tpu_custom_call.1']
    #allocation9 [shape = 'u8[131072]{0}', space=vmem, size = 0x20000, scoped, tag = 'input window, operand 2, single buffered']
    #allocation10 [shape = 'u8[131072]{0}', space=vmem, size = 0x20000, scoped, tag = 'input window, operand 3, single buffered']
    #allocation11 [shape = 's32[1]{0}', space=sflag, size = 0x4, scoped, tag = 'scoped memory for tpu_custom_call.1']
    #allocation12 [shape = 'u8[32768]{0}', space=vmem, size = 0x8000, scoped, tag = 'input window, operand 5, single buffered']
    #allocation13 [shape = 'u8[32768]{0}', space=vmem, size = 0x8000, scoped, tag = 'output window, operand 0, single buffered']
    %12 = vsyncpa [#allocation5], 0
    %13 = vsyncpa [#allocation8], 0
    %14 = vsyncpa [#allocation11], 0
    %15 = vsyncpa [#allocation6], 0
    // Predicated region
    $region2: #{tpu_custom_call.1} parent=1 // pred_check
      _
    $region3: #{tpu_custom_call.1} parent=1 // pred_check_branch
      %17 = sbr.rel (0) target = $region5
    $region4: #{tpu_custom_call.1} parent=1 // pred_region
      %s19 = ssub.s32 4096, 4096
      %20 = vsyncadd [#allocation5], %s19
      %s21 = sshll.u32 [#allocation4], 4
      %s22 = int_to_ptr.vmem [resolvable:$true] %s21
      %27 = dma.hbm_to_vmem [thread:$0]  %s0, 4096, %s22, [#allocation5], 512, 512, 32
    $region5: #{tpu_custom_call.1} parent=1 // pred_fallthru
      _
    // Predicated region
    $region6: #{tpu_custom_call.1} parent=1 // pred_check
      _
    $region7: #{tpu_custom_call.1} parent=1 // pred_check_branch
      %29 = sbr.rel (0) target = $region9
    $region8: #{tpu_custom_call.1} parent=1 // pred_region
      %s31 = ssub.s32 4096, 4096
      %32 = vsyncadd [#allocation8], %s31
      %s33 = sshll.u32 [#allocation7], 4
      %s34 = int_to_ptr.vmem [resolvable:$true] %s33
      %39 = dma.hbm_to_vmem [thread:$0]  %s1, 4096, %s34, [#allocation8], 256, 256, 16
    $region9: #{tpu_custom_call.1} parent=1 // pred_fallthru
      _
    // Predicated region
    $region10: #{tpu_custom_call.1} parent=1 // pred_check
      _
    $region11: #{tpu_custom_call.1} parent=1 // pred_check_branch
      %41 = sbr.rel (0) target = $region13
    $region12: #{tpu_custom_call.1} parent=1 // pred_region
      %s43 = ssub.s32 4096, 4096
      %44 = vsyncadd [#allocation8], %s43
      %s45 = sshll.u32 [#allocation9], 4
      %s46 = int_to_ptr.vmem [resolvable:$true] %s45
      %51 = dma.hbm_to_vmem [thread:$0]  %s2, 4096, %s46, [#allocation8], 256, 256, 16
    $region13: #{tpu_custom_call.1} parent=1 // pred_fallthru
      _
    // Predicated region
    $region14: #{tpu_custom_call.1} parent=1 // pred_check
      _
    $region15: #{tpu_custom_call.1} parent=1 // pred_check_branch
      %53 = sbr.rel (0) target = $region17
    $region16: #{tpu_custom_call.1} parent=1 // pred_region
      %s55 = ssub.s32 4096, 4096
      %56 = vsyncadd [#allocation11], %s55
      %s57 = sshll.u32 [#allocation10], 4
      %s58 = int_to_ptr.vmem [resolvable:$true] %s57
      %63 = dma.hbm_to_vmem [thread:$0]  %s3, 4096, %s58, [#allocation11], 256, 256, 16
    $region17: #{tpu_custom_call.1} parent=1 // pred_fallthru
      _
    // Predicated region
    $region18: #{tpu_custom_call.1} parent=1 // pred_check
      _
    $region19: #{tpu_custom_call.1} parent=1 // pred_check_branch
      %65 = sbr.rel (0) target = $region21
    $region20: #{tpu_custom_call.1} parent=1 // pred_region
      _
    $region21: #{tpu_custom_call.1} parent=1 // pred_fallthru
      _
    // Predicated region
    $region22: #{tpu_custom_call.1} parent=1 // pred_check
      _
    $region23: #{tpu_custom_call.1} parent=1 // pred_check_branch
      %67 = sbr.rel (0) target = $region25
    $region24: #{tpu_custom_call.1} parent=1 // pred_region
      %s69 = ssub.s32 1024, 1024
      %70 = vsyncadd [#allocation11], %s69
      %s71 = sshll.u32 [#allocation12], 4
      %s72 = int_to_ptr.vmem [resolvable:$true] %s71
      %77 = dma.hbm_to_vmem [thread:$0]  %s5, 1024, %s72, [#allocation11], 64, 64, 4
    $region25: #{tpu_custom_call.1} parent=1 // pred_fallthru
      _
    // Predicated region
    $region26: #{tpu_custom_call.1} parent=1 // pred_check
      _
    $region27: #{tpu_custom_call.1} parent=1 // pred_check_branch
      %79 = sbr.rel (0) target = $region29
    $region28: #{tpu_custom_call.1} parent=1 // pred_region
      _
    $region29: #{tpu_custom_call.1} parent=1 // pred_fallthru
      _
    // Predicated region
    $region30: #{tpu_custom_call.1} parent=1 // pred_check
      _
    $region31: #{tpu_custom_call.1} parent=1 // pred_check_branch
      %81 = sbr.rel (0) target = $region33
    $region32: #{tpu_custom_call.1} parent=1 // pred_region
      %82 = dma.done [#allocation5], 4096
    $region33: #{tpu_custom_call.1} parent=1 // pred_fallthru
      _
    // Predicated region
    $region34: #{tpu_custom_call.1} parent=1 // pred_check
      _
    $region35: #{tpu_custom_call.1} parent=1 // pred_check_branch
      %84 = sbr.rel (0) target = $region37
    $region36: #{tpu_custom_call.1} parent=1 // pred_region
      %85 = dma.done [#allocation8], 4096
    $region37: #{tpu_custom_call.1} parent=1 // pred_fallthru
      _
    // Predicated region
    $region38: #{tpu_custom_call.1} parent=1 // pred_check
      _
    $region39: #{tpu_custom_call.1} parent=1 // pred_check_branch
      %87 = sbr.rel (0) target = $region41
    $region40: #{tpu_custom_call.1} parent=1 // pred_region
      %88 = dma.done [#allocation8], 4096
    $region41: #{tpu_custom_call.1} parent=1 // pred_fallthru
      _
    // Predicated region
    $region42: #{tpu_custom_call.1} parent=1 // pred_check
      _
    $region43: #{tpu_custom_call.1} parent=1 // pred_check_branch
      %90 = sbr.rel (0) target = $region45
    $region44: #{tpu_custom_call.1} parent=1 // pred_region
      %91 = dma.done [#allocation11], 4096
    $region45: #{tpu_custom_call.1} parent=1 // pred_fallthru
      _
    // Predicated region
    $region46: #{tpu_custom_call.1} parent=1 // pred_check
      _
    $region47: #{tpu_custom_call.1} parent=1 // pred_check_branch
      %93 = sbr.rel (0) target = $region49
    $region48: #{tpu_custom_call.1} parent=1 // pred_region
      %94 = dma.done [#allocation11], 1024
    $region49: #{tpu_custom_call.1} parent=1 // pred_fallthru
      _
    %v96 = vld [vmem:[#allocation4] sm:$0xff]
    %v97 = vld [vmem:[#allocation4 + $0x8] sm:$0xff]
    %v98 = vld [vmem:[#allocation4 + $0x10] sm:$0xff]
    %v99 = vld [vmem:[#allocation4 + $0x18] sm:$0xff]
    %v100 = vld [vmem:[#allocation7] sm:$0xff]
    %v101 = vld [vmem:[#allocation7 + $0x8] sm:$0xff]
    %v102 = vld [vmem:[#allocation7 + $0x10] sm:$0xff]
    %v103 = vld [vmem:[#allocation7 + $0x18] sm:$0xff]
    %v104 = vld [vmem:[#allocation7 + $0x20] sm:$0xff]
    %v105 = vld [vmem:[#allocation7 + $0x28] sm:$0xff]
    %v106 = vld [vmem:[#allocation7 + $0x30] sm:$0xff]
    %v107 = vld [vmem:[#allocation7 + $0x38] sm:$0xff]
    %v108 = vld [vmem:[#allocation7 + $0x40] sm:$0xff]
    %v109 = vld [vmem:[#allocation7 + $0x48] sm:$0xff]
    %v110 = vld [vmem:[#allocation7 + $0x50] sm:$0xff]
    %v111 = vld [vmem:[#allocation7 + $0x58] sm:$0xff]
    %v112 = vld [vmem:[#allocation7 + $0x60] sm:$0xff]
    %v113 = vld [vmem:[#allocation7 + $0x68] sm:$0xff]
    %v114 = vld [vmem:[#allocation7 + $0x70] sm:$0xff]
    %v115 = vld [vmem:[#allocation7 + $0x78] sm:$0xff]
    %v116 = vld [vmem:[#allocation7 + $0x80] sm:$0xff]
    %v117 = vld [vmem:[#allocation7 + $0x88] sm:$0xff]
    %v118 = vld [vmem:[#allocation7 + $0x90] sm:$0xff]
    %v119 = vld [vmem:[#allocation7 + $0x98] sm:$0xff]
    %v120 = vld [vmem:[#allocation7 + $0xa0] sm:$0xff]
    %v121 = vld [vmem:[#allocation7 + $0xa8] sm:$0xff]
    %v122 = vld [vmem:[#allocation7 + $0xb0] sm:$0xff]
    %v123 = vld [vmem:[#allocation7 + $0xb8] sm:$0xff]
    %v124 = vld [vmem:[#allocation7 + $0xc0] sm:$0xff]
    %v125 = vld [vmem:[#allocation7 + $0xc8] sm:$0xff]
    %v126 = vld [vmem:[#allocation7 + $0xd0] sm:$0xff]
    %v127 = vld [vmem:[#allocation7 + $0xd8] sm:$0xff]
    %v128 = vld [vmem:[#allocation7 + $0xe0] sm:$0xff]
    %v129 = vld [vmem:[#allocation7 + $0xe8] sm:$0xff]
    %v130 = vld [vmem:[#allocation7 + $0xf0] sm:$0xff]
    %v131 = vld [vmem:[#allocation7 + $0xf8] sm:$0xff]
    %v164 = vunpack.c.l.b16 %v100
    %v165 = vunpack.c.h.b16 %v100
    %v166 = vunpack.c.l.b16 %v101
    %v167 = vunpack.c.h.b16 %v101
    %v168 = vunpack.c.l.b16 %v102
    %v169 = vunpack.c.h.b16 %v102
    %v170 = vunpack.c.l.b16 %v103
    %v171 = vunpack.c.h.b16 %v103
    %v172 = vunpack.c.l.b16 %v104
    %v173 = vunpack.c.h.b16 %v104
    %v174 = vunpack.c.l.b16 %v105
    %v175 = vunpack.c.h.b16 %v105
    %v176 = vunpack.c.l.b16 %v106
    %v177 = vunpack.c.h.b16 %v106
    %v178 = vunpack.c.l.b16 %v107
    %v179 = vunpack.c.h.b16 %v107
    %v180 = vunpack.c.l.b16 %v108
    %v181 = vunpack.c.h.b16 %v108
    %v182 = vunpack.c.l.b16 %v109
    %v183 = vunpack.c.h.b16 %v109
    %v184 = vunpack.c.l.b16 %v110
    %v185 = vunpack.c.h.b16 %v110
    %v186 = vunpack.c.l.b16 %v111
    %v187 = vunpack.c.h.b16 %v111
    %v188 = vunpack.c.l.b16 %v112
    %v189 = vunpack.c.h.b16 %v112
    %v190 = vunpack.c.l.b16 %v113
    %v191 = vunpack.c.h.b16 %v113
    %v192 = vunpack.c.l.b16 %v114
    %v193 = vunpack.c.h.b16 %v114
    %v194 = vunpack.c.l.b16 %v115
    %v195 = vunpack.c.h.b16 %v115
    %v196 = vunpack.c.l.b16 %v116
    %v197 = vunpack.c.h.b16 %v116
    %v198 = vunpack.c.l.b16 %v117
    %v199 = vunpack.c.h.b16 %v117
    %v200 = vunpack.c.l.b16 %v118
    %v201 = vunpack.c.h.b16 %v118
    %v202 = vunpack.c.l.b16 %v119
    %v203 = vunpack.c.h.b16 %v119
    %v204 = vunpack.c.l.b16 %v120
    %v205 = vunpack.c.h.b16 %v120
    %v206 = vunpack.c.l.b16 %v121
    %v207 = vunpack.c.h.b16 %v121
    %v208 = vunpack.c.l.b16 %v122
    %v209 = vunpack.c.h.b16 %v122
    %v210 = vunpack.c.l.b16 %v123
    %v211 = vunpack.c.h.b16 %v123
    %v212 = vunpack.c.l.b16 %v124
    %v213 = vunpack.c.h.b16 %v124
    %v214 = vunpack.c.l.b16 %v125
    %v215 = vunpack.c.h.b16 %v125
    %v216 = vunpack.c.l.b16 %v126
    %v217 = vunpack.c.h.b16 %v126
    %v218 = vunpack.c.l.b16 %v127
    %v219 = vunpack.c.h.b16 %v127
    %v220 = vunpack.c.l.b16 %v128
    %v221 = vunpack.c.h.b16 %v128
    %v222 = vunpack.c.l.b16 %v129
    %v223 = vunpack.c.h.b16 %v129
    %v224 = vunpack.c.l.b16 %v130
    %v225 = vunpack.c.h.b16 %v130
    %v226 = vunpack.c.l.b16 %v131
    %v227 = vunpack.c.h.b16 %v131
    %v228 = vpack.c.b16 %v168, %v164
    %v229 = vpack.c.b16 %v169, %v165
    %v230 = vpack.c.b16 %v170, %v166
    %v231 = vpack.c.b16 %v171, %v167
    %v232 = vpack.c.b16 %v176, %v172
    %v233 = vpack.c.b16 %v177, %v173
    %v234 = vpack.c.b16 %v178, %v174
    %v235 = vpack.c.b16 %v179, %v175
    %v236 = vpack.c.b16 %v184, %v180
    %v237 = vpack.c.b16 %v185, %v181
    %v238 = vpack.c.b16 %v186, %v182
    %v239 = vpack.c.b16 %v187, %v183
    %v240 = vpack.c.b16 %v192, %v188
    %v241 = vpack.c.b16 %v193, %v189
    %v242 = vpack.c.b16 %v194, %v190
    %v243 = vpack.c.b16 %v195, %v191
    %v244 = vpack.c.b16 %v200, %v196
    %v245 = vpack.c.b16 %v201, %v197
    %v246 = vpack.c.b16 %v202, %v198
    %v247 = vpack.c.b16 %v203, %v199
    %v248 = vpack.c.b16 %v208, %v204
    %v249 = vpack.c.b16 %v209, %v205
    %v250 = vpack.c.b16 %v210, %v206
    %v251 = vpack.c.b16 %v211, %v207
    %v252 = vpack.c.b16 %v216, %v212
    %v253 = vpack.c.b16 %v217, %v213
    %v254 = vpack.c.b16 %v218, %v214
    %v255 = vpack.c.b16 %v219, %v215
    %v256 = vpack.c.b16 %v224, %v220
    %v257 = vpack.c.b16 %v225, %v221
    %v258 = vpack.c.b16 %v226, %v222
    %v259 = vpack.c.b16 %v227, %v223
    %292 = vmatprep.subr.bf16.mxu0 %v229
    %293 = vmatpush1.bf16.msra.mxu0 %v228
    %294 = vmatprep.subr.bf16.mxu0 %v233
    %295 = vmatpush1.bf16.msra.mxu0 %v232
    %296 = vmatprep.subr.bf16.mxu0 %v237
    %297 = vmatpush1.bf16.msra.mxu0 %v236
    %298 = vmatprep.subr.bf16.mxu0 %v241
    %299 = vmatpush1.bf16.msra.mxu0 %v240
    %300 = vmatprep.subr.bf16.mxu0 %v245
    %301 = vmatpush1.bf16.msra.mxu0 %v244
    %302 = vmatprep.subr.bf16.mxu0 %v249
    %303 = vmatpush1.bf16.msra.mxu0 %v248
    %304 = vmatprep.subr.bf16.mxu0 %v253
    %305 = vmatpush1.bf16.msra.mxu0 %v252
    %306 = vmatprep.subr.bf16.mxu0 %v257
    %307 = vmatpush1.bf16.msra.mxu0 %v256
    %308 = vmatprep.subr.bf16.mxu0 0
    %309 = vmatpush1.bf16.msra.mxu0 0
    %310 = vmatprep.subr.bf16.mxu0 0
    %311 = vmatpush1.bf16.msra.mxu0 0
    %312 = vmatprep.subr.bf16.mxu0 0
    %313 = vmatpush1.bf16.msra.mxu0 0
    %314 = vmatprep.subr.bf16.mxu0 0
    %315 = vmatpush1.bf16.msra.mxu0 0
    %316 = vmatprep.subr.bf16.mxu0 0
    %317 = vmatpush1.bf16.msra.mxu0 0
    %318 = vmatprep.subr.bf16.mxu0 0
    %319 = vmatpush1.bf16.msra.mxu0 0
    %320 = vmatprep.subr.bf16.mxu0 0
    %321 = vmatpush1.bf16.msra.mxu0 0
    %322 = vmatprep.subr.bf16.mxu0 0
    %323 = vmatpush1.bf16.msra.mxu0 0
    %324 = vmatprep.mubr.bf16.mxu0 0
    %325 = vmatmul.mubr.bf16.gmra.mrb[0].mxu0 0
    %v326 = vpop.f32.mrb[0].mxu0
    %v327 = vadd.f32 0.0, %v326
    %v328 = vpop.f32.mrb[0].mxu0
    %v329 = vadd.f32 0.0, %v328
    %v330 = vpop.f32.mrb[0].mxu0
    %v331 = vpop.f32.mrb[0].mxu0
    %332 = vdwg.mxu0
    %333 = vmatprep.subr.bf16.mxu0 %v231
    %334 = vmatpush1.bf16.msra.mxu0 %v230
    %335 = vmatprep.subr.bf16.mxu0 %v235
    %336 = vmatpush1.bf16.msra.mxu0 %v234
    %337 = vmatprep.subr.bf16.mxu0 %v239
    %338 = vmatpush1.bf16.msra.mxu0 %v238
    %339 = vmatprep.subr.bf16.mxu0 %v243
    %340 = vmatpush1.bf16.msra.mxu0 %v242
    %341 = vmatprep.subr.bf16.mxu0 %v247
    %342 = vmatpush1.bf16.msra.mxu0 %v246
    %343 = vmatprep.subr.bf16.mxu0 %v251
    %344 = vmatpush1.bf16.msra.mxu0 %v250
    %345 = vmatprep.subr.bf16.mxu0 %v255
    %346 = vmatpush1.bf16.msra.mxu0 %v254
    %347 = vmatprep.subr.bf16.mxu0 %v259
    %348 = vmatpush1.bf16.msra.mxu0 %v258
    %349 = vmatprep.subr.bf16.mxu0 0
    %350 = vmatpush1.bf16.msra.mxu0 0
    %351 = vmatprep.subr.bf16.mxu0 0
    %352 = vmatpush1.bf16.msra.mxu0 0
    %353 = vmatprep.subr.bf16.mxu0 0
    %354 = vmatpush1.bf16.msra.mxu0 0
    %355 = vmatprep.subr.bf16.mxu0 0
    %356 = vmatpush1.bf16.msra.mxu0 0
    %357 = vmatprep.subr.bf16.mxu0 0
    %358 = vmatpush1.bf16.msra.mxu0 0
    %359 = vmatprep.subr.bf16.mxu0 0
    %360 = vmatpush1.bf16.msra.mxu0 0
    %361 = vmatprep.subr.bf16.mxu0 0
    %362 = vmatpush1.bf16.msra.mxu0 0
    %363 = vmatprep.subr.bf16.mxu0 0
    %364 = vmatpush1.bf16.msra.mxu0 0
    %365 = vmatprep.mubr.bf16.mxu0 0
    %366 = vmatmul.mubr.bf16.gmra.mrb[0].mxu0 0
    %v367 = vpop.f32.mrb[0].mxu0
    %v368 = vadd.f32 0.0, %v367
    %v369 = vpop.f32.mrb[0].mxu0
    %v370 = vadd.f32 0.0, %v369
    %v371 = vpop.f32.mrb[0].mxu0
    %v372 = vpop.f32.mrb[0].mxu0
    %373 = vdwg.mxu0
    %v374 = vadd.f32 %v96, %v327
    %v375 = vadd.f32 %v97, %v329
    %v376 = vadd.f32 %v98, %v368
    %v377 = vadd.f32 %v99, %v370
    %v378 = vxor.u32 %v374, 2147483648
    %v379 = vxor.u32 %v375, 2147483648
    %v380 = vmul.f32 %v378, 1.442695
    %v381 = vpow.pop %v380
    %v382 = vmul.f32 %v379, 1.442695
    %v383 = vpow.pop %v382
    %v384 = vadd.f32 %v381, 1.0
    %v385 = vadd.f32 %v383, 1.0
    %v386 = vrcp.pop %v384
    %v387 = vmul.f32 1.0, %v386
    %v388 = vrcp.pop %v385
    %v389 = vmul.f32 1.0, %v388
    %v390 = vtanh.pop %v376
    %v391 = vxor.u32 %v377, 2147483648
    %v392 = vmul.f32 %v391, 1.442695
    %v393 = vpow.pop %v392
    %v394 = vadd.f32 %v393, 1.0
    %v395 = vrcp.pop %v394
    %v396 = vmul.f32 1.0, %v395
    %v397 = vmul.f32 %v389, 0.0
    %v398 = vmul.f32 %v387, %v390
    %v399 = vadd.f32 %v397, %v398
    %v400 = vtanh.pop %v399
    %v401 = vmul.f32 %v396, %v400
    %v402 = vpack.c.bf16 %v401, %v401
    %403 = vst [vmem:[#allocation2] sm:$0xf] %v402
    %s404 = scalar_lea.vmem [#allocation4], 32
    %v405 = vld [vmem:[%s404] sm:$0xff]
    %v406 = vld [vmem:[%s404 + $0x8] sm:$0xff]
    %v407 = vld [vmem:[%s404 + $0x10] sm:$0xff]
    %v408 = vld [vmem:[%s404 + $0x18] sm:$0xff]
    %v409 = vld [vmem:[#allocation7] sm:$0xff]
    %v410 = vld [vmem:[#allocation7 + $0x8] sm:$0xff]
    %v411 = vld [vmem:[#allocation7 + $0x10] sm:$0xff]
    %v412 = vld [vmem:[#allocation7 + $0x18] sm:$0xff]
    %v413 = vld [vmem:[#allocation7 + $0x20] sm:$0xff]
    %v414 = vld [vmem:[#allocation7 + $0x28] sm:$0xff]
    %v415 = vld [vmem:[#allocation7 + $0x30] sm:$0xff]
    %v416 = vld [vmem:[#allocation7 + $0x38] sm:$0xff]
    %v417 = vld [vmem:[#allocation7 + $0x40] sm:$0xff]
    %v418 = vld [vmem:[#allocation7 + $0x48] sm:$0xff]
    %v419 = vld [vmem:[#allocation7 + $0x50] sm:$0xff]
    %v420 = vld [vmem:[#allocation7 + $0x58] sm:$0xff]
    %v421 = vld [vmem:[#allocation7 + $0x60] sm:$0xff]
    %v422 = vld [vmem:[#allocation7 + $0x68] sm:$0xff]
    %v423 = vld [vmem:[#allocation7 + $0x70] sm:$0xff]
    %v424 = vld [vmem:[#allocation7 + $0x78] sm:$0xff]
    %v425 = vld [vmem:[#allocation7 + $0x80] sm:$0xff]
    %v426 = vld [vmem:[#allocation7 + $0x88] sm:$0xff]
    %v427 = vld [vmem:[#allocation7 + $0x90] sm:$0xff]
    %v428 = vld [vmem:[#allocation7 + $0x98] sm:$0xff]
    %v429 = vld [vmem:[#allocation7 + $0xa0] sm:$0xff]
    %v430 = vld [vmem:[#allocation7 + $0xa8] sm:$0xff]
    %v431 = vld [vmem:[#allocation7 + $0xb0] sm:$0xff]
    %v432 = vld [vmem:[#allocation7 + $0xb8] sm:$0xff]
    %v433 = vld [vmem:[#allocation7 + $0xc0] sm:$0xff]
    %v434 = vld [vmem:[#allocation7 + $0xc8] sm:$0xff]
    %v435 = vld [vmem:[#allocation7 + $0xd0] sm:$0xff]
    %v436 = vld [vmem:[#allocation7 + $0xd8] sm:$0xff]
    %v437 = vld [vmem:[#allocation7 + $0xe0] sm:$0xff]
    %v438 = vld [vmem:[#allocation7 + $0xe8] sm:$0xff]
    %v439 = vld [vmem:[#allocation7 + $0xf0] sm:$0xff]
    %v440 = vld [vmem:[#allocation7 + $0xf8] sm:$0xff]
    %v473 = vunpack.c.l.b16 %v409
    %v474 = vunpack.c.h.b16 %v409
    %v475 = vunpack.c.l.b16 %v410
    %v476 = vunpack.c.h.b16 %v410
    %v477 = vunpack.c.l.b16 %v411
    %v478 = vunpack.c.h.b16 %v411
    %v479 = vunpack.c.l.b16 %v412
    %v480 = vunpack.c.h.b16 %v412
    %v481 = vunpack.c.l.b16 %v413
    %v482 = vunpack.c.h.b16 %v413
    %v483 = vunpack.c.l.b16 %v414
    %v484 = vunpack.c.h.b16 %v414
    %v485 = vunpack.c.l.b16 %v415
    %v486 = vunpack.c.h.b16 %v415
    %v487 = vunpack.c.l.b16 %v416
    %v488 = vunpack.c.h.b16 %v416
    %v489 = vunpack.c.l.b16 %v417
    %v490 = vunpack.c.h.b16 %v417
    %v491 = vunpack.c.l.b16 %v418
    %v492 = vunpack.c.h.b16 %v418
    %v493 = vunpack.c.l.b16 %v419
    %v494 = vunpack.c.h.b16 %v419
    %v495 = vunpack.c.l.b16 %v420
    %v496 = vunpack.c.h.b16 %v420
    %v497 = vunpack.c.l.b16 %v421
    %v498 = vunpack.c.h.b16 %v421
    %v499 = vunpack.c.l.b16 %v422
    %v500 = vunpack.c.h.b16 %v422
    %v501 = vunpack.c.l.b16 %v423
    %v502 = vunpack.c.h.b16 %v423
    %v503 = vunpack.c.l.b16 %v424
    %v504 = vunpack.c.h.b16 %v424
    %v505 = vunpack.c.l.b16 %v425
    %v506 = vunpack.c.h.b16 %v425
    %v507 = vunpack.c.l.b16 %v426
    %v508 = vunpack.c.h.b16 %v426
    %v509 = vunpack.c.l.b16 %v427
    %v510 = vunpack.c.h.b16 %v427
    %v511 = vunpack.c.l.b16 %v428
    %v512 = vunpack.c.h.b16 %v428
    %v513 = vunpack.c.l.b16 %v429
    %v514 = vunpack.c.h.b16 %v429
    %v515 = vunpack.c.l.b16 %v430
    %v516 = vunpack.c.h.b16 %v430
    %v517 = vunpack.c.l.b16 %v431
    %v518 = vunpack.c.h.b16 %v431
    %v519 = vunpack.c.l.b16 %v432
    %v520 = vunpack.c.h.b16 %v432
    %v521 = vunpack.c.l.b16 %v433
    %v522 = vunpack.c.h.b16 %v433
    %v523 = vunpack.c.l.b16 %v434
    %v524 = vunpack.c.h.b16 %v434
    %v525 = vunpack.c.l.b16 %v435
    %v526 = vunpack.c.h.b16 %v435
    %v527 = vunpack.c.l.b16 %v436
    %v528 = vunpack.c.h.b16 %v436
    %v529 = vunpack.c.l.b16 %v437
    %v530 = vunpack.c.h.b16 %v437
    %v531 = vunpack.c.l.b16 %v438
    %v532 = vunpack.c.h.b16 %v438
    %v533 = vunpack.c.l.b16 %v439
    %v534 = vunpack.c.h.b16 %v439
    %v535 = vunpack.c.l.b16 %v440
    %v536 = vunpack.c.h.b16 %v440
    %v537 = vpack.c.b16 %v477, %v473
    %v538 = vpack.c.b16 %v478, %v474
    %v539 = vpack.c.b16 %v479, %v475
    %v540 = vpack.c.b16 %v480, %v476
    %v541 = vpack.c.b16 %v485, %v481
    %v542 = vpack.c.b16 %v486, %v482
    %v543 = vpack.c.b16 %v487, %v483
    %v544 = vpack.c.b16 %v488, %v484
    %v545 = vpack.c.b16 %v493, %v489
    %v546 = vpack.c.b16 %v494, %v490
    %v547 = vpack.c.b16 %v495, %v491
    %v548 = vpack.c.b16 %v496, %v492
    %v549 = vpack.c.b16 %v501, %v497
    %v550 = vpack.c.b16 %v502, %v498
    %v551 = vpack.c.b16 %v503, %v499
    %v552 = vpack.c.b16 %v504, %v500
    %v553 = vpack.c.b16 %v509, %v505
    %v554 = vpack.c.b16 %v510, %v506
    %v555 = vpack.c.b16 %v511, %v507
    %v556 = vpack.c.b16 %v512, %v508
    %v557 = vpack.c.b16 %v517, %v513
    %v558 = vpack.c.b16 %v518, %v514
    %v559 = vpack.c.b16 %v519, %v515
    %v560 = vpack.c.b16 %v520, %v516
    %v561 = vpack.c.b16 %v525, %v521
    %v562 = vpack.c.b16 %v526, %v522
    %v563 = vpack.c.b16 %v527, %v523
    %v564 = vpack.c.b16 %v528, %v524
    %v565 = vpack.c.b16 %v533, %v529
    %v566 = vpack.c.b16 %v534, %v530
    %v567 = vpack.c.b16 %v535, %v531
    %v568 = vpack.c.b16 %v536, %v532
    %601 = vmatprep.subr.bf16.mxu0 %v538
    %602 = vmatpush1.bf16.msra.mxu0 %v537
    %603 = vmatprep.subr.bf16.mxu0 %v542
    %604 = vmatpush1.bf16.msra.mxu0 %v541
    %605 = vmatprep.subr.bf16.mxu0 %v546
    %606 = vmatpush1.bf16.msra.mxu0 %v545
    %607 = vmatprep.subr.bf16.mxu0 %v550
    %608 = vmatpush1.bf16.msra.mxu0 %v549
    %609 = vmatprep.subr.bf16.mxu0 %v554
    %610 = vmatpush1.bf16.msra.mxu0 %v553
    %611 = vmatprep.subr.bf16.mxu0 %v558
    %612 = vmatpush1.bf16.msra.mxu0 %v557
    %613 = vmatprep.subr.bf16.mxu0 %v562
    %614 = vmatpush1.bf16.msra.mxu0 %v561
    %615 = vmatprep.subr.bf16.mxu0 %v566
    %616 = vmatpush1.bf16.msra.mxu0 %v565
    %617 = vmatprep.subr.bf16.mxu0 0
    %618 = vmatpush1.bf16.msra.mxu0 0
    %619 = vmatprep.subr.bf16.mxu0 0
    %620 = vmatpush1.bf16.msra.mxu0 0
    %621 = vmatprep.subr.bf16.mxu0 0
    %622 = vmatpush1.bf16.msra.mxu0 0
    %623 = vmatprep.subr.bf16.mxu0 0
    %624 = vmatpush1.bf16.msra.mxu0 0
    %625 = vmatprep.subr.bf16.mxu0 0
    %626 = vmatpush1.bf16.msra.mxu0 0
    %627 = vmatprep.subr.bf16.mxu0 0
    %628 = vmatpush1.bf16.msra.mxu0 0
    %629 = vmatprep.subr.bf16.mxu0 0
    %630 = vmatpush1.bf16.msra.mxu0 0
    %631 = vmatprep.subr.bf16.mxu0 0
    %632 = vmatpush1.bf16.msra.mxu0 0
    %633 = vmatprep.mubr.bf16.mxu0 0
    %634 = vmatmul.mubr.bf16.gmra.mrb[0].mxu0 %v402
    %v635 = vpop.f32.mrb[0].mxu0
    %v636 = vadd.f32 0.0, %v635
    %v637 = vpop.f32.mrb[0].mxu0
    %v638 = vadd.f32 0.0, %v637
    %v639 = vpop.f32.mrb[0].mxu0
    %v640 = vpop.f32.mrb[0].mxu0
    %641 = vdwg.mxu0
    %642 = vmatprep.subr.bf16.mxu0 %v540
    %643 = vmatpush1.bf16.msra.mxu0 %v539
    %644 = vmatprep.subr.bf16.mxu0 %v544
    %645 = vmatpush1.bf16.msra.mxu0 %v543
    %646 = vmatprep.subr.bf16.mxu0 %v548
    %647 = vmatpush1.bf16.msra.mxu0 %v547
    %648 = vmatprep.subr.bf16.mxu0 %v552
    %649 = vmatpush1.bf16.msra.mxu0 %v551
    %650 = vmatprep.subr.bf16.mxu0 %v556
    %651 = vmatpush1.bf16.msra.mxu0 %v555
    %652 = vmatprep.subr.bf16.mxu0 %v560
    %653 = vmatpush1.bf16.msra.mxu0 %v559
    %654 = vmatprep.subr.bf16.mxu0 %v564
    %655 = vmatpush1.bf16.msra.mxu0 %v563
    %656 = vmatprep.subr.bf16.mxu0 %v568
    %657 = vmatpush1.bf16.msra.mxu0 %v567
    %658 = vmatprep.subr.bf16.mxu0 0
    %659 = vmatpush1.bf16.msra.mxu0 0
    %660 = vmatprep.subr.bf16.mxu0 0
    %661 = vmatpush1.bf16.msra.mxu0 0
    %662 = vmatprep.subr.bf16.mxu0 0
    %663 = vmatpush1.bf16.msra.mxu0 0
    %664 = vmatprep.subr.bf16.mxu0 0
    %665 = vmatpush1.bf16.msra.mxu0 0
    %666 = vmatprep.subr.bf16.mxu0 0
    %667 = vmatpush1.bf16.msra.mxu0 0
    %668 = vmatprep.subr.bf16.mxu0 0
    %669 = vmatpush1.bf16.msra.mxu0 0
    %670 = vmatprep.subr.bf16.mxu0 0
    %671 = vmatpush1.bf16.msra.mxu0 0
    %672 = vmatprep.subr.bf16.mxu0 0
    %673 = vmatpush1.bf16.msra.mxu0 0
    %674 = vmatprep.mubr.bf16.mxu0 0
    %675 = vmatmul.mubr.bf16.gmra.mrb[0].mxu0 %v402
    %v676 = vpop.f32.mrb[0].mxu0
    %v677 = vadd.f32 0.0, %v676
    %v678 = vpop.f32.mrb[0].mxu0
    %v679 = vadd.f32 0.0, %v678
    %v680 = vpop.f32.mrb[0].mxu0
    %v681 = vpop.f32.mrb[0].mxu0
    %682 = vdwg.mxu0
    %v683 = vadd.f32 %v405, %v636
    %v684 = vadd.f32 %v406, %v638
    %v685 = vadd.f32 %v407, %v677
    %v686 = vadd.f32 %v408, %v679
    %v687 = vxor.u32 %v683, 2147483648
    %v688 = vxor.u32 %v684, 2147483648
    %v689 = vmul.f32 %v687, 1.442695
    %v690 = vpow.pop %v689
    %v691 = vmul.f32 %v688, 1.442695
    %v692 = vpow.pop %v691
    %v693 = vadd.f32 %v690, 1.0
    %v694 = vadd.f32 %v692, 1.0
    %v695 = vrcp.pop %v693
    %v696 = vmul.f32 1.0, %v695
    %v697 = vrcp.pop %v694
    %v698 = vmul.f32 1.0, %v697
    %v699 = vtanh.pop %v685
    %v700 = vxor.u32 %v686, 2147483648
    %v701 = vmul.f32 %v700, 1.442695
    %v702 = vpow.pop %v701
    %v703 = vadd.f32 %v702, 1.0
    %v704 = vrcp.pop %v703
    %v705 = vmul.f32 1.0, %v704
    %v706 = vmul.f32 %v698, %v399
    %v707 = vmul.f32 %v696, %v699
    %v708 = vadd.f32 %v706, %v707
    %v709 = vtanh.pop %v708
    %v710 = vmul.f32 %v705, %v709
    %v711 = vpack.c.bf16 %v710, %v710
    %v713 = vrot.slane %v711, 4
    %715 = vst [vmem:[#allocation2] sm:$0xf0] %v713
    %s716 = scalar_lea.vmem [#allocation4], 64
    %v717 = vld [vmem:[%s716] sm:$0xff]
    %v718 = vld [vmem:[%s716 + $0x8] sm:$0xff]
    %v719 = vld [vmem:[%s716 + $0x10] sm:$0xff]
    %v720 = vld [vmem:[%s716 + $0x18] sm:$0xff]
    %v721 = vld [vmem:[#allocation7] sm:$0xff]
    %v722 = vld [vmem:[#allocation7 + $0x8] sm:$0xff]
    %v723 = vld [vmem:[#allocation7 + $0x10] sm:$0xff]
    %v724 = vld [vmem:[#allocation7 + $0x18] sm:$0xff]
    %v725 = vld [vmem:[#allocation7 + $0x20] sm:$0xff]
    %v726 = vld [vmem:[#allocation7 + $0x28] sm:$0xff]
    %v727 = vld [vmem:[#allocation7 + $0x30] sm:$0xff]
    %v728 = vld [vmem:[#allocation7 + $0x38] sm:$0xff]
    %v729 = vld [vmem:[#allocation7 + $0x40] sm:$0xff]
    %v730 = vld [vmem:[#allocation7 + $0x48] sm:$0xff]
    %v731 = vld [vmem:[#allocation7 + $0x50] sm:$0xff]
    %v732 = vld [vmem:[#allocation7 + $0x58] sm:$0xff]
    %v733 = vld [vmem:[#allocation7 + $0x60] sm:$0xff]
    %v734 = vld [vmem:[#allocation7 + $0x68] sm:$0xff]
    %v735 = vld [vmem:[#allocation7 + $0x70] sm:$0xff]
    %v736 = vld [vmem:[#allocation7 + $0x78] sm:$0xff]
    %v737 = vld [vmem:[#allocation7 + $0x80] sm:$0xff]
    %v738 = vld [vmem:[#allocation7 + $0x88] sm:$0xff]
    %v739 = vld [vmem:[#allocation7 + $0x90] sm:$0xff]
    %v740 = vld [vmem:[#allocation7 + $0x98] sm:$0xff]
    %v741 = vld [vmem:[#allocation7 + $0xa0] sm:$0xff]
    %v742 = vld [vmem:[#allocation7 + $0xa8] sm:$0xff]
    %v743 = vld [vmem:[#allocation7 + $0xb0] sm:$0xff]
    %v744 = vld [vmem:[#allocation7 + $0xb8] sm:$0xff]
    %v745 = vld [vmem:[#allocation7 + $0xc0] sm:$0xff]
    %v746 = vld [vmem:[#allocation7 + $0xc8] sm:$0xff]
    %v747 = vld [vmem:[#allocation7 + $0xd0] sm:$0xff]
    %v748 = vld [vmem:[#allocation7 + $0xd8] sm:$0xff]
    %v749 = vld [vmem:[#allocation7 + $0xe0] sm:$0xff]
    %v750 = vld [vmem:[#allocation7 + $0xe8] sm:$0xff]
    %v751 = vld [vmem:[#allocation7 + $0xf0] sm:$0xff]
    %v752 = vld [vmem:[#allocation7 + $0xf8] sm:$0xff]
    %v785 = vunpack.c.l.b16 %v721
    %v786 = vunpack.c.h.b16 %v721
    %v787 = vunpack.c.l.b16 %v722
    %v788 = vunpack.c.h.b16 %v722
    %v789 = vunpack.c.l.b16 %v723
    %v790 = vunpack.c.h.b16 %v723
    %v791 = vunpack.c.l.b16 %v724
    %v792 = vunpack.c.h.b16 %v724
    %v793 = vunpack.c.l.b16 %v725
    %v794 = vunpack.c.h.b16 %v725
    %v795 = vunpack.c.l.b16 %v726
    %v796 = vunpack.c.h.b16 %v726
    %v797 = vunpack.c.l.b16 %v727
    %v798 = vunpack.c.h.b16 %v727
    %v799 = vunpack.c.l.b16 %v728
    %v800 = vunpack.c.h.b16 %v728
    %v801 = vunpack.c.l.b16 %v729
    %v802 = vunpack.c.h.b16 %v729
    %v803 = vunpack.c.l.b16 %v730
    %v804 = vunpack.c.h.b16 %v730
    %v805 = vunpack.c.l.b16 %v731
    %v806 = vunpack.c.h.b16 %v731
    %v807 = vunpack.c.l.b16 %v732
    %v808 = vunpack.c.h.b16 %v732
    %v809 = vunpack.c.l.b16 %v733
    %v810 = vunpack.c.h.b16 %v733
    %v811 = vunpack.c.l.b16 %v734
    %v812 = vunpack.c.h.b16 %v734
    %v813 = vunpack.c.l.b16 %v735
    %v814 = vunpack.c.h.b16 %v735
    %v815 = vunpack.c.l.b16 %v736
    %v816 = vunpack.c.h.b16 %v736
    %v817 = vunpack.c.l.b16 %v737
    %v818 = vunpack.c.h.b16 %v737
    %v819 = vunpack.c.l.b16 %v738
    %v820 = vunpack.c.h.b16 %v738
    %v821 = vunpack.c.l.b16 %v739
    %v822 = vunpack.c.h.b16 %v739
    %v823 = vunpack.c.l.b16 %v740
    %v824 = vunpack.c.h.b16 %v740
    %v825 = vunpack.c.l.b16 %v741
    %v826 = vunpack.c.h.b16 %v741
    %v827 = vunpack.c.l.b16 %v742
    %v828 = vunpack.c.h.b16 %v742
    %v829 = vunpack.c.l.b16 %v743
    %v830 = vunpack.c.h.b16 %v743
    %v831 = vunpack.c.l.b16 %v744
    %v832 = vunpack.c.h.b16 %v744
    %v833 = vunpack.c.l.b16 %v745
    %v834 = vunpack.c.h.b16 %v745
    %v835 = vunpack.c.l.b16 %v746
    %v836 = vunpack.c.h.b16 %v746
    %v837 = vunpack.c.l.b16 %v747
    %v838 = vunpack.c.h.b16 %v747
    %v839 = vunpack.c.l.b16 %v748
    %v840 = vunpack.c.h.b16 %v748
    %v841 = vunpack.c.l.b16 %v749
    %v842 = vunpack.c.h.b16 %v749
    %v843 = vunpack.c.l.b16 %v750
    %v844 = vunpack.c.h.b16 %v750
    %v845 = vunpack.c.l.b16 %v751
    %v846 = vunpack.c.h.b16 %v751
    %v847 = vunpack.c.l.b16 %v752
    %v848 = vunpack.c.h.b16 %v752
    %v849 = vpack.c.b16 %v789, %v785
    %v850 = vpack.c.b16 %v790, %v786
    %v851 = vpack.c.b16 %v791, %v787
    %v852 = vpack.c.b16 %v792, %v788
    %v853 = vpack.c.b16 %v797, %v793
    %v854 = vpack.c.b16 %v798, %v794
    %v855 = vpack.c.b16 %v799, %v795
    %v856 = vpack.c.b16 %v800, %v796
    %v857 = vpack.c.b16 %v805, %v801
    %v858 = vpack.c.b16 %v806, %v802
    %v859 = vpack.c.b16 %v807, %v803
    %v860 = vpack.c.b16 %v808, %v804
    %v861 = vpack.c.b16 %v813, %v809
    %v862 = vpack.c.b16 %v814, %v810
    %v863 = vpack.c.b16 %v815, %v811
    %v864 = vpack.c.b16 %v816, %v812
    %v865 = vpack.c.b16 %v821, %v817
    %v866 = vpack.c.b16 %v822, %v818
    %v867 = vpack.c.b16 %v823, %v819
    %v868 = vpack.c.b16 %v824, %v820
    %v869 = vpack.c.b16 %v829, %v825
    %v870 = vpack.c.b16 %v830, %v826
    %v871 = vpack.c.b16 %v831, %v827
    %v872 = vpack.c.b16 %v832, %v828
    %v873 = vpack.c.b16 %v837, %v833
    %v874 = vpack.c.b16 %v838, %v834
    %v875 = vpack.c.b16 %v839, %v835
    %v876 = vpack.c.b16 %v840, %v836
    %v877 = vpack.c.b16 %v845, %v841
    %v878 = vpack.c.b16 %v846, %v842
    %v879 = vpack.c.b16 %v847, %v843
    %v880 = vpack.c.b16 %v848, %v844
    %913 = vmatprep.subr.bf16.mxu0 %v850
    %914 = vmatpush1.bf16.msra.mxu0 %v849
    %915 = vmatprep.subr.bf16.mxu0 %v854
    %916 = vmatpush1.bf16.msra.mxu0 %v853
    %917 = vmatprep.subr.bf16.mxu0 %v858
    %918 = vmatpush1.bf16.msra.mxu0 %v857
    %919 = vmatprep.subr.bf16.mxu0 %v862
    %920 = vmatpush1.bf16.msra.mxu0 %v861
    %921 = vmatprep.subr.bf16.mxu0 %v866
    %922 = vmatpush1.bf16.msra.mxu0 %v865
    %923 = vmatprep.subr.bf16.mxu0 %v870
    %924 = vmatpush1.bf16.msra.mxu0 %v869
    %925 = vmatprep.subr.bf16.mxu0 %v874
    %926 = vmatpush1.bf16.msra.mxu0 %v873
    %927 = vmatprep.subr.bf16.mxu0 %v878
    %928 = vmatpush1.bf16.msra.mxu0 %v877
    %929 = vmatprep.subr.bf16.mxu0 0
    %930 = vmatpush1.bf16.msra.mxu0 0
    %931 = vmatprep.subr.bf16.mxu0 0
    %932 = vmatpush1.bf16.msra.mxu0 0
    %933 = vmatprep.subr.bf16.mxu0 0
    %934 = vmatpush1.bf16.msra.mxu0 0
    %935 = vmatprep.subr.bf16.mxu0 0
    %936 = vmatpush1.bf16.msra.mxu0 0
    %937 = vmatprep.subr.bf16.mxu0 0
    %938 = vmatpush1.bf16.msra.mxu0 0
    %939 = vmatprep.subr.bf16.mxu0 0
    %940 = vmatpush1.bf16.msra.mxu0 0
    %941 = vmatprep.subr.bf16.mxu0 0
    %942 = vmatpush1.bf16.msra.mxu0 0
    %943 = vmatprep.subr.bf16.mxu0 0
    %944 = vmatpush1.bf16.msra.mxu0 0
    %945 = vmatprep.mubr.bf16.mxu0 0
    %946 = vmatmul.mubr.bf16.gmra.mrb[0].mxu0 %v711
    %v947 = vpop.f32.mrb[0].mxu0
    %v948 = vadd.f32 0.0, %v947
    %v949 = vpop.f32.mrb[0].mxu0
    %v950 = vadd.f32 0.0, %v949
    %v951 = vpop.f32.mrb[0].mxu0
    %v952 = vpop.f32.mrb[0].mxu0
    %953 = vdwg.mxu0
    %954 = vmatprep.subr.bf16.mxu0 %v852
    %955 = vmatpush1.bf16.msra.mxu0 %v851
    %956 = vmatprep.subr.bf16.mxu0 %v856
    %957 = vmatpush1.bf16.msra.mxu0 %v855
    %958 = vmatprep.subr.bf16.mxu0 %v860
    %959 = vmatpush1.bf16.msra.mxu0 %v859
    %960 = vmatprep.subr.bf16.mxu0 %v864
    %961 = vmatpush1.bf16.msra.mxu0 %v863
    %962 = vmatprep.subr.bf16.mxu0 %v868
    %963 = vmatpush1.bf16.msra.mxu0 %v867
    %964 = vmatprep.subr.bf16.mxu0 %v872
    %965 = vmatpush1.bf16.msra.mxu0 %v871
    %966 = vmatprep.subr.bf16.mxu0 %v876
    %967 = vmatpush1.bf16.msra.mxu0 %v875
    %968 = vmatprep.subr.bf16.mxu0 %v880
    %969 = vmatpush1.bf16.msra.mxu0 %v879
    %970 = vmatprep.subr.bf16.mxu0 0
    %971 = vmatpush1.bf16.msra.mxu0 0
    %972 = vmatprep.subr.bf16.mxu0 0
    %973 = vmatpush1.bf16.msra.mxu0 0
    %974 = vmatprep.subr.bf16.mxu0 0
    %975 = vmatpush1.bf16.msra.mxu0 0
    %976 = vmatprep.subr.bf16.mxu0 0
    %977 = vmatpush1.bf16.msra.mxu0 0
    %978 = vmatprep.subr.bf16.mxu0 0
    %979 = vmatpush1.bf16.msra.mxu0 0
    %980 = vmatprep.subr.bf16.mxu0 0
    %981 = vmatpush1.bf16.msra.mxu0 0
    %982 = vmatprep.subr.bf16.mxu0 0
    %983 = vmatpush1.bf16.msra.mxu0 0
    %984 = vmatprep.subr.bf16.mxu0 0
    %985 = vmatpush1.bf16.msra.mxu0 0
    %986 = vmatprep.mubr.bf16.mxu0 0
    %987 = vmatmul.mubr.bf16.gmra.mrb[0].mxu0 %v711
    %v988 = vpop.f32.mrb[0].mxu0
    %v989 = vadd.f32 0.0, %v988
    %v990 = vpop.f32.mrb[0].mxu0
    %v991 = vadd.f32 0.0, %v990
    %v992 = vpop.f32.mrb[0].mxu0
    %v993 = vpop.f32.mrb[0].mxu0
    %994 = vdwg.mxu0
    %v995 = vadd.f32 %v717, %v948
    %v996 = vadd.f32 %v718, %v950
    %v997 = vadd.f32 %v719, %v989
    %v998 = vadd.f32 %v720, %v991
    %v999 = vxor.u32 %v995, 2147483648
    %v1000 = vxor.u32 %v996, 2147483648
    %v1001 = vmul.f32 %v999, 1.442695
    %v1002 = vpow.pop %v1001
    %v1003 = vmul.f32 %v1000, 1.442695
    %v1004 = vpow.pop %v1003
    %v1005 = vadd.f32 %v1002, 1.0
    %v1006 = vadd.f32 %v1004, 1.0
    %v1007 = vrcp.pop %v1005
    %v1008 = vmul.f32 1.0, %v1007
    %v1009 = vrcp.pop %v1006
    %v1010 = vmul.f32 1.0, %v1009
    %v1011 = vtanh.pop %v997
    %v1012 = vxor.u32 %v998, 2147483648
    %v1013 = vmul.f32 %v1012, 1.442695
    %v1014 = vpow.pop %v1013
    %v1015 = vadd.f32 %v1014, 1.0
    %v1016 = vrcp.pop %v1015
    %v1017 = vmul.f32 1.0, %v1016
    %v1018 = vmul.f32 %v1010, %v708
    %v1019 = vmul.f32 %v1008, %v1011
    %v1020 = vadd.f32 %v1018, %v1019
    %v1021 = vtanh.pop %v1020
    %v1022 = vmul.f32 %v1017, %v1021
    %v1023 = vpack.c.bf16 %v1022, %v1022
    %1024 = vst [vmem:[#allocation2 + $0x8] sm:$0xf] %v1023
    %s1025 = scalar_lea.vmem [#allocation4], 96
    %v1026 = vld [vmem:[%s1025] sm:$0xff]
    %v1027 = vld [vmem:[%s1025 + $0x8] sm:$0xff]
    %v1028 = vld [vmem:[%s1025 + $0x10] sm:$0xff]
    %v1029 = vld [vmem:[%s1025 + $0x18] sm:$0xff]
    %v1030 = vld [vmem:[#allocation7] sm:$0xff]
    %v1031 = vld [vmem:[#allocation7 + $0x8] sm:$0xff]
    %v1032 = vld [vmem:[#allocation7 + $0x10] sm:$0xff]
    %v1033 = vld [vmem:[#allocation7 + $0x18] sm:$0xff]
    %v1034 = vld [vmem:[#allocation7 + $0x20] sm:$0xff]
    %v1035 = vld [vmem:[#allocation7 + $0x28] sm:$0xff]
    %v1036 = vld [vmem:[#allocation7 + $0x30] sm:$0xff]
    %v1037 = vld [vmem:[#allocation7 + $0x38] sm:$0xff]
    %v1038 = vld [vmem:[#allocation7 + $0x40] sm:$0xff]
    %v1039 = vld [vmem:[#allocation7 + $0x48] sm:$0xff]
    %v1040 = vld [vmem:[#allocation7 + $0x50] sm:$0xff]
    %v1041 = vld [vmem:[#allocation7 + $0x58] sm:$0xff]
    %v1042 = vld [vmem:[#allocation7 + $0x60] sm:$0xff]
    %v1043 = vld [vmem:[#allocation7 + $0x68] sm:$0xff]
    %v1044 = vld [vmem:[#allocation7 + $0x70] sm:$0xff]
    %v1045 = vld [vmem:[#allocation7 + $0x78] sm:$0xff]
    %v1046 = vld [vmem:[#allocation7 + $0x80] sm:$0xff]
    %v1047 = vld [vmem:[#allocation7 + $0x88] sm:$0xff]
    %v1048 = vld [vmem:[#allocation7 + $0x90] sm:$0xff]
    %v1049 = vld [vmem:[#allocation7 + $0x98] sm:$0xff]
    %v1050 = vld [vmem:[#allocation7 + $0xa0] sm:$0xff]
    %v1051 = vld [vmem:[#allocation7 + $0xa8] sm:$0xff]
    %v1052 = vld [vmem:[#allocation7 + $0xb0] sm:$0xff]
    %v1053 = vld [vmem:[#allocation7 + $0xb8] sm:$0xff]
    %v1054 = vld [vmem:[#allocation7 + $0xc0] sm:$0xff]
    %v1055 = vld [vmem:[#allocation7 + $0xc8] sm:$0xff]
    %v1056 = vld [vmem:[#allocation7 + $0xd0] sm:$0xff]
    %v1057 = vld [vmem:[#allocation7 + $0xd8] sm:$0xff]
    %v1058 = vld [vmem:[#allocation7 + $0xe0] sm:$0xff]
    %v1059 = vld [vmem:[#allocation7 + $0xe8] sm:$0xff]
    %v1060 = vld [vmem:[#allocation7 + $0xf0] sm:$0xff]
    %v1061 = vld [vmem:[#allocation7 + $0xf8] sm:$0xff]
    %v1094 = vunpack.c.l.b16 %v1030
    %v1095 = vunpack.c.h.b16 %v1030
    %v1096 = vunpack.c.l.b16 %v1031
    %v1097 = vunpack.c.h.b16 %v1031
    %v1098 = vunpack.c.l.b16 %v1032
    %v1099 = vunpack.c.h.b16 %v1032
    %v1100 = vunpack.c.l.b16 %v1033
    %v1101 = vunpack.c.h.b16 %v1033
    %v1102 = vunpack.c.l.b16 %v1034
    %v1103 = vunpack.c.h.b16 %v1034
    %v1104 = vunpack.c.l.b16 %v1035
    %v1105 = vunpack.c.h.b16 %v1035
    %v1106 = vunpack.c.l.b16 %v1036
    %v1107 = vunpack.c.h.b16 %v1036
    %v1108 = vunpack.c.l.b16 %v1037
    %v1109 = vunpack.c.h.b16 %v1037
    %v1110 = vunpack.c.l.b16 %v1038
    %v1111 = vunpack.c.h.b16 %v1038
    %v1112 = vunpack.c.l.b16 %v1039
    %v1113 = vunpack.c.h.b16 %v1039
    %v1114 = vunpack.c.l.b16 %v1040
    %v1115 = vunpack.c.h.b16 %v1040
    %v1116 = vunpack.c.l.b16 %v1041
    %v1117 = vunpack.c.h.b16 %v1041
    %v1118 = vunpack.c.l.b16 %v1042
    %v1119 = vunpack.c.h.b16 %v1042
    %v1120 = vunpack.c.l.b16 %v1043
    %v1121 = vunpack.c.h.b16 %v1043
    %v1122 = vunpack.c.l.b16 %v1044
    %v1123 = vunpack.c.h.b16 %v1044
    %v1124 = vunpack.c.l.b16 %v1045
    %v1125 = vunpack.c.h.b16 %v1045
    %v1126 = vunpack.c.l.b16 %v1046
    %v1127 = vunpack.c.h.b16 %v1046
    %v1128 = vunpack.c.l.b16 %v1047
    %v1129 = vunpack.c.h.b16 %v1047
    %v1130 = vunpack.c.l.b16 %v1048
    %v1131 = vunpack.c.h.b16 %v1048
    %v1132 = vunpack.c.l.b16 %v1049
    %v1133 = vunpack.c.h.b16 %v1049
    %v1134 = vunpack.c.l.b16 %v1050
    %v1135 = vunpack.c.h.b16 %v1050
    %v1136 = vunpack.c.l.b16 %v1051
    %v1137 = vunpack.c.h.b16 %v1051
    %v1138 = vunpack.c.l.b16 %v1052
    %v1139 = vunpack.c.h.b16 %v1052
    %v1140 = vunpack.c.l.b16 %v1053
    %v1141 = vunpack.c.h.b16 %v1053
    %v1142 = vunpack.c.l.b16 %v1054
    %v1143 = vunpack.c.h.b16 %v1054
    %v1144 = vunpack.c.l.b16 %v1055
    %v1145 = vunpack.c.h.b16 %v1055
    %v1146 = vunpack.c.l.b16 %v1056
    %v1147 = vunpack.c.h.b16 %v1056
    %v1148 = vunpack.c.l.b16 %v1057
    %v1149 = vunpack.c.h.b16 %v1057
    %v1150 = vunpack.c.l.b16 %v1058
    %v1151 = vunpack.c.h.b16 %v1058
    %v1152 = vunpack.c.l.b16 %v1059
    %v1153 = vunpack.c.h.b16 %v1059
    %v1154 = vunpack.c.l.b16 %v1060
    %v1155 = vunpack.c.h.b16 %v1060
    %v1156 = vunpack.c.l.b16 %v1061
    %v1157 = vunpack.c.h.b16 %v1061
    %v1158 = vpack.c.b16 %v1098, %v1094
    %v1159 = vpack.c.b16 %v1099, %v1095
    %v1160 = vpack.c.b16 %v1100, %v1096
    %v1161 = vpack.c.b16 %v1101, %v1097
    %v1162 = vpack.c.b16 %v1106, %v1102
    %v1163 = vpack.c.b16 %v1107, %v1103
    %v1164 = vpack.c.b16 %v1108, %v1104
    %v1165 = vpack.c.b16 %v1109, %v1105
    %v1166 = vpack.c.b16 %v1114, %v1110
    %v1167 = vpack.c.b16 %v1115, %v1111
    %v1168 = vpack.c.b16 %v1116, %v1112
    %v1169 = vpack.c.b16 %v1117, %v1113
    %v1170 = vpack.c.b16 %v1122, %v1118
    %v1171 = vpack.c.b16 %v1123, %v1119
    %v1172 = vpack.c.b16 %v1124, %v1120
    %v1173 = vpack.c.b16 %v1125, %v1121
    %v1174 = vpack.c.b16 %v1130, %v1126
    %v1175 = vpack.c.b16 %v1131, %v1127
    %v1176 = vpack.c.b16 %v1132, %v1128
    %v1177 = vpack.c.b16 %v1133, %v1129
    %v1178 = vpack.c.b16 %v1138, %v1134
    %v1179 = vpack.c.b16 %v1139, %v1135
    %v1180 = vpack.c.b16 %v1140, %v1136
    %v1181 = vpack.c.b16 %v1141, %v1137
    %v1182 = vpack.c.b16 %v1146, %v1142
    %v1183 = vpack.c.b16 %v1147, %v1143
    %v1184 = vpack.c.b16 %v1148, %v1144
    %v1185 = vpack.c.b16 %v1149, %v1145
    %v1186 = vpack.c.b16 %v1154, %v1150
    %v1187 = vpack.c.b16 %v1155, %v1151
    %v1188 = vpack.c.b16 %v1156, %v1152
    %v1189 = vpack.c.b16 %v1157, %v1153
    %1222 = vmatprep.subr.bf16.mxu0 %v1159
    %1223 = vmatpush1.bf16.msra.mxu0 %v1158
    %1224 = vmatprep.subr.bf16.mxu0 %v1163
    %1225 = vmatpush1.bf16.msra.mxu0 %v1162
    %1226 = vmatprep.subr.bf16.mxu0 %v1167
    %1227 = vmatpush1.bf16.msra.mxu0 %v1166
    %1228 = vmatprep.subr.bf16.mxu0 %v1171
    %1229 = vmatpush1.bf16.msra.mxu0 %v1170
    %1230 = vmatprep.subr.bf16.mxu0 %v1175
    %1231 = vmatpush1.bf16.msra.mxu0 %v1174
    %1232 = vmatprep.subr.bf16.mxu0 %v1179
    %1233 = vmatpush1.bf16.msra.mxu0 %v1178
    %1234 = vmatprep.subr.bf16.mxu0 %v1183
    %1235 = vmatpush1.bf16.msra.mxu0 %v1182
    %1236 = vmatprep.subr.bf16.mxu0 %v1187
    %1237 = vmatpush1.bf16.msra.mxu0 %v1186
    %1238 = vmatprep.subr.bf16.mxu0 0
    %1239 = vmatpush1.bf16.msra.mxu0 0
    %1240 = vmatprep.subr.bf16.mxu0 0
    %1241 = vmatpush1.bf16.msra.mxu0 0
    %1242 = vmatprep.subr.bf16.mxu0 0
    %1243 = vmatpush1.bf16.msra.mxu0 0
    %1244 = vmatprep.subr.bf16.mxu0 0
    %1245 = vmatpush1.bf16.msra.mxu0 0
    %1246 = vmatprep.subr.bf16.mxu0 0
    %1247 = vmatpush1.bf16.msra.mxu0 0
    %1248 = vmatprep.subr.bf16.mxu0 0
    %1249 = vmatpush1.bf16.msra.mxu0 0
    %1250 = vmatprep.subr.bf16.mxu0 0
    %1251 = vmatpush1.bf16.msra.mxu0 0
    %1252 = vmatprep.subr.bf16.mxu0 0
    %1253 = vmatpush1.bf16.msra.mxu0 0
    %1254 = vmatprep.mubr.bf16.mxu0 0
    %1255 = vmatmul.mubr.bf16.gmra.mrb[0].mxu0 %v1023
    %v1256 = vpop.f32.mrb[0].mxu0
    %v1257 = vadd.f32 0.0, %v1256
    %v1258 = vpop.f32.mrb[0].mxu0
    %v1259 = vadd.f32 0.0, %v1258
    %v1260 = vpop.f32.mrb[0].mxu0
    %v1261 = vpop.f32.mrb[0].mxu0
    %1262 = vdwg.mxu0
    %1263 = vmatprep.subr.bf16.mxu0 %v1161
    %1264 = vmatpush1.bf16.msra.mxu0 %v1160
    %1265 = vmatprep.subr.bf16.mxu0 %v1165
    %1266 = vmatpush1.bf16.msra.mxu0 %v1164
    %1267 = vmatprep.subr.bf16.mxu0 %v1169
    %1268 = vmatpush1.bf16.msra.mxu0 %v1168
    %1269 = vmatprep.subr.bf16.mxu0 %v1173
    %1270 = vmatpush1.bf16.msra.mxu0 %v1172
    %1271 = vmatprep.subr.bf16.mxu0 %v1177
    %1272 = vmatpush1.bf16.msra.mxu0 %v1176
    %1273 = vmatprep.subr.bf16.mxu0 %v1181
    %1274 = vmatpush1.bf16.msra.mxu0 %v1180
    %1275 = vmatprep.subr.bf16.mxu0 %v1185
    %1276 = vmatpush1.bf16.msra.mxu0 %v1184
    %1277 = vmatprep.subr.bf16.mxu0 %v1189
    %1278 = vmatpush1.bf16.msra.mxu0 %v1188
    %1279 = vmatprep.subr.bf16.mxu0 0
    %1280 = vmatpush1.bf16.msra.mxu0 0
    %1281 = vmatprep.subr.bf16.mxu0 0
    %1282 = vmatpush1.bf16.msra.mxu0 0
    %1283 = vmatprep.subr.bf16.mxu0 0
    %1284 = vmatpush1.bf16.msra.mxu0 0
    %1285 = vmatprep.subr.bf16.mxu0 0
    %1286 = vmatpush1.bf16.msra.mxu0 0
    %1287 = vmatprep.subr.bf16.mxu0 0
    %1288 = vmatpush1.bf16.msra.mxu0 0
    %1289 = vmatprep.subr.bf16.mxu0 0
    %1290 = vmatpush1.bf16.msra.mxu0 0
    %1291 = vmatprep.subr.bf16.mxu0 0
    %1292 = vmatpush1.bf16.msra.mxu0 0
    %1293 = vmatprep.subr.bf16.mxu0 0
    %1294 = vmatpush1.bf16.msra.mxu0 0
    %1295 = vmatprep.mubr.bf16.mxu0 0
    %1296 = vmatmul.mubr.bf16.gmra.mrb[0].mxu0 %v1023
    %v1297 = vpop.f32.mrb[0].mxu0
    %v1298 = vadd.f32 0.0, %v1297
    %v1299 = vpop.f32.mrb[0].mxu0
    %v1300 = vadd.f32 0.0, %v1299
    %v1301 = vpop.f32.mrb[0].mxu0
    %v1302 = vpop.f32.mrb[0].mxu0
    %1303 = vdwg.mxu0
    %v1304 = vadd.f32 %v1026, %v1257
    %v1305 = vadd.f32 %v1027, %v1259
    %v1306 = vadd.f32 %v1028, %v1298
    %v1307 = vadd.f32 %v1029, %v1300
    %v1308 = vxor.u32 %v1304, 2147483648
    %v1309 = vxor.u32 %v1305, 2147483648
    %v1310 = vmul.f32 %v1308, 1.442695
    %v1311 = vpow.pop %v1310
    %v1312 = vmul.f32 %v1309, 1.442695
    %v1313 = vpow.pop %v1312
    %v1314 = vadd.f32 %v1311, 1.0
    %v1315 = vadd.f32 %v1313, 1.0
    %v1316 = vrcp.pop %v1314
    %v1317 = vmul.f32 1.0, %v1316
    %v1318 = vrcp.pop %v1315
    %v1319 = vmul.f32 1.0, %v1318
    %v1320 = vtanh.pop %v1306
    %v1321 = vxor.u32 %v1307, 2147483648
    %v1322 = vmul.f32 %v1321, 1.442695
    %v1323 = vpow.pop %v1322
    %v1324 = vadd.f32 %v1323, 1.0
    %v1325 = vrcp.pop %v1324
    %v1326 = vmul.f32 1.0, %v1325
    %v1327 = vmul.f32 %v1319, %v1020
    %v1328 = vmul.f32 %v1317, %v1320
    %v1329 = vadd.f32 %v1327, %v1328
    %v1330 = vtanh.pop %v1329
    %v1331 = vmul.f32 %v1326, %v1330
    %v1332 = vpack.c.bf16 %v1331, %v1331
    %v1334 = vrot.slane %v1332, 4
    %1336 = vst [vmem:[#allocation2 + $0x8] sm:$0xf0] %v1334
    %s1337 = scalar_lea.vmem [#allocation4], 128
    %v1338 = vld [vmem:[%s1337] sm:$0xff]
    %v1339 = vld [vmem:[%s1337 + $0x8] sm:$0xff]
    %v1340 = vld [vmem:[%s1337 + $0x10] sm:$0xff]
    %v1341 = vld [vmem:[%s1337 + $0x18] sm:$0xff]
    %v1342 = vld [vmem:[#allocation7] sm:$0xff]
    %v1343 = vld [vmem:[#allocation7 + $0x8] sm:$0xff]
    %v1344 = vld [vmem:[#allocation7 + $0x10] sm:$0xff]
    %v1345 = vld [vmem:[#allocation7 + $0x18] sm:$0xff]
    %v1346 = vld [vmem:[#allocation7 + $0x20] sm:$0xff]
    %v1347 = vld [vmem:[#allocation7 + $0x28] sm:$0xff]
    %v1348 = vld [vmem:[#allocation7 + $0x30] sm:$0xff]
    %v1349 = vld [vmem:[#allocation7 + $0x38] sm:$0xff]
    %v1350 = vld [vmem:[#allocation7 + $0x40] sm:$0xff]
    %v1351 = vld [vmem:[#allocation7 + $0x48] sm:$0xff]
    %v1352 = vld [vmem:[#allocation7 + $0x50] sm:$0xff]
    %v1353 = vld [vmem:[#allocation7 + $0x58] sm:$0xff]
    %v1354 = vld [vmem:[#allocation7 + $0x60] sm:$0xff]
    %v1355 = vld [vmem:[#allocation7 + $0x68] sm:$0xff]
    %v1356 = vld [vmem:[#allocation7 + $0x70] sm:$0xff]
    %v1357 = vld [vmem:[#allocation7 + $0x78] sm:$0xff]
    %v1358 = vld [vmem:[#allocation7 + $0x80] sm:$0xff]
    %v1359 = vld [vmem:[#allocation7 + $0x88] sm:$0xff]
    %v1360 = vld [vmem:[#allocation7 + $0x90] sm:$0xff]
    %v1361 = vld [vmem:[#allocation7 + $0x98] sm:$0xff]
    %v1362 = vld [vmem:[#allocation7 + $0xa0] sm:$0xff]
    %v1363 = vld [vmem:[#allocation7 + $0xa8] sm:$0xff]
    %v1364 = vld [vmem:[#allocation7 + $0xb0] sm:$0xff]
    %v1365 = vld [vmem:[#allocation7 + $0xb8] sm:$0xff]
    %v1366 = vld [vmem:[#allocation7 + $0xc0] sm:$0xff]
    %v1367 = vld [vmem:[#allocation7 + $0xc8] sm:$0xff]
    %v1368 = vld [vmem:[#allocation7 + $0xd0] sm:$0xff]
    %v1369 = vld [vmem:[#allocation7 + $0xd8] sm:$0xff]
    %v1370 = vld [vmem:[#allocation7 + $0xe0] sm:$0xff]
    %v1371 = vld [vmem:[#allocation7 + $0xe8] sm:$0xff]
    %v1372 = vld [vmem:[#allocation7 + $0xf0] sm:$0xff]
    %v1373 = vld [vmem:[#allocation7 + $0xf8] sm:$0xff]
    %v1406 = vunpack.c.l.b16 %v1342
    %v1407 = vunpack.c.h.b16 %v1342
    %v1408 = vunpack.c.l.b16 %v1343
    %v1409 = vunpack.c.h.b16 %v1343
    %v1410 = vunpack.c.l.b16 %v1344
    %v1411 = vunpack.c.h.b16 %v1344
    %v1412 = vunpack.c.l.b16 %v1345
    %v1413 = vunpack.c.h.b16 %v1345
    %v1414 = vunpack.c.l.b16 %v1346
    %v1415 = vunpack.c.h.b16 %v1346
    %v1416 = vunpack.c.l.b16 %v1347
    %v1417 = vunpack.c.h.b16 %v1347
    %v1418 = vunpack.c.l.b16 %v1348
    %v1419 = vunpack.c.h.b16 %v1348
    %v1420 = vunpack.c.l.b16 %v1349
    %v1421 = vunpack.c.h.b16 %v1349
    %v1422 = vunpack.c.l.b16 %v1350
    %v1423 = vunpack.c.h.b16 %v1350
    %v1424 = vunpack.c.l.b16 %v1351
    %v1425 = vunpack.c.h.b16 %v1351
    %v1426 = vunpack.c.l.b16 %v1352
    %v1427 = vunpack.c.h.b16 %v1352
    %v1428 = vunpack.c.l.b16 %v1353
    %v1429 = vunpack.c.h.b16 %v1353
    %v1430 = vunpack.c.l.b16 %v1354
    %v1431 = vunpack.c.h.b16 %v1354
    %v1432 = vunpack.c.l.b16 %v1355
    %v1433 = vunpack.c.h.b16 %v1355
    %v1434 = vunpack.c.l.b16 %v1356
    %v1435 = vunpack.c.h.b16 %v1356
    %v1436 = vunpack.c.l.b16 %v1357
    %v1437 = vunpack.c.h.b16 %v1357
    %v1438 = vunpack.c.l.b16 %v1358
    %v1439 = vunpack.c.h.b16 %v1358
    %v1440 = vunpack.c.l.b16 %v1359
    %v1441 = vunpack.c.h.b16 %v1359
    %v1442 = vunpack.c.l.b16 %v1360
    %v1443 = vunpack.c.h.b16 %v1360
    %v1444 = vunpack.c.l.b16 %v1361
    %v1445 = vunpack.c.h.b16 %v1361
    %v1446 = vunpack.c.l.b16 %v1362
    %v1447 = vunpack.c.h.b16 %v1362
    %v1448 = vunpack.c.l.b16 %v1363
    %v1449 = vunpack.c.h.b16 %v1363
    %v1450 = vunpack.c.l.b16 %v1364
    %v1451 = vunpack.c.h.b16 %v1364
    %v1452 = vunpack.c.l.b16 %v1365
    %v1453 = vunpack.c.h.b16 %v1365
    %v1454 = vunpack.c.l.b16 %v1366
    %v1455 = vunpack.c.h.b16 %v1366
    %v1456 = vunpack.c.l.b16 %v1367
    %v1457 = vunpack.c.h.b16 %v1367
    %v1458 = vunpack.c.l.b16 %v1368
    %v1459 = vunpack.c.h.b16 %v1368
    %v1460 = vunpack.c.l.b16 %v1369
    %v1461 = vunpack.c.h.b16 %v1369
    %v1462 = vunpack.c.l.b16 %v1370
    %v1463 = vunpack.c.h.b16 %v1370
    %v1464 = vunpack.c.l.b16 %v1371
    %v1465 = vunpack.c.h.b16 %v1371
    %v1466 = vunpack.c.l.b16 %v1372
    %v1467 = vunpack.c.h.b16 %v1372
    %v1468 = vunpack.c.l.b16 %v1373
    %v1469 = vunpack.c.h.b16 %v1373
    %v1470 = vpack.c.b16 %v1410, %v1406
    %v1471 = vpack.c.b16 %v1411, %v1407
    %v1472 = vpack.c.b16 %v1412, %v1408
    %v1473 = vpack.c.b16 %v1413, %v1409
    %v1474 = vpack.c.b16 %v1418, %v1414
    %v1475 = vpack.c.b16 %v1419, %v1415
    %v1476 = vpack.c.b16 %v1420, %v1416
    %v1477 = vpack.c.b16 %v1421, %v1417
    %v1478 = vpack.c.b16 %v1426, %v1422
    %v1479 = vpack.c.b16 %v1427, %v1423
    %v1480 = vpack.c.b16 %v1428, %v1424
    %v1481 = vpack.c.b16 %v1429, %v1425
    %v1482 = vpack.c.b16 %v1434, %v1430
    %v1483 = vpack.c.b16 %v1435, %v1431
    %v1484 = vpack.c.b16 %v1436, %v1432
    %v1485 = vpack.c.b16 %v1437, %v1433
    %v1486 = vpack.c.b16 %v1442, %v1438
    %v1487 = vpack.c.b16 %v1443, %v1439
    %v1488 = vpack.c.b16 %v1444, %v1440
    %v1489 = vpack.c.b16 %v1445, %v1441
    %v1490 = vpack.c.b16 %v1450, %v1446
    %v1491 = vpack.c.b16 %v1451, %v1447
    %v1492 = vpack.c.b16 %v1452, %v1448
    %v1493 = vpack.c.b16 %v1453, %v1449
    %v1494 = vpack.c.b16 %v1458, %v1454
    %v1495 = vpack.c.b16 %v1459, %v1455
    %v1496 = vpack.c.b16 %v1460, %v1456
    %v1497 = vpack.c.b16 %v1461, %v1457
    %v1498 = vpack.c.b16 %v1466, %v1462
    %v1499 = vpack.c.b16 %v1467, %v1463
    %v1500 = vpack.c.b16 %v1468, %v1464
    %v1501 = vpack.c.b16 %v1469, %v1465
    %1534 = vmatprep.subr.bf16.mxu0 %v1471
    %1535 = vmatpush1.bf16.msra.mxu0 %v1470
    %1536 = vmatprep.subr.bf16.mxu0 %v1475
    %1537 = vmatpush1.bf16.msra.mxu0 %v1474
    %1538 = vmatprep.subr.bf16.mxu0 %v1479
    %1539 = vmatpush1.bf16.msra.mxu0 %v1478
    %1540 = vmatprep.subr.bf16.mxu0 %v1483
    %1541 = vmatpush1.bf16.msra.mxu0 %v1482
    %1542 = vmatprep.subr.bf16.mxu0 %v1487
    %1543 = vmatpush1.bf16.msra.mxu0 %v1486
    %1544 = vmatprep.subr.bf16.mxu0 %v1491
    %1545 = vmatpush1.bf16.msra.mxu0 %v1490
    %1546 = vmatprep.subr.bf16.mxu0 %v1495
    %1547 = vmatpush1.bf16.msra.mxu0 %v1494
    %1548 = vmatprep.subr.bf16.mxu0 %v1499
    %1549 = vmatpush1.bf16.msra.mxu0 %v1498
    %1550 = vmatprep.subr.bf16.mxu0 0
    %1551 = vmatpush1.bf16.msra.mxu0 0
    %1552 = vmatprep.subr.bf16.mxu0 0
    %1553 = vmatpush1.bf16.msra.mxu0 0
    %1554 = vmatprep.subr.bf16.mxu0 0
    %1555 = vmatpush1.bf16.msra.mxu0 0
    %1556 = vmatprep.subr.bf16.mxu0 0
    %1557 = vmatpush1.bf16.msra.mxu0 0
    %1558 = vmatprep.subr.bf16.mxu0 0
    %1559 = vmatpush1.bf16.msra.mxu0 0
    %1560 = vmatprep.subr.bf16.mxu0 0
    %1561 = vmatpush1.bf16.msra.mxu0 0
    %1562 = vmatprep.subr.bf16.mxu0 0
    %1563 = vmatpush1.bf16.msra.mxu0 0
    %1564 = vmatprep.subr.bf16.mxu0 0
    %1565 = vmatpush1.bf16.msra.mxu0 0
    %1566 = vmatprep.mubr.bf16.mxu0 0
    %1567 = vmatmul.mubr.bf16.gmra.mrb[0].mxu0 %v1332
    %v1568 = vpop.f32.mrb[0].mxu0
    %v1569 = vadd.f32 0.0, %v1568
    %v1570 = vpop.f32.mrb[0].mxu0
    %v1571 = vadd.f32 0.0, %v1570
    %v1572 = vpop.f32.mrb[0].mxu0
    %v1573 = vpop.f32.mrb[0].mxu0
    %1574 = vdwg.mxu0
    %1575 = vmatprep.subr.bf16.mxu0 %v1473
    %1576 = vmatpush1.bf16.msra.mxu0 %v1472
    %1577 = vmatprep.subr.bf16.mxu0 %v1477
    %1578 = vmatpush1.bf16.msra.mxu0 %v1476
    %1579 = vmatprep.subr.bf16.mxu0 %v1481
    %1580 = vmatpush1.bf16.msra.mxu0 %v1480
    %1581 = vmatprep.subr.bf16.mxu0 %v1485
    %1582 = vmatpush1.bf16.msra.mxu0 %v1484
    %1583 = vmatprep.subr.bf16.mxu0 %v1489
    %1584 = vmatpush1.bf16.msra.mxu0 %v1488
    %1585 = vmatprep.subr.bf16.mxu0 %v1493
    %1586 = vmatpush1.bf16.msra.mxu0 %v1492
    %1587 = vmatprep.subr.bf16.mxu0 %v1497
    %1588 = vmatpush1.bf16.msra.mxu0 %v1496
    %1589 = vmatprep.subr.bf16.mxu0 %v1501
    %1590 = vmatpush1.bf16.msra.mxu0 %v1500
    %1591 = vmatprep.subr.bf16.mxu0 0
    %1592 = vmatpush1.bf16.msra.mxu0 0
    %1593 = vmatprep.subr.bf16.mxu0 0
    %1594 = vmatpush1.bf16.msra.mxu0 0
    %1595 = vmatprep.subr.bf16.mxu0 0
    %1596 = vmatpush1.bf16.msra.mxu0 0
    %1597 = vmatprep.subr.bf16.mxu0 0
    %1598 = vmatpush1.bf16.msra.mxu0 0
    %1599 = vmatprep.subr.bf16.mxu0 0
    %1600 = vmatpush1.bf16.msra.mxu0 0
    %1601 = vmatprep.subr.bf16.mxu0 0
    %1602 = vmatpush1.bf16.msra.mxu0 0
    %1603 = vmatprep.subr.bf16.mxu0 0
    %1604 = vmatpush1.bf16.msra.mxu0 0
    %1605 = vmatprep.subr.bf16.mxu0 0
    %1606 = vmatpush1.bf16.msra.mxu0 0
    %1607 = vmatprep.mubr.bf16.mxu0 0
    %1608 = vmatmul.mubr.bf16.gmra.mrb[0].mxu0 %v1332
    %v1609 = vpop.f32.mrb[0].mxu0
    %v1610 = vadd.f32 0.0, %v1609
    %v1611 = vpop.f32.mrb[0].mxu0
    %v1612 = vadd.f32 0.0, %v1611
    %v1613 = vpop.f32.mrb[0].mxu0
    %v1614 = vpop.f32.mrb[0].mxu0
    %1615 = vdwg.mxu0
    %v1616 = vadd.f32 %v1338, %v1569
    %v1617 = vadd.f32 %v1339, %v1571
    %v1618 = vadd.f32 %v1340, %v1610
    %v1619 = vadd.f32 %v1341, %v1612
    %v1620 = vxor.u32 %v1616, 2147483648
    %v1621 = vxor.u32 %v1617, 2147483648
    %v1622 = vmul.f32 %v1620, 1.442695
    %v1623 = vpow.pop %v1622
    %v1624 = vmul.f32 %v1621, 1.442695
    %v1625 = vpow.pop %v1624
    %v1626 = vadd.f32 %v1623, 1.0
    %v1627 = vadd.f32 %v1625, 1.0
    %v1628 = vrcp.pop %v1626
    %v1629 = vmul.f32 1.0, %v1628
    %v1630 = vrcp.pop %v1627
    %v1631 = vmul.f32 1.0, %v1630
    %v1632 = vtanh.pop %v1618
    %v1633 = vxor.u32 %v1619, 2147483648
    %v1634 = vmul.f32 %v1633, 1.442695
    %v1635 = vpow.pop %v1634
    %v1636 = vadd.f32 %v1635, 1.0
    %v1637 = vrcp.pop %v1636
    %v1638 = vmul.f32 1.0, %v1637
    %v1639 = vmul.f32 %v1631, %v1329
    %v1640 = vmul.f32 %v1629, %v1632
    %v1641 = vadd.f32 %v1639, %v1640
    %v1642 = vtanh.pop %v1641
    %v1643 = vmul.f32 %v1638, %v1642
    %v1644 = vpack.c.bf16 %v1643, %v1643
    %1645 = vst [vmem:[#allocation2 + $0x10] sm:$0xf] %v1644
    %s1646 = scalar_lea.vmem [#allocation4], 160
    %v1647 = vld [vmem:[%s1646] sm:$0xff]
    %v1648 = vld [vmem:[%s1646 + $0x8] sm:$0xff]
    %v1649 = vld [vmem:[%s1646 + $0x10] sm:$0xff]
    %v1650 = vld [vmem:[%s1646 + $0x18] sm:$0xff]
    %v1651 = vld [vmem:[#allocation7] sm:$0xff]
    %v1652 = vld [vmem:[#allocation7 + $0x8] sm:$0xff]
    %v1653 = vld [vmem:[#allocation7 + $0x10] sm:$0xff]
    %v1654 = vld [vmem:[#allocation7 + $0x18] sm:$0xff]
    %v1655 = vld [vmem:[#allocation7 + $0x20] sm:$0xff]
    %v1656 = vld [vmem:[#allocation7 + $0x28] sm:$0xff]
    %v1657 = vld [vmem:[#allocation7 + $0x30] sm:$0xff]
    %v1658 = vld [vmem:[#allocation7 + $0x38] sm:$0xff]
    %v1659 = vld [vmem:[#allocation7 + $0x40] sm:$0xff]
    %v1660 = vld [vmem:[#allocation7 + $0x48] sm:$0xff]
    %v1661 = vld [vmem:[#allocation7 + $0x50] sm:$0xff]
    %v1662 = vld [vmem:[#allocation7 + $0x58] sm:$0xff]
    %v1663 = vld [vmem:[#allocation7 + $0x60] sm:$0xff]
    %v1664 = vld [vmem:[#allocation7 + $0x68] sm:$0xff]
    %v1665 = vld [vmem:[#allocation7 + $0x70] sm:$0xff]
    %v1666 = vld [vmem:[#allocation7 + $0x78] sm:$0xff]
    %v1667 = vld [vmem:[#allocation7 + $0x80] sm:$0xff]
    %v1668 = vld [vmem:[#allocation7 + $0x88] sm:$0xff]
    %v1669 = vld [vmem:[#allocation7 + $0x90] sm:$0xff]
    %v1670 = vld [vmem:[#allocation7 + $0x98] sm:$0xff]
    %v1671 = vld [vmem:[#allocation7 + $0xa0] sm:$0xff]
    %v1672 = vld [vmem:[#allocation7 + $0xa8] sm:$0xff]
    %v1673 = vld [vmem:[#allocation7 + $0xb0] sm:$0xff]
    %v1674 = vld [vmem:[#allocation7 + $0xb8] sm:$0xff]
    %v1675 = vld [vmem:[#allocation7 + $0xc0] sm:$0xff]
    %v1676 = vld [vmem:[#allocation7 + $0xc8] sm:$0xff]
    %v1677 = vld [vmem:[#allocation7 + $0xd0] sm:$0xff]
    %v1678 = vld [vmem:[#allocation7 + $0xd8] sm:$0xff]
    %v1679 = vld [vmem:[#allocation7 + $0xe0] sm:$0xff]
    %v1680 = vld [vmem:[#allocation7 + $0xe8] sm:$0xff]
    %v1681 = vld [vmem:[#allocation7 + $0xf0] sm:$0xff]
    %v1682 = vld [vmem:[#allocation7 + $0xf8] sm:$0xff]
    %v1715 = vunpack.c.l.b16 %v1651
    %v1716 = vunpack.c.h.b16 %v1651
    %v1717 = vunpack.c.l.b16 %v1652
    %v1718 = vunpack.c.h.b16 %v1652
    %v1719 = vunpack.c.l.b16 %v1653
    %v1720 = vunpack.c.h.b16 %v1653
    %v1721 = vunpack.c.l.b16 %v1654
    %v1722 = vunpack.c.h.b16 %v1654
    %v1723 = vunpack.c.l.b16 %v1655
    %v1724 = vunpack.c.h.b16 %v1655
    %v1725 = vunpack.c.l.b16 %v1656
    %v1726 = vunpack.c.h.b16 %v1656
    %v1727 = vunpack.c.l.b16 %v1657
    %v1728 = vunpack.c.h.b16 %v1657
    %v1729 = vunpack.c.l.b16 %v1658
    %v1730 = vunpack.c.h.b16 %v1658
    %v1731 = vunpack.c.l.b16 %v1659
    %v1732 = vunpack.c.h.b16 %v1659
    %v1733 = vunpack.c.l.b16 %v1660
    %v1734 = vunpack.c.h.b16 %v1660
    %v1735 = vunpack.c.l.b16 %v1661
    %v1736 = vunpack.c.h.b16 %v1661
    %v1737 = vunpack.c.l.b16 %v1662
    %v1738 = vunpack.c.h.b16 %v1662
    %v1739 = vunpack.c.l.b16 %v1663
    %v1740 = vunpack.c.h.b16 %v1663
    %v1741 = vunpack.c.l.b16 %v1664
    %v1742 = vunpack.c.h.b16 %v1664
    %v1743 = vunpack.c.l.b16 %v1665
    %v1744 = vunpack.c.h.b16 %v1665
    %v1745 = vunpack.c.l.b16 %v1666
    %v1746 = vunpack.c.h.b16 %v1666
    %v1747 = vunpack.c.l.b16 %v1667
    %v1748 = vunpack.c.h.b16 %v1667
    %v1749 = vunpack.c.l.b16 %v1668
    %v1750 = vunpack.c.h.b16 %v1668
    %v1751 = vunpack.c.l.b16 %v1669
    %v1752 = vunpack.c.h.b16 %v1669
    %v1753 = vunpack.c.l.b16 %v1670
    %v1754 = vunpack.c.h.b16 %v1670
    %v1755 = vunpack.c.l.b16 %v1671
    %v1756 = vunpack.c.h.b16 %v1671
    %v1757 = vunpack.c.l.b16 %v1672
    %v1758 = vunpack.c.h.b16 %v1672
    %v1759 = vunpack.c.l.b16 %v1673
    %v1760 = vunpack.c.h.b16 %v1673
    %v1761 = vunpack.c.l.b16 %v1674
    %v1762 = vunpack.c.h.b16 %v1674
    %v1763 = vunpack.c.l.b16 %v1675
    %v1764 = vunpack.c.h.b16 %v1675
    %v1765 = vunpack.c.l.b16 %v1676
    %v1766 = vunpack.c.h.b16 %v1676
    %v1767 = vunpack.c.l.b16 %v1677
    %v1768 = vunpack.c.h.b16 %v1677
    %v1769 = vunpack.c.l.b16 %v1678
    %v1770 = vunpack.c.h.b16 %v1678
    %v1771 = vunpack.c.l.b16 %v1679
    %v1772 = vunpack.c.h.b16 %v1679
    %v1773 = vunpack.c.l.b16 %v1680
    %v1774 = vunpack.c.h.b16 %v1680
    %v1775 = vunpack.c.l.b16 %v1681
    %v1776 = vunpack.c.h.b16 %v1681
    %v1777 = vunpack.c.l.b16 %v1682
    %v1778 = vunpack.c.h.b16 %v1682
    %v1779 = vpack.c.b16 %v1719, %v1715
    %v1780 = vpack.c.b16 %v1720, %v1716
    %v1781 = vpack.c.b16 %v1721, %v1717
    %v1782 = vpack.c.b16 %v1722, %v1718
    %v1783 = vpack.c.b16 %v1727, %v1723
    %v1784 = vpack.c.b16 %v1728, %v1724
    %v1785 = vpack.c.b16 %v1729, %v1725
    %v1786 = vpack.c.b16 %v1730, %v1726
    %v1787 = vpack.c.b16 %v1735, %v1731
    %v1788 = vpack.c.b16 %v1736, %v1732
    %v1789 = vpack.c.b16 %v1737, %v1733
    %v1790 = vpack.c.b16 %v1738, %v1734
    %v1791 = vpack.c.b16 %v1743, %v1739
    %v1792 = vpack.c.b16 %v1744, %v1740
    %v1793 = vpack.c.b16 %v1745, %v1741
    %v1794 = vpack.c.b16 %v1746, %v1742
    %v1795 = vpack.c.b16 %v1751, %v1747
    %v1796 = vpack.c.b16 %v1752, %v1748
    %v1797 = vpack.c.b16 %v1753, %v1749
    %v1798 = vpack.c.b16 %v1754, %v1750
    %v1799 = vpack.c.b16 %v1759, %v1755
    %v1800 = vpack.c.b16 %v1760, %v1756
    %v1801 = vpack.c.b16 %v1761, %v1757
    %v1802 = vpack.c.b16 %v1762, %v1758
    %v1803 = vpack.c.b16 %v1767, %v1763
    %v1804 = vpack.c.b16 %v1768, %v1764
    %v1805 = vpack.c.b16 %v1769, %v1765
    %v1806 = vpack.c.b16 %v1770, %v1766
    %v1807 = vpack.c.b16 %v1775, %v1771
    %v1808 = vpack.c.b16 %v1776, %v1772
    %v1809 = vpack.c.b16 %v1777, %v1773
    %v1810 = vpack.c.b16 %v1778, %v1774
    %1843 = vmatprep.subr.bf16.mxu0 %v1780
    %1844 = vmatpush1.bf16.msra.mxu0 %v1779
    %1845 = vmatprep.subr.bf16.mxu0 %v1784
    %1846 = vmatpush1.bf16.msra.mxu0 %v1783
    %1847 = vmatprep.subr.bf16.mxu0 %v1788
    %1848 = vmatpush1.bf16.msra.mxu0 %v1787
    %1849 = vmatprep.subr.bf16.mxu0 %v1792
    %1850 = vmatpush1.bf16.msra.mxu0 %v1791
    %1851 = vmatprep.subr.bf16.mxu0 %v1796
    %1852 = vmatpush1.bf16.msra.mxu0 %v1795
    %1853 = vmatprep.subr.bf16.mxu0 %v1800
    %1854 = vmatpush1.bf16.msra.mxu0 %v1799
    %1855 = vmatprep.subr.bf16.mxu0 %v1804
    %1856 = vmatpush1.bf16.msra.mxu0 %v1803
    %1857 = vmatprep.subr.bf16.mxu0 %v1808
    %1858 = vmatpush1.bf16.msra.mxu0 %v1807
    %1859 = vmatprep.subr.bf16.mxu0 0
    %1860 = vmatpush1.bf16.msra.mxu0 0
    %1861 = vmatprep.subr.bf16.mxu0 0
    %1862 = vmatpush1.bf16.msra.mxu0 0
    %1863 = vmatprep.subr.bf16.mxu0 0
    %1864 = vmatpush1.bf16.msra.mxu0 0
    %1865 = vmatprep.subr.bf16.mxu0 0
    %1866 = vmatpush1.bf16.msra.mxu0 0
    %1867 = vmatprep.subr.bf16.mxu0 0
    %1868 = vmatpush1.bf16.msra.mxu0 0
    %1869 = vmatprep.subr.bf16.mxu0 0
    %1870 = vmatpush1.bf16.msra.mxu0 0
    %1871 = vmatprep.subr.bf16.mxu0 0
    %1872 = vmatpush1.bf16.msra.mxu0 0
    %1873 = vmatprep.subr.bf16.mxu0 0
    %1874 = vmatpush1.bf16.msra.mxu0 0
    %1875 = vmatprep.mubr.bf16.mxu0 0
    %1876 = vmatmul.mubr.bf16.gmra.mrb[0].mxu0 %v1644
    %v1877 = vpop.f32.mrb[0].mxu0
    %v1878 = vadd.f32 0.0, %v1877
    %v1879 = vpop.f32.mrb[0].mxu0
    %v1880 = vadd.f32 0.0, %v1879
    %v1881 = vpop.f32.mrb[0].mxu0
    %v1882 = vpop.f32.mrb[0].mxu0
    %1883 = vdwg.mxu0
    %1884 = vmatprep.subr.bf16.mxu0 %v1782
    %1885 = vmatpush1.bf16.msra.mxu0 %v1781
    %1886 = vmatprep.subr.bf16.mxu0 %v1786
    %1887 = vmatpush1.bf16.msra.mxu0 %v1785
    %1888 = vmatprep.subr.bf16.mxu0 %v1790
    %1889 = vmatpush1.bf16.msra.mxu0 %v1789
    %1890 = vmatprep.subr.bf16.mxu0 %v1794
    %1891 = vmatpush1.bf16.msra.mxu0 %v1793
    %1892 = vmatprep.subr.bf16.mxu0 %v1798
    %1893 = vmatpush1.bf16.msra.mxu0 %v1797
    %1894 = vmatprep.subr.bf16.mxu0 %v1802
    %1895 = vmatpush1.bf16.msra.mxu0 %v1801
    %1896 = vmatprep.subr.bf16.mxu0 %v1806
    %1897 = vmatpush1.bf16.msra.mxu0 %v1805
    %1898 = vmatprep.subr.bf16.mxu0 %v1810
    %1899 = vmatpush1.bf16.msra.mxu0 %v1809
    %1900 = vmatprep.subr.bf16.mxu0 0
    %1901 = vmatpush1.bf16.msra.mxu0 0
    %1902 = vmatprep.subr.bf16.mxu0 0
    %1903 = vmatpush1.bf16.msra.mxu0 0
    %1904 = vmatprep.subr.bf16.mxu0 0
    %1905 = vmatpush1.bf16.msra.mxu0 0
    %1906 = vmatprep.subr.bf16.mxu0 0
    %1907 = vmatpush1.bf16.msra.mxu0 0
    %1908 = vmatprep.subr.bf16.mxu0 0
    %1909 = vmatpush1.bf16.msra.mxu0 0
    %1910 = vmatprep.subr.bf16.mxu0 0
    %1911 = vmatpush1.bf16.msra.mxu0 0
    %1912 = vmatprep.subr.bf16.mxu0 0
    %1913 = vmatpush1.bf16.msra.mxu0 0
    %1914 = vmatprep.subr.bf16.mxu0 0
    %1915 = vmatpush1.bf16.msra.mxu0 0
    %1916 = vmatprep.mubr.bf16.mxu0 0
    %1917 = vmatmul.mubr.bf16.gmra.mrb[0].mxu0 %v1644
    %v1918 = vpop.f32.mrb[0].mxu0
    %v1919 = vadd.f32 0.0, %v1918
    %v1920 = vpop.f32.mrb[0].mxu0
    %v1921 = vadd.f32 0.0, %v1920
    %v1922 = vpop.f32.mrb[0].mxu0
    %v1923 = vpop.f32.mrb[0].mxu0
    %1924 = vdwg.mxu0
    %v1925 = vadd.f32 %v1647, %v1878
    %v1926 = vadd.f32 %v1648, %v1880
    %v1927 = vadd.f32 %v1649, %v1919
    %v1928 = vadd.f32 %v1650, %v1921
    %v1929 = vxor.u32 %v1925, 2147483648
    %v1930 = vxor.u32 %v1926, 2147483648
    %v1931 = vmul.f32 %v1929, 1.442695
    %v1932 = vpow.pop %v1931
    %v1933 = vmul.f32 %v1930, 1.442695
    %v1934 = vpow.pop %v1933
    %v1935 = vadd.f32 %v1932, 1.0
    %v1936 = vadd.f32 %v1934, 1.0
    %v1937 = vrcp.pop %v1935
    %v1938 = vmul.f32 1.0, %v1937
    %v1939 = vrcp.pop %v1936
    %v1940 = vmul.f32 1.0, %v1939
    %v1941 = vtanh.pop %v1927
    %v1942 = vxor.u32 %v1928, 2147483648
    %v1943 = vmul.f32 %v1942, 1.442695
    %v1944 = vpow.pop %v1943
    %v1945 = vadd.f32 %v1944, 1.0
    %v1946 = vrcp.pop %v1945
    %v1947 = vmul.f32 1.0, %v1946
    %v1948 = vmul.f32 %v1940, %v1641
    %v1949 = vmul.f32 %v1938, %v1941
    %v1950 = vadd.f32 %v1948, %v1949
    %v1951 = vtanh.pop %v1950
    %v1952 = vmul.f32 %v1947, %v1951
    %v1953 = vpack.c.bf16 %v1952, %v1952
    %v1955 = vrot.slane %v1953, 4
    %1957 = vst [vmem:[#allocation2 + $0x10] sm:$0xf0] %v1955
    %s1958 = scalar_lea.vmem [#allocation4], 192
    %v1959 = vld [vmem:[%s1958] sm:$0xff]
    %v1960 = vld [vmem:[%s1958 + $0x8] sm:$0xff]
    %v1961 = vld [vmem:[%s1958 + $0x10] sm:$0xff]
    %v1962 = vld [vmem:[%s1958 + $0x18] sm:$0xff]
    %v1963 = vld [vmem:[#allocation7] sm:$0xff]
    %v1964 = vld [vmem:[#allocation7 + $0x8] sm:$0xff]
    %v1965 = vld [vmem:[#allocation7 + $0x10] sm:$0xff]
    %v1966 = vld [vmem:[#allocation7 + $0x18] sm:$0xff]
    %v1967 = vld [vmem:[#allocation7 + $0x20] sm:$0xff]
    %v1968 = vld [vmem:[#allocation7 + $0x28] sm:$0xff]
    %v1969 = vld [vmem:[#allocation7 + $0x30] sm:$0xff]
    %v1970 = vld [vmem:[#allocation7 + $0x38] sm:$0xff]
    %v1971 = vld [vmem:[#allocation7 + $0x40] sm:$0xff]
    %v1972 = vld [vmem:[#allocation7 + $0x48] sm:$0xff]
    %v1973 = vld [vmem:[#allocation7 + $0x50] sm:$0xff]
    %v1974 = vld [vmem:[#allocation7 + $0x58] sm:$0xff]
    %v1975 = vld [vmem:[#allocation7 + $0x60] sm:$0xff]
    %v1976 = vld [vmem:[#allocation7 + $0x68] sm:$0xff]
    %v1977 = vld [vmem:[#allocation7 + $0x70] sm:$0xff]
    %v1978 = vld [vmem:[#allocation7 + $0x78] sm:$0xff]
    %v1979 = vld [vmem:[#allocation7 + $0x80] sm:$0xff]
    %v1980 = vld [vmem:[#allocation7 + $0x88] sm:$0xff]
    %v1981 = vld [vmem:[#allocation7 + $0x90] sm:$0xff]
    %v1982 = vld [vmem:[#allocation7 + $0x98] sm:$0xff]
    %v1983 = vld [vmem:[#allocation7 + $0xa0] sm:$0xff]
    %v1984 = vld [vmem:[#allocation7 + $0xa8] sm:$0xff]
    %v1985 = vld [vmem:[#allocation7 + $0xb0] sm:$0xff]
    %v1986 = vld [vmem:[#allocation7 + $0xb8] sm:$0xff]
    %v1987 = vld [vmem:[#allocation7 + $0xc0] sm:$0xff]
    %v1988 = vld [vmem:[#allocation7 + $0xc8] sm:$0xff]
    %v1989 = vld [vmem:[#allocation7 + $0xd0] sm:$0xff]
    %v1990 = vld [vmem:[#allocation7 + $0xd8] sm:$0xff]
    %v1991 = vld [vmem:[#allocation7 + $0xe0] sm:$0xff]
    %v1992 = vld [vmem:[#allocation7 + $0xe8] sm:$0xff]
    %v1993 = vld [vmem:[#allocation7 + $0xf0] sm:$0xff]
    %v1994 = vld [vmem:[#allocation7 + $0xf8] sm:$0xff]
    %v2027 = vunpack.c.l.b16 %v1963
    %v2028 = vunpack.c.h.b16 %v1963
    %v2029 = vunpack.c.l.b16 %v1964
    %v2030 = vunpack.c.h.b16 %v1964
    %v2031 = vunpack.c.l.b16 %v1965
    %v2032 = vunpack.c.h.b16 %v1965
    %v2033 = vunpack.c.l.b16 %v1966
    %v2034 = vunpack.c.h.b16 %v1966
    %v2035 = vunpack.c.l.b16 %v1967
    %v2036 = vunpack.c.h.b16 %v1967
    %v2037 = vunpack.c.l.b16 %v1968
    %v2038 = vunpack.c.h.b16 %v1968
    %v2039 = vunpack.c.l.b16 %v1969
    %v2040 = vunpack.c.h.b16 %v1969
    %v2041 = vunpack.c.l.b16 %v1970
    %v2042 = vunpack.c.h.b16 %v1970
    %v2043 = vunpack.c.l.b16 %v1971
    %v2044 = vunpack.c.h.b16 %v1971
    %v2045 = vunpack.c.l.b16 %v1972
    %v2046 = vunpack.c.h.b16 %v1972
    %v2047 = vunpack.c.l.b16 %v1973
    %v2048 = vunpack.c.h.b16 %v1973
    %v2049 = vunpack.c.l.b16 %v1974
    %v2050 = vunpack.c.h.b16 %v1974
    %v2051 = vunpack.c.l.b16 %v1975
    %v2052 = vunpack.c.h.b16 %v1975
    %v2053 = vunpack.c.l.b16 %v1976
    %v2054 = vunpack.c.h.b16 %v1976
    %v2055 = vunpack.c.l.b16 %v1977
    %v2056 = vunpack.c.h.b16 %v1977
    %v2057 = vunpack.c.l.b16 %v1978
    %v2058 = vunpack.c.h.b16 %v1978
    %v2059 = vunpack.c.l.b16 %v1979
    %v2060 = vunpack.c.h.b16 %v1979
    %v2061 = vunpack.c.l.b16 %v1980
    %v2062 = vunpack.c.h.b16 %v1980
    %v2063 = vunpack.c.l.b16 %v1981
    %v2064 = vunpack.c.h.b16 %v1981
    %v2065 = vunpack.c.l.b16 %v1982
    %v2066 = vunpack.c.h.b16 %v1982
    %v2067 = vunpack.c.l.b16 %v1983
    %v2068 = vunpack.c.h.b16 %v1983
    %v2069 = vunpack.c.l.b16 %v1984
    %v2070 = vunpack.c.h.b16 %v1984
    %v2071 = vunpack.c.l.b16 %v1985
    %v2072 = vunpack.c.h.b16 %v1985
    %v2073 = vunpack.c.l.b16 %v1986
    %v2074 = vunpack.c.h.b16 %v1986
    %v2075 = vunpack.c.l.b16 %v1987
    %v2076 = vunpack.c.h.b16 %v1987
    %v2077 = vunpack.c.l.b16 %v1988
    %v2078 = vunpack.c.h.b16 %v1988
    %v2079 = vunpack.c.l.b16 %v1989
    %v2080 = vunpack.c.h.b16 %v1989
    %v2081 = vunpack.c.l.b16 %v1990
    %v2082 = vunpack.c.h.b16 %v1990
    %v2083 = vunpack.c.l.b16 %v1991
    %v2084 = vunpack.c.h.b16 %v1991
    %v2085 = vunpack.c.l.b16 %v1992
    %v2086 = vunpack.c.h.b16 %v1992
    %v2087 = vunpack.c.l.b16 %v1993
    %v2088 = vunpack.c.h.b16 %v1993
    %v2089 = vunpack.c.l.b16 %v1994
    %v2090 = vunpack.c.h.b16 %v1994
    %v2091 = vpack.c.b16 %v2031, %v2027
    %v2092 = vpack.c.b16 %v2032, %v2028
    %v2093 = vpack.c.b16 %v2033, %v2029
    %v2094 = vpack.c.b16 %v2034, %v2030
    %v2095 = vpack.c.b16 %v2039, %v2035
    %v2096 = vpack.c.b16 %v2040, %v2036
    %v2097 = vpack.c.b16 %v2041, %v2037
    %v2098 = vpack.c.b16 %v2042, %v2038
    %v2099 = vpack.c.b16 %v2047, %v2043
    %v2100 = vpack.c.b16 %v2048, %v2044
    %v2101 = vpack.c.b16 %v2049, %v2045
    %v2102 = vpack.c.b16 %v2050, %v2046
    %v2103 = vpack.c.b16 %v2055, %v2051
    %v2104 = vpack.c.b16 %v2056, %v2052
    %v2105 = vpack.c.b16 %v2057, %v2053
    %v2106 = vpack.c.b16 %v2058, %v2054
    %v2107 = vpack.c.b16 %v2063, %v2059
    %v2108 = vpack.c.b16 %v2064, %v2060
    %v2109 = vpack.c.b16 %v2065, %v2061
    %v2110 = vpack.c.b16 %v2066, %v2062
    %v2111 = vpack.c.b16 %v2071, %v2067
    %v2112 = vpack.c.b16 %v2072, %v2068
    %v2113 = vpack.c.b16 %v2073, %v2069
    %v2114 = vpack.c.b16 %v2074, %v2070
    %v2115 = vpack.c.b16 %v2079, %v2075
    %v2116 = vpack.c.b16 %v2080, %v2076
    %v2117 = vpack.c.b16 %v2081, %v2077
    %v2118 = vpack.c.b16 %v2082, %v2078
    %v2119 = vpack.c.b16 %v2087, %v2083
    %v2120 = vpack.c.b16 %v2088, %v2084
    %v2121 = vpack.c.b16 %v2089, %v2085
    %v2122 = vpack.c.b16 %v2090, %v2086
    %2155 = vmatprep.subr.bf16.mxu0 %v2092
    %2156 = vmatpush1.bf16.msra.mxu0 %v2091
    %2157 = vmatprep.subr.bf16.mxu0 %v2096
    %2158 = vmatpush1.bf16.msra.mxu0 %v2095
    %2159 = vmatprep.subr.bf16.mxu0 %v2100
    %2160 = vmatpush1.bf16.msra.mxu0 %v2099
    %2161 = vmatprep.subr.bf16.mxu0 %v2104
    %2162 = vmatpush1.bf16.msra.mxu0 %v2103
    %2163 = vmatprep.subr.bf16.mxu0 %v2108
    %2164 = vmatpush1.bf16.msra.mxu0 %v2107
    %2165 = vmatprep.subr.bf16.mxu0 %v2112
    %2166 = vmatpush1.bf16.msra.mxu0 %v2111
    %2167 = vmatprep.subr.bf16.mxu0 %v2116
    %2168 = vmatpush1.bf16.msra.mxu0 %v2115
    %2169 = vmatprep.subr.bf16.mxu0 %v2120
    %2170 = vmatpush1.bf16.msra.mxu0 %v2119
    %2171 = vmatprep.subr.bf16.mxu0 0
    %2172 = vmatpush1.bf16.msra.mxu0 0
    %2173 = vmatprep.subr.bf16.mxu0 0
    %2174 = vmatpush1.bf16.msra.mxu0 0
    %2175 = vmatprep.subr.bf16.mxu0 0
    %2176 = vmatpush1.bf16.msra.mxu0 0
    %2177 = vmatprep.subr.bf16.mxu0 0
    %2178 = vmatpush1.bf16.msra.mxu0 0
    %2179 = vmatprep.subr.bf16.mxu0 0
    %2180 = vmatpush1.bf16.msra.mxu0 0
    %2181 = vmatprep.subr.bf16.mxu0 0
    %2182 = vmatpush1.bf16.msra.mxu0 0
    %2183 = vmatprep.subr.bf16.mxu0 0
    %2184 = vmatpush1.bf16.msra.mxu0 0
    %2185 = vmatprep.subr.bf16.mxu0 0
    %2186 = vmatpush1.bf16.msra.mxu0 0
    %2187 = vmatprep.mubr.bf16.mxu0 0
    %2188 = vmatmul.mubr.bf16.gmra.mrb[0].mxu0 %v1953
    %v2189 = vpop.f32.mrb[0].mxu0
    %v2190 = vadd.f32 0.0, %v2189
    %v2191 = vpop.f32.mrb[0].mxu0
    %v2192 = vadd.f32 0.0, %v2191
    %v2193 = vpop.f32.mrb[0].mxu0
    %v2194 = vpop.f32.mrb[0].mxu0
    %2195 = vdwg.mxu0
    %2196 = vmatprep.subr.bf16.mxu0 %v2094
    %2197 = vmatpush1.bf16.msra.mxu0 %v2093
    %2198 = vmatprep.subr.bf16.mxu0 %v2098
    %2199 = vmatpush1.bf16.msra.mxu0 %v2097
    %2200 = vmatprep.subr.bf16.mxu0 %v2102
    %2201 = vmatpush1.bf16.msra.mxu0 %v2101
    %2202 = vmatprep.subr.bf16.mxu0 %v2106
    %2203 = vmatpush1.bf16.msra.mxu0 %v2105
    %2204 = vmatprep.subr.bf16.mxu0 %v2110
    %2205 = vmatpush1.bf16.msra.mxu0 %v2109
    %2206 = vmatprep.subr.bf16.mxu0 %v2114
    %2207 = vmatpush1.bf16.msra.mxu0 %v2113
    %2208 = vmatprep.subr.bf16.mxu0 %v2118
    %2209 = vmatpush1.bf16.msra.mxu0 %v2117
    %2210 = vmatprep.subr.bf16.mxu0 %v2122
    %2211 = vmatpush1.bf16.msra.mxu0 %v2121
    %2212 = vmatprep.subr.bf16.mxu0 0
    %2213 = vmatpush1.bf16.msra.mxu0 0
    %2214 = vmatprep.subr.bf16.mxu0 0
    %2215 = vmatpush1.bf16.msra.mxu0 0
    %2216 = vmatprep.subr.bf16.mxu0 0
    %2217 = vmatpush1.bf16.msra.mxu0 0
    %2218 = vmatprep.subr.bf16.mxu0 0
    %2219 = vmatpush1.bf16.msra.mxu0 0
    %2220 = vmatprep.subr.bf16.mxu0 0
    %2221 = vmatpush1.bf16.msra.mxu0 0
    %2222 = vmatprep.subr.bf16.mxu0 0
    %2223 = vmatpush1.bf16.msra.mxu0 0
    %2224 = vmatprep.subr.bf16.mxu0 0
    %2225 = vmatpush1.bf16.msra.mxu0 0
    %2226 = vmatprep.subr.bf16.mxu0 0
    %2227 = vmatpush1.bf16.msra.mxu0 0
    %2228 = vmatprep.mubr.bf16.mxu0 0
    %2229 = vmatmul.mubr.bf16.gmra.mrb[0].mxu0 %v1953
    %v2230 = vpop.f32.mrb[0].mxu0
    %v2231 = vadd.f32 0.0, %v2230
    %v2232 = vpop.f32.mrb[0].mxu0
    %v2233 = vadd.f32 0.0, %v2232
    %v2234 = vpop.f32.mrb[0].mxu0
    %v2235 = vpop.f32.mrb[0].mxu0
    %2236 = vdwg.mxu0
    %v2237 = vadd.f32 %v1959, %v2190
    %v2238 = vadd.f32 %v1960, %v2192
    %v2239 = vadd.f32 %v1961, %v2231
    %v2240 = vadd.f32 %v1962, %v2233
    %v2241 = vxor.u32 %v2237, 2147483648
    %v2242 = vxor.u32 %v2238, 2147483648
    %v2243 = vmul.f32 %v2241, 1.442695
    %v2244 = vpow.pop %v2243
    %v2245 = vmul.f32 %v2242, 1.442695
    %v2246 = vpow.pop %v2245
    %v2247 = vadd.f32 %v2244, 1.0
    %v2248 = vadd.f32 %v2246, 1.0
    %v2249 = vrcp.pop %v2247
    %v2250 = vmul.f32 1.0, %v2249
    %v2251 = vrcp.pop %v2248
    %v2252 = vmul.f32 1.0, %v2251
    %v2253 = vtanh.pop %v2239
    %v2254 = vxor.u32 %v2240, 2147483648
    %v2255 = vmul.f32 %v2254, 1.442695
    %v2256 = vpow.pop %v2255
    %v2257 = vadd.f32 %v2256, 1.0
    %v2258 = vrcp.pop %v2257
    %v2259 = vmul.f32 1.0, %v2258
    %v2260 = vmul.f32 %v2252, %v1950
    %v2261 = vmul.f32 %v2250, %v2253
    %v2262 = vadd.f32 %v2260, %v2261
    %v2263 = vtanh.pop %v2262
    %v2264 = vmul.f32 %v2259, %v2263
    %v2265 = vpack.c.bf16 %v2264, %v2264
    %2266 = vst [vmem:[#allocation2 + $0x18] sm:$0xf] %v2265
    %s2267 = scalar_lea.vmem [#allocation4], 224
    %v2268 = vld [vmem:[%s2267] sm:$0xff]
    %v2269 = vld [vmem:[%s2267 + $0x8] sm:$0xff]
    %v2270 = vld [vmem:[%s2267 + $0x10] sm:$0xff]
    %v2271 = vld [vmem:[%s2267 + $0x18] sm:$0xff]
    %v2272 = vld [vmem:[#allocation7] sm:$0xff]
    %v2273 = vld [vmem:[#allocation7 + $0x8] sm:$0xff]
    %v2274 = vld [vmem:[#allocation7 + $0x10] sm:$0xff]
    %v2275 = vld [vmem:[#allocation7 + $0x18] sm:$0xff]
    %v2276 = vld [vmem:[#allocation7 + $0x20] sm:$0xff]
    %v2277 = vld [vmem:[#allocation7 + $0x28] sm:$0xff]
    %v2278 = vld [vmem:[#allocation7 + $0x30] sm:$0xff]
    %v2279 = vld [vmem:[#allocation7 + $0x38] sm:$0xff]
    %v2280 = vld [vmem:[#allocation7 + $0x40] sm:$0xff]
    %v2281 = vld [vmem:[#allocation7 + $0x48] sm:$0xff]
    %v2282 = vld [vmem:[#allocation7 + $0x50] sm:$0xff]
    %v2283 = vld [vmem:[#allocation7 + $0x58] sm:$0xff]
    %v2284 = vld [vmem:[#allocation7 + $0x60] sm:$0xff]
    %v2285 = vld [vmem:[#allocation7 + $0x68] sm:$0xff]
    %v2286 = vld [vmem:[#allocation7 + $0x70] sm:$0xff]
    %v2287 = vld [vmem:[#allocation7 + $0x78] sm:$0xff]
    %v2288 = vld [vmem:[#allocation7 + $0x80] sm:$0xff]
    %v2289 = vld [vmem:[#allocation7 + $0x88] sm:$0xff]
    %v2290 = vld [vmem:[#allocation7 + $0x90] sm:$0xff]
    %v2291 = vld [vmem:[#allocation7 + $0x98] sm:$0xff]
    %v2292 = vld [vmem:[#allocation7 + $0xa0] sm:$0xff]
    %v2293 = vld [vmem:[#allocation7 + $0xa8] sm:$0xff]
    %v2294 = vld [vmem:[#allocation7 + $0xb0] sm:$0xff]
    %v2295 = vld [vmem:[#allocation7 + $0xb8] sm:$0xff]
    %v2296 = vld [vmem:[#allocation7 + $0xc0] sm:$0xff]
    %v2297 = vld [vmem:[#allocation7 + $0xc8] sm:$0xff]
    %v2298 = vld [vmem:[#allocation7 + $0xd0] sm:$0xff]
    %v2299 = vld [vmem:[#allocation7 + $0xd8] sm:$0xff]
    %v2300 = vld [vmem:[#allocation7 + $0xe0] sm:$0xff]
    %v2301 = vld [vmem:[#allocation7 + $0xe8] sm:$0xff]
    %v2302 = vld [vmem:[#allocation7 + $0xf0] sm:$0xff]
    %v2303 = vld [vmem:[#allocation7 + $0xf8] sm:$0xff]
    %v2336 = vunpack.c.l.b16 %v2272
    %v2337 = vunpack.c.h.b16 %v2272
    %v2338 = vunpack.c.l.b16 %v2273
    %v2339 = vunpack.c.h.b16 %v2273
    %v2340 = vunpack.c.l.b16 %v2274
    %v2341 = vunpack.c.h.b16 %v2274
    %v2342 = vunpack.c.l.b16 %v2275
    %v2343 = vunpack.c.h.b16 %v2275
    %v2344 = vunpack.c.l.b16 %v2276
    %v2345 = vunpack.c.h.b16 %v2276
    %v2346 = vunpack.c.l.b16 %v2277
    %v2347 = vunpack.c.h.b16 %v2277
    %v2348 = vunpack.c.l.b16 %v2278
    %v2349 = vunpack.c.h.b16 %v2278
    %v2350 = vunpack.c.l.b16 %v2279
    %v2351 = vunpack.c.h.b16 %v2279
    %v2352 = vunpack.c.l.b16 %v2280
    %v2353 = vunpack.c.h.b16 %v2280
    %v2354 = vunpack.c.l.b16 %v2281
    %v2355 = vunpack.c.h.b16 %v2281
    %v2356 = vunpack.c.l.b16 %v2282
    %v2357 = vunpack.c.h.b16 %v2282
    %v2358 = vunpack.c.l.b16 %v2283
    %v2359 = vunpack.c.h.b16 %v2283
    %v2360 = vunpack.c.l.b16 %v2284
    %v2361 = vunpack.c.h.b16 %v2284
    %v2362 = vunpack.c.l.b16 %v2285
    %v2363 = vunpack.c.h.b16 %v2285
    %v2364 = vunpack.c.l.b16 %v2286
    %v2365 = vunpack.c.h.b16 %v2286
    %v2366 = vunpack.c.l.b16 %v2287
    %v2367 = vunpack.c.h.b16 %v2287
    %v2368 = vunpack.c.l.b16 %v2288
    %v2369 = vunpack.c.h.b16 %v2288
    %v2370 = vunpack.c.l.b16 %v2289
    %v2371 = vunpack.c.h.b16 %v2289
    %v2372 = vunpack.c.l.b16 %v2290
    %v2373 = vunpack.c.h.b16 %v2290
    %v2374 = vunpack.c.l.b16 %v2291
    %v2375 = vunpack.c.h.b16 %v2291
    %v2376 = vunpack.c.l.b16 %v2292
    %v2377 = vunpack.c.h.b16 %v2292
    %v2378 = vunpack.c.l.b16 %v2293
    %v2379 = vunpack.c.h.b16 %v2293
    %v2380 = vunpack.c.l.b16 %v2294
    %v2381 = vunpack.c.h.b16 %v2294
    %v2382 = vunpack.c.l.b16 %v2295
    %v2383 = vunpack.c.h.b16 %v2295
    %v2384 = vunpack.c.l.b16 %v2296
    %v2385 = vunpack.c.h.b16 %v2296
    %v2386 = vunpack.c.l.b16 %v2297
    %v2387 = vunpack.c.h.b16 %v2297
    %v2388 = vunpack.c.l.b16 %v2298
    %v2389 = vunpack.c.h.b16 %v2298
    %v2390 = vunpack.c.l.b16 %v2299
    %v2391 = vunpack.c.h.b16 %v2299
    %v2392 = vunpack.c.l.b16 %v2300
    %v2393 = vunpack.c.h.b16 %v2300
    %v2394 = vunpack.c.l.b16 %v2301
    %v2395 = vunpack.c.h.b16 %v2301
    %v2396 = vunpack.c.l.b16 %v2302
    %v2397 = vunpack.c.h.b16 %v2302
    %v2398 = vunpack.c.l.b16 %v2303
    %v2399 = vunpack.c.h.b16 %v2303
    %v2400 = vpack.c.b16 %v2340, %v2336
    %v2401 = vpack.c.b16 %v2341, %v2337
    %v2402 = vpack.c.b16 %v2342, %v2338
    %v2403 = vpack.c.b16 %v2343, %v2339
    %v2404 = vpack.c.b16 %v2348, %v2344
    %v2405 = vpack.c.b16 %v2349, %v2345
    %v2406 = vpack.c.b16 %v2350, %v2346
    %v2407 = vpack.c.b16 %v2351, %v2347
    %v2408 = vpack.c.b16 %v2356, %v2352
    %v2409 = vpack.c.b16 %v2357, %v2353
    %v2410 = vpack.c.b16 %v2358, %v2354
    %v2411 = vpack.c.b16 %v2359, %v2355
    %v2412 = vpack.c.b16 %v2364, %v2360
    %v2413 = vpack.c.b16 %v2365, %v2361
    %v2414 = vpack.c.b16 %v2366, %v2362
    %v2415 = vpack.c.b16 %v2367, %v2363
    %v2416 = vpack.c.b16 %v2372, %v2368
    %v2417 = vpack.c.b16 %v2373, %v2369
    %v2418 = vpack.c.b16 %v2374, %v2370
    %v2419 = vpack.c.b16 %v2375, %v2371
    %v2420 = vpack.c.b16 %v2380, %v2376
    %v2421 = vpack.c.b16 %v2381, %v2377
    %v2422 = vpack.c.b16 %v2382, %v2378
    %v2423 = vpack.c.b16 %v2383, %v2379
    %v2424 = vpack.c.b16 %v2388, %v2384
    %v2425 = vpack.c.b16 %v2389, %v2385
    %v2426 = vpack.c.b16 %v2390, %v2386
    %v2427 = vpack.c.b16 %v2391, %v2387
    %v2428 = vpack.c.b16 %v2396, %v2392
    %v2429 = vpack.c.b16 %v2397, %v2393
    %v2430 = vpack.c.b16 %v2398, %v2394
    %v2431 = vpack.c.b16 %v2399, %v2395
    %2464 = vmatprep.subr.bf16.mxu0 %v2401
    %2465 = vmatpush1.bf16.msra.mxu0 %v2400
    %2466 = vmatprep.subr.bf16.mxu0 %v2405
    %2467 = vmatpush1.bf16.msra.mxu0 %v2404
    %2468 = vmatprep.subr.bf16.mxu0 %v2409
    %2469 = vmatpush1.bf16.msra.mxu0 %v2408
    %2470 = vmatprep.subr.bf16.mxu0 %v2413
    %2471 = vmatpush1.bf16.msra.mxu0 %v2412
    %2472 = vmatprep.subr.bf16.mxu0 %v2417
    %2473 = vmatpush1.bf16.msra.mxu0 %v2416
    %2474 = vmatprep.subr.bf16.mxu0 %v2421
    %2475 = vmatpush1.bf16.msra.mxu0 %v2420
    %2476 = vmatprep.subr.bf16.mxu0 %v2425
    %2477 = vmatpush1.bf16.msra.mxu0 %v2424
    %2478 = vmatprep.subr.bf16.mxu0 %v2429
    %2479 = vmatpush1.bf16.msra.mxu0 %v2428
    %2480 = vmatprep.subr.bf16.mxu0 0
    %2481 = vmatpush1.bf16.msra.mxu0 0
    %2482 = vmatprep.subr.bf16.mxu0 0
    %2483 = vmatpush1.bf16.msra.mxu0 0
    %2484 = vmatprep.subr.bf16.mxu0 0
    %2485 = vmatpush1.bf16.msra.mxu0 0
    %2486 = vmatprep.subr.bf16.mxu0 0
    %2487 = vmatpush1.bf16.msra.mxu0 0
    %2488 = vmatprep.subr.bf16.mxu0 0
    %2489 = vmatpush1.bf16.msra.mxu0 0
    %2490 = vmatprep.subr.bf16.mxu0 0
    %2491 = vmatpush1.bf16.msra.mxu0 0
    %2492 = vmatprep.subr.bf16.mxu0 0
    %2493 = vmatpush1.bf16.msra.mxu0 0
    %2494 = vmatprep.subr.bf16.mxu0 0
    %2495 = vmatpush1.bf16.msra.mxu0 0
    %2496 = vmatprep.mubr.bf16.mxu0 0
    %2497 = vmatmul.mubr.bf16.gmra.mrb[0].mxu0 %v2265
    %v2498 = vpop.f32.mrb[0].mxu0
    %v2499 = vadd.f32 0.0, %v2498
    %v2500 = vpop.f32.mrb[0].mxu0
    %v2501 = vadd.f32 0.0, %v2500
    %v2502 = vpop.f32.mrb[0].mxu0
    %v2503 = vpop.f32.mrb[0].mxu0
    %2504 = vdwg.mxu0
    %2505 = vmatprep.subr.bf16.mxu0 %v2403
    %2506 = vmatpush1.bf16.msra.mxu0 %v2402
    %2507 = vmatprep.subr.bf16.mxu0 %v2407
    %2508 = vmatpush1.bf16.msra.mxu0 %v2406
    %2509 = vmatprep.subr.bf16.mxu0 %v2411
    %2510 = vmatpush1.bf16.msra.mxu0 %v2410
    %2511 = vmatprep.subr.bf16.mxu0 %v2415
    %2512 = vmatpush1.bf16.msra.mxu0 %v2414
    %2513 = vmatprep.subr.bf16.mxu0 %v2419
    %2514 = vmatpush1.bf16.msra.mxu0 %v2418
    %2515 = vmatprep.subr.bf16.mxu0 %v2423
    %2516 = vmatpush1.bf16.msra.mxu0 %v2422
    %2517 = vmatprep.subr.bf16.mxu0 %v2427
    %2518 = vmatpush1.bf16.msra.mxu0 %v2426
    %2519 = vmatprep.subr.bf16.mxu0 %v2431
    %2520 = vmatpush1.bf16.msra.mxu0 %v2430
    %2521 = vmatprep.subr.bf16.mxu0 0
    %2522 = vmatpush1.bf16.msra.mxu0 0
    %2523 = vmatprep.subr.bf16.mxu0 0
    %2524 = vmatpush1.bf16.msra.mxu0 0
    %2525 = vmatprep.subr.bf16.mxu0 0
    %2526 = vmatpush1.bf16.msra.mxu0 0
    %2527 = vmatprep.subr.bf16.mxu0 0
    %2528 = vmatpush1.bf16.msra.mxu0 0
    %2529 = vmatprep.subr.bf16.mxu0 0
    %2530 = vmatpush1.bf16.msra.mxu0 0
    %2531 = vmatprep.subr.bf16.mxu0 0
    %2532 = vmatpush1.bf16.msra.mxu0 0
    %2533 = vmatprep.subr.bf16.mxu0 0
    %2534 = vmatpush1.bf16.msra.mxu0 0
    %2535 = vmatprep.subr.bf16.mxu0 0
    %2536 = vmatpush1.bf16.msra.mxu0 0
    %2537 = vmatprep.mubr.bf16.mxu0 0
    %2538 = vmatmul.mubr.bf16.gmra.mrb[0].mxu0 %v2265
    %v2539 = vpop.f32.mrb[0].mxu0
    %v2540 = vadd.f32 0.0, %v2539
    %v2541 = vpop.f32.mrb[0].mxu0
    %v2542 = vadd.f32 0.0, %v2541
    %v2543 = vpop.f32.mrb[0].mxu0
    %v2544 = vpop.f32.mrb[0].mxu0
    %2545 = vdwg.mxu0
    %v2546 = vadd.f32 %v2268, %v2499
    %v2547 = vadd.f32 %v2269, %v2501
    %v2548 = vadd.f32 %v2270, %v2540
    %v2549 = vadd.f32 %v2271, %v2542
    %v2550 = vxor.u32 %v2546, 2147483648
    %v2551 = vxor.u32 %v2547, 2147483648
    %v2552 = vmul.f32 %v2550, 1.442695
    %v2553 = vpow.pop %v2552
    %v2554 = vmul.f32 %v2551, 1.442695
    %v2555 = vpow.pop %v2554
    %v2556 = vadd.f32 %v2553, 1.0
    %v2557 = vadd.f32 %v2555, 1.0
    %v2558 = vrcp.pop %v2556
    %v2559 = vmul.f32 1.0, %v2558
    %v2560 = vrcp.pop %v2557
    %v2561 = vmul.f32 1.0, %v2560
    %v2562 = vtanh.pop %v2548
    %v2563 = vxor.u32 %v2549, 2147483648
    %v2564 = vmul.f32 %v2563, 1.442695
    %v2565 = vpow.pop %v2564
    %v2566 = vadd.f32 %v2565, 1.0
    %v2567 = vrcp.pop %v2566
    %v2568 = vmul.f32 1.0, %v2567
    %v2569 = vmul.f32 %v2561, %v2262
    %v2570 = vmul.f32 %v2559, %v2562
    %v2571 = vadd.f32 %v2569, %v2570
    %v2572 = vtanh.pop %v2571
    %v2573 = vmul.f32 %v2568, %v2572
    %v2574 = vpack.c.bf16 %v2573, %v2573
    %v2576 = vrot.slane %v2574, 4
    %2578 = vst [vmem:[#allocation2 + $0x18] sm:$0xf0] %v2576
    %v2579 = vld [vmem:[#allocation2] sm:$0xff]
    %v2580 = vld [vmem:[#allocation2 + $0x8] sm:$0xff]
    %v2581 = vld [vmem:[#allocation2 + $0x10] sm:$0xff]
    %v2582 = vld [vmem:[#allocation2 + $0x18] sm:$0xff]
    %v2583 = vld [vmem:[#allocation9] sm:$0xff]
    %v2584 = vld [vmem:[#allocation9 + $0x8] sm:$0xff]
    %v2585 = vld [vmem:[#allocation9 + $0x10] sm:$0xff]
    %v2586 = vld [vmem:[#allocation9 + $0x18] sm:$0xff]
    %v2587 = vld [vmem:[#allocation9 + $0x20] sm:$0xff]
    %v2588 = vld [vmem:[#allocation9 + $0x28] sm:$0xff]
    %v2589 = vld [vmem:[#allocation9 + $0x30] sm:$0xff]
    %v2590 = vld [vmem:[#allocation9 + $0x38] sm:$0xff]
    %v2591 = vld [vmem:[#allocation9 + $0x40] sm:$0xff]
    %v2592 = vld [vmem:[#allocation9 + $0x48] sm:$0xff]
    %v2593 = vld [vmem:[#allocation9 + $0x50] sm:$0xff]
    %v2594 = vld [vmem:[#allocation9 + $0x58] sm:$0xff]
    %v2595 = vld [vmem:[#allocation9 + $0x60] sm:$0xff]
    %v2596 = vld [vmem:[#allocation9 + $0x68] sm:$0xff]
    %v2597 = vld [vmem:[#allocation9 + $0x70] sm:$0xff]
    %v2598 = vld [vmem:[#allocation9 + $0x78] sm:$0xff]
    %v2599 = vld [vmem:[#allocation9 + $0x80] sm:$0xff]
    %v2600 = vld [vmem:[#allocation9 + $0x88] sm:$0xff]
    %v2601 = vld [vmem:[#allocation9 + $0x90] sm:$0xff]
    %v2602 = vld [vmem:[#allocation9 + $0x98] sm:$0xff]
    %v2603 = vld [vmem:[#allocation9 + $0xa0] sm:$0xff]
    %v2604 = vld [vmem:[#allocation9 + $0xa8] sm:$0xff]
    %v2605 = vld [vmem:[#allocation9 + $0xb0] sm:$0xff]
    %v2606 = vld [vmem:[#allocation9 + $0xb8] sm:$0xff]
    %v2607 = vld [vmem:[#allocation9 + $0xc0] sm:$0xff]
    %v2608 = vld [vmem:[#allocation9 + $0xc8] sm:$0xff]
    %v2609 = vld [vmem:[#allocation9 + $0xd0] sm:$0xff]
    %v2610 = vld [vmem:[#allocation9 + $0xd8] sm:$0xff]
    %v2611 = vld [vmem:[#allocation9 + $0xe0] sm:$0xff]
    %v2612 = vld [vmem:[#allocation9 + $0xe8] sm:$0xff]
    %v2613 = vld [vmem:[#allocation9 + $0xf0] sm:$0xff]
    %v2614 = vld [vmem:[#allocation9 + $0xf8] sm:$0xff]
    %v2615 = vld [vmem:[%s4] sm:$0xf]
    %v2617 = vlaneseq
    %v2618 = vshrl.u32 %v2617, 7
    %v2619 = vsub.s32 0, %v2618
    %v2620 = vrot.slane %v2615, %v2619
    %v2621 = vlaneseq
    %v2622 = vshrl.u32 %v2621, 7
    %v2623 = vsub.s32 1, %v2622
    %v2624 = vrot.slane %v2615, %v2623
    %v2625 = vlaneseq
    %v2626 = vshrl.u32 %v2625, 7
    %v2627 = vsub.s32 2, %v2626
    %v2628 = vrot.slane %v2615, %v2627
    %v2629 = vlaneseq
    %v2630 = vshrl.u32 %v2629, 7
    %v2631 = vsub.s32 3, %v2630
    %v2632 = vrot.slane %v2615, %v2631
    %v2669 = vunpack.c.l.b16 %v2583
    %v2670 = vunpack.c.h.b16 %v2583
    %v2671 = vunpack.c.l.b16 %v2584
    %v2672 = vunpack.c.h.b16 %v2584
    %v2673 = vunpack.c.l.b16 %v2585
    %v2674 = vunpack.c.h.b16 %v2585
    %v2675 = vunpack.c.l.b16 %v2586
    %v2676 = vunpack.c.h.b16 %v2586
    %v2677 = vunpack.c.l.b16 %v2587
    %v2678 = vunpack.c.h.b16 %v2587
    %v2679 = vunpack.c.l.b16 %v2588
    %v2680 = vunpack.c.h.b16 %v2588
    %v2681 = vunpack.c.l.b16 %v2589
    %v2682 = vunpack.c.h.b16 %v2589
    %v2683 = vunpack.c.l.b16 %v2590
    %v2684 = vunpack.c.h.b16 %v2590
    %v2685 = vunpack.c.l.b16 %v2591
    %v2686 = vunpack.c.h.b16 %v2591
    %v2687 = vunpack.c.l.b16 %v2592
    %v2688 = vunpack.c.h.b16 %v2592
    %v2689 = vunpack.c.l.b16 %v2593
    %v2690 = vunpack.c.h.b16 %v2593
    %v2691 = vunpack.c.l.b16 %v2594
    %v2692 = vunpack.c.h.b16 %v2594
    %v2693 = vunpack.c.l.b16 %v2595
    %v2694 = vunpack.c.h.b16 %v2595
    %v2695 = vunpack.c.l.b16 %v2596
    %v2696 = vunpack.c.h.b16 %v2596
    %v2697 = vunpack.c.l.b16 %v2597
    %v2698 = vunpack.c.h.b16 %v2597
    %v2699 = vunpack.c.l.b16 %v2598
    %v2700 = vunpack.c.h.b16 %v2598
    %v2701 = vunpack.c.l.b16 %v2599
    %v2702 = vunpack.c.h.b16 %v2599
    %v2703 = vunpack.c.l.b16 %v2600
    %v2704 = vunpack.c.h.b16 %v2600
    %v2705 = vunpack.c.l.b16 %v2601
    %v2706 = vunpack.c.h.b16 %v2601
    %v2707 = vunpack.c.l.b16 %v2602
    %v2708 = vunpack.c.h.b16 %v2602
    %v2709 = vunpack.c.l.b16 %v2603
    %v2710 = vunpack.c.h.b16 %v2603
    %v2711 = vunpack.c.l.b16 %v2604
    %v2712 = vunpack.c.h.b16 %v2604
    %v2713 = vunpack.c.l.b16 %v2605
    %v2714 = vunpack.c.h.b16 %v2605
    %v2715 = vunpack.c.l.b16 %v2606
    %v2716 = vunpack.c.h.b16 %v2606
    %v2717 = vunpack.c.l.b16 %v2607
    %v2718 = vunpack.c.h.b16 %v2607
    %v2719 = vunpack.c.l.b16 %v2608
    %v2720 = vunpack.c.h.b16 %v2608
    %v2721 = vunpack.c.l.b16 %v2609
    %v2722 = vunpack.c.h.b16 %v2609
    %v2723 = vunpack.c.l.b16 %v2610
    %v2724 = vunpack.c.h.b16 %v2610
    %v2725 = vunpack.c.l.b16 %v2611
    %v2726 = vunpack.c.h.b16 %v2611
    %v2727 = vunpack.c.l.b16 %v2612
    %v2728 = vunpack.c.h.b16 %v2612
    %v2729 = vunpack.c.l.b16 %v2613
    %v2730 = vunpack.c.h.b16 %v2613
    %v2731 = vunpack.c.l.b16 %v2614
    %v2732 = vunpack.c.h.b16 %v2614
    %v2733 = vpack.c.b16 %v2673, %v2669
    %v2734 = vpack.c.b16 %v2674, %v2670
    %v2735 = vpack.c.b16 %v2675, %v2671
    %v2736 = vpack.c.b16 %v2676, %v2672
    %v2737 = vpack.c.b16 %v2681, %v2677
    %v2738 = vpack.c.b16 %v2682, %v2678
    %v2739 = vpack.c.b16 %v2683, %v2679
    %v2740 = vpack.c.b16 %v2684, %v2680
    %v2741 = vpack.c.b16 %v2689, %v2685
    %v2742 = vpack.c.b16 %v2690, %v2686
    %v2743 = vpack.c.b16 %v2691, %v2687
    %v2744 = vpack.c.b16 %v2692, %v2688
    %v2745 = vpack.c.b16 %v2697, %v2693
    %v2746 = vpack.c.b16 %v2698, %v2694
    %v2747 = vpack.c.b16 %v2699, %v2695
    %v2748 = vpack.c.b16 %v2700, %v2696
    %v2749 = vpack.c.b16 %v2705, %v2701
    %v2750 = vpack.c.b16 %v2706, %v2702
    %v2751 = vpack.c.b16 %v2707, %v2703
    %v2752 = vpack.c.b16 %v2708, %v2704
    %v2753 = vpack.c.b16 %v2713, %v2709
    %v2754 = vpack.c.b16 %v2714, %v2710
    %v2755 = vpack.c.b16 %v2715, %v2711
    %v2756 = vpack.c.b16 %v2716, %v2712
    %v2757 = vpack.c.b16 %v2721, %v2717
    %v2758 = vpack.c.b16 %v2722, %v2718
    %v2759 = vpack.c.b16 %v2723, %v2719
    %v2760 = vpack.c.b16 %v2724, %v2720
    %v2761 = vpack.c.b16 %v2729, %v2725
    %v2762 = vpack.c.b16 %v2730, %v2726
    %v2763 = vpack.c.b16 %v2731, %v2727
    %v2764 = vpack.c.b16 %v2732, %v2728
    %2797 = vmatprep.subr.bf16.mxu0 %v2734
    %2798 = vmatpush1.bf16.msra.mxu0 %v2733
    %2799 = vmatprep.subr.bf16.mxu0 %v2738
    %2800 = vmatpush1.bf16.msra.mxu0 %v2737
    %2801 = vmatprep.subr.bf16.mxu0 %v2742
    %2802 = vmatpush1.bf16.msra.mxu0 %v2741
    %2803 = vmatprep.subr.bf16.mxu0 %v2746
    %2804 = vmatpush1.bf16.msra.mxu0 %v2745
    %2805 = vmatprep.subr.bf16.mxu0 %v2750
    %2806 = vmatpush1.bf16.msra.mxu0 %v2749
    %2807 = vmatprep.subr.bf16.mxu0 %v2754
    %2808 = vmatpush1.bf16.msra.mxu0 %v2753
    %2809 = vmatprep.subr.bf16.mxu0 %v2758
    %2810 = vmatpush1.bf16.msra.mxu0 %v2757
    %2811 = vmatprep.subr.bf16.mxu0 %v2762
    %2812 = vmatpush1.bf16.msra.mxu0 %v2761
    %2813 = vmatprep.subr.bf16.mxu0 0
    %2814 = vmatpush1.bf16.msra.mxu0 0
    %2815 = vmatprep.subr.bf16.mxu0 0
    %2816 = vmatpush1.bf16.msra.mxu0 0
    %2817 = vmatprep.subr.bf16.mxu0 0
    %2818 = vmatpush1.bf16.msra.mxu0 0
    %2819 = vmatprep.subr.bf16.mxu0 0
    %2820 = vmatpush1.bf16.msra.mxu0 0
    %2821 = vmatprep.subr.bf16.mxu0 0
    %2822 = vmatpush1.bf16.msra.mxu0 0
    %2823 = vmatprep.subr.bf16.mxu0 0
    %2824 = vmatpush1.bf16.msra.mxu0 0
    %2825 = vmatprep.subr.bf16.mxu0 0
    %2826 = vmatpush1.bf16.msra.mxu0 0
    %2827 = vmatprep.subr.bf16.mxu0 0
    %2828 = vmatpush1.bf16.msra.mxu0 0
    %2829 = vmatprep.mubr.bf16.mxu0 0
    %2830 = vmatmul.mubr.bf16.gmra.mrb[0].mxu0 %v2579
    %v2831 = vpop.f32.mrb[0].mxu0
    %v2832 = vadd.f32 %v2620, %v2831
    %v2833 = vpop.f32.mrb[0].mxu0
    %v2834 = vadd.f32 %v2624, %v2833
    %v2835 = vpop.f32.mrb[0].mxu0
    %v2836 = vadd.f32 %v2620, %v2835
    %v2837 = vpop.f32.mrb[0].mxu0
    %v2838 = vadd.f32 %v2624, %v2837
    %2839 = vmatprep.mubr.bf16.mxu0 0
    %2840 = vmatmul.mubr.bf16.gmra.mrb[0].mxu0 %v2580
    %v2841 = vpop.f32.mrb[0].mxu0
    %v2842 = vadd.f32 %v2620, %v2841
    %v2843 = vpop.f32.mrb[0].mxu0
    %v2844 = vadd.f32 %v2624, %v2843
    %v2845 = vpop.f32.mrb[0].mxu0
    %v2846 = vadd.f32 %v2620, %v2845
    %v2847 = vpop.f32.mrb[0].mxu0
    %v2848 = vadd.f32 %v2624, %v2847
    %2849 = vmatprep.mubr.bf16.mxu0 0
    %2850 = vmatmul.mubr.bf16.gmra.mrb[0].mxu0 %v2581
    %v2851 = vpop.f32.mrb[0].mxu0
    %v2852 = vadd.f32 %v2620, %v2851
    %v2853 = vpop.f32.mrb[0].mxu0
    %v2854 = vadd.f32 %v2624, %v2853
    %v2855 = vpop.f32.mrb[0].mxu0
    %v2856 = vadd.f32 %v2620, %v2855
    %v2857 = vpop.f32.mrb[0].mxu0
    %v2858 = vadd.f32 %v2624, %v2857
    %2859 = vmatprep.mubr.bf16.mxu0 0
    %2860 = vmatmul.mubr.bf16.gmra.mrb[0].mxu0 %v2582
    %v2861 = vpop.f32.mrb[0].mxu0
    %v2862 = vadd.f32 %v2620, %v2861
    %v2863 = vpop.f32.mrb[0].mxu0
    %v2864 = vadd.f32 %v2624, %v2863
    %v2865 = vpop.f32.mrb[0].mxu0
    %v2866 = vadd.f32 %v2620, %v2865
    %v2867 = vpop.f32.mrb[0].mxu0
    %v2868 = vadd.f32 %v2624, %v2867
    %2869 = vdwg.mxu0
    %2870 = vmatprep.subr.bf16.mxu0 %v2736
    %2871 = vmatpush1.bf16.msra.mxu0 %v2735
    %2872 = vmatprep.subr.bf16.mxu0 %v2740
    %2873 = vmatpush1.bf16.msra.mxu0 %v2739
    %2874 = vmatprep.subr.bf16.mxu0 %v2744
    %2875 = vmatpush1.bf16.msra.mxu0 %v2743
    %2876 = vmatprep.subr.bf16.mxu0 %v2748
    %2877 = vmatpush1.bf16.msra.mxu0 %v2747
    %2878 = vmatprep.subr.bf16.mxu0 %v2752
    %2879 = vmatpush1.bf16.msra.mxu0 %v2751
    %2880 = vmatprep.subr.bf16.mxu0 %v2756
    %2881 = vmatpush1.bf16.msra.mxu0 %v2755
    %2882 = vmatprep.subr.bf16.mxu0 %v2760
    %2883 = vmatpush1.bf16.msra.mxu0 %v2759
    %2884 = vmatprep.subr.bf16.mxu0 %v2764
    %2885 = vmatpush1.bf16.msra.mxu0 %v2763
    %2886 = vmatprep.subr.bf16.mxu0 0
    %2887 = vmatpush1.bf16.msra.mxu0 0
    %2888 = vmatprep.subr.bf16.mxu0 0
    %2889 = vmatpush1.bf16.msra.mxu0 0
    %2890 = vmatprep.subr.bf16.mxu0 0
    %2891 = vmatpush1.bf16.msra.mxu0 0
    %2892 = vmatprep.subr.bf16.mxu0 0
    %2893 = vmatpush1.bf16.msra.mxu0 0
    %2894 = vmatprep.subr.bf16.mxu0 0
    %2895 = vmatpush1.bf16.msra.mxu0 0
    %2896 = vmatprep.subr.bf16.mxu0 0
    %2897 = vmatpush1.bf16.msra.mxu0 0
    %2898 = vmatprep.subr.bf16.mxu0 0
    %2899 = vmatpush1.bf16.msra.mxu0 0
    %2900 = vmatprep.subr.bf16.mxu0 0
    %2901 = vmatpush1.bf16.msra.mxu0 0
    %2902 = vmatprep.mubr.bf16.mxu0 0
    %2903 = vmatmul.mubr.bf16.gmra.mrb[0].mxu0 %v2579
    %v2904 = vpop.f32.mrb[0].mxu0
    %v2905 = vadd.f32 %v2628, %v2904
    %v2906 = vpop.f32.mrb[0].mxu0
    %v2907 = vadd.f32 %v2632, %v2906
    %v2908 = vpop.f32.mrb[0].mxu0
    %v2909 = vadd.f32 %v2628, %v2908
    %v2910 = vpop.f32.mrb[0].mxu0
    %v2911 = vadd.f32 %v2632, %v2910
    %2912 = vmatprep.mubr.bf16.mxu0 0
    %2913 = vmatmul.mubr.bf16.gmra.mrb[0].mxu0 %v2580
    %v2914 = vpop.f32.mrb[0].mxu0
    %v2915 = vadd.f32 %v2628, %v2914
    %v2916 = vpop.f32.mrb[0].mxu0
    %v2917 = vadd.f32 %v2632, %v2916
    %v2918 = vpop.f32.mrb[0].mxu0
    %v2919 = vadd.f32 %v2628, %v2918
    %v2920 = vpop.f32.mrb[0].mxu0
    %v2921 = vadd.f32 %v2632, %v2920
    %2922 = vmatprep.mubr.bf16.mxu0 0
    %2923 = vmatmul.mubr.bf16.gmra.mrb[0].mxu0 %v2581
    %v2924 = vpop.f32.mrb[0].mxu0
    %v2925 = vadd.f32 %v2628, %v2924
    %v2926 = vpop.f32.mrb[0].mxu0
    %v2927 = vadd.f32 %v2632, %v2926
    %v2928 = vpop.f32.mrb[0].mxu0
    %v2929 = vadd.f32 %v2628, %v2928
    %v2930 = vpop.f32.mrb[0].mxu0
    %v2931 = vadd.f32 %v2632, %v2930
    %2932 = vmatprep.mubr.bf16.mxu0 0
    %2933 = vmatmul.mubr.bf16.gmra.mrb[0].mxu0 %v2582
    %v2934 = vpop.f32.mrb[0].mxu0
    %v2935 = vadd.f32 %v2628, %v2934
    %v2936 = vpop.f32.mrb[0].mxu0
    %v2937 = vadd.f32 %v2632, %v2936
    %v2938 = vpop.f32.mrb[0].mxu0
    %v2939 = vadd.f32 %v2628, %v2938
    %v2940 = vpop.f32.mrb[0].mxu0
    %v2941 = vadd.f32 %v2632, %v2940
    %2942 = vdwg.mxu0
    %2943 = vst [vmem:[#allocation3] sm:$0xff] %v2832
    %2944 = vst [vmem:[#allocation3 + $0x8] sm:$0xff] %v2834
    %2945 = vst [vmem:[#allocation3 + $0x10] sm:$0xff] %v2905
    %2946 = vst [vmem:[#allocation3 + $0x18] sm:$0xff] %v2907
    %2947 = vst [vmem:[#allocation3 + $0x20] sm:$0xff] %v2836
    %2948 = vst [vmem:[#allocation3 + $0x28] sm:$0xff] %v2838
    %2949 = vst [vmem:[#allocation3 + $0x30] sm:$0xff] %v2909
    %2950 = vst [vmem:[#allocation3 + $0x38] sm:$0xff] %v2911
    %2951 = vst [vmem:[#allocation3 + $0x40] sm:$0xff] %v2842
    %2952 = vst [vmem:[#allocation3 + $0x48] sm:$0xff] %v2844
    %2953 = vst [vmem:[#allocation3 + $0x50] sm:$0xff] %v2915
    %2954 = vst [vmem:[#allocation3 + $0x58] sm:$0xff] %v2917
    %2955 = vst [vmem:[#allocation3 + $0x60] sm:$0xff] %v2846
    %2956 = vst [vmem:[#allocation3 + $0x68] sm:$0xff] %v2848
    %2957 = vst [vmem:[#allocation3 + $0x70] sm:$0xff] %v2919
    %2958 = vst [vmem:[#allocation3 + $0x78] sm:$0xff] %v2921
    %2959 = vst [vmem:[#allocation3 + $0x80] sm:$0xff] %v2852
    %2960 = vst [vmem:[#allocation3 + $0x88] sm:$0xff] %v2854
    %2961 = vst [vmem:[#allocation3 + $0x90] sm:$0xff] %v2925
    %2962 = vst [vmem:[#allocation3 + $0x98] sm:$0xff] %v2927
    %2963 = vst [vmem:[#allocation3 + $0xa0] sm:$0xff] %v2856
    %2964 = vst [vmem:[#allocation3 + $0xa8] sm:$0xff] %v2858
    %2965 = vst [vmem:[#allocation3 + $0xb0] sm:$0xff] %v2929
    %2966 = vst [vmem:[#allocation3 + $0xb8] sm:$0xff] %v2931
    %2967 = vst [vmem:[#allocation3 + $0xc0] sm:$0xff] %v2862
    %2968 = vst [vmem:[#allocation3 + $0xc8] sm:$0xff] %v2864
    %2969 = vst [vmem:[#allocation3 + $0xd0] sm:$0xff] %v2935
    %2970 = vst [vmem:[#allocation3 + $0xd8] sm:$0xff] %v2937
    %2971 = vst [vmem:[#allocation3 + $0xe0] sm:$0xff] %v2866
    %2972 = vst [vmem:[#allocation3 + $0xe8] sm:$0xff] %v2868
    %2973 = vst [vmem:[#allocation3 + $0xf0] sm:$0xff] %v2939
    %2974 = vst [vmem:[#allocation3 + $0xf8] sm:$0xff] %v2941
    %v2975 = vld [vmem:[#allocation3] sm:$0xff]
    %v2976 = vld [vmem:[#allocation3 + $0x8] sm:$0xff]
    %v2977 = vld [vmem:[#allocation3 + $0x10] sm:$0xff]
    %v2978 = vld [vmem:[#allocation3 + $0x18] sm:$0xff]
    %v2979 = vld [vmem:[#allocation10] sm:$0xff]
    %v2980 = vld [vmem:[#allocation10 + $0x8] sm:$0xff]
    %v2981 = vld [vmem:[#allocation10 + $0x10] sm:$0xff]
    %v2982 = vld [vmem:[#allocation10 + $0x18] sm:$0xff]
    %v2983 = vld [vmem:[#allocation10 + $0x20] sm:$0xff]
    %v2984 = vld [vmem:[#allocation10 + $0x28] sm:$0xff]
    %v2985 = vld [vmem:[#allocation10 + $0x30] sm:$0xff]
    %v2986 = vld [vmem:[#allocation10 + $0x38] sm:$0xff]
    %v2987 = vld [vmem:[#allocation10 + $0x40] sm:$0xff]
    %v2988 = vld [vmem:[#allocation10 + $0x48] sm:$0xff]
    %v2989 = vld [vmem:[#allocation10 + $0x50] sm:$0xff]
    %v2990 = vld [vmem:[#allocation10 + $0x58] sm:$0xff]
    %v2991 = vld [vmem:[#allocation10 + $0x60] sm:$0xff]
    %v2992 = vld [vmem:[#allocation10 + $0x68] sm:$0xff]
    %v2993 = vld [vmem:[#allocation10 + $0x70] sm:$0xff]
    %v2994 = vld [vmem:[#allocation10 + $0x78] sm:$0xff]
    %v2995 = vld [vmem:[#allocation10 + $0x80] sm:$0xff]
    %v2996 = vld [vmem:[#allocation10 + $0x88] sm:$0xff]
    %v2997 = vld [vmem:[#allocation10 + $0x90] sm:$0xff]
    %v2998 = vld [vmem:[#allocation10 + $0x98] sm:$0xff]
    %v2999 = vld [vmem:[#allocation10 + $0xa0] sm:$0xff]
    %v3000 = vld [vmem:[#allocation10 + $0xa8] sm:$0xff]
    %v3001 = vld [vmem:[#allocation10 + $0xb0] sm:$0xff]
    %v3002 = vld [vmem:[#allocation10 + $0xb8] sm:$0xff]
    %v3003 = vld [vmem:[#allocation10 + $0xc0] sm:$0xff]
    %v3004 = vld [vmem:[#allocation10 + $0xc8] sm:$0xff]
    %v3005 = vld [vmem:[#allocation10 + $0xd0] sm:$0xff]
    %v3006 = vld [vmem:[#allocation10 + $0xd8] sm:$0xff]
    %v3007 = vld [vmem:[#allocation10 + $0xe0] sm:$0xff]
    %v3008 = vld [vmem:[#allocation10 + $0xe8] sm:$0xff]
    %v3009 = vld [vmem:[#allocation10 + $0xf0] sm:$0xff]
    %v3010 = vld [vmem:[#allocation10 + $0xf8] sm:$0xff]
    %v3043 = vunpack.c.l.b16 %v2979
    %v3044 = vunpack.c.h.b16 %v2979
    %v3045 = vunpack.c.l.b16 %v2980
    %v3046 = vunpack.c.h.b16 %v2980
    %v3047 = vunpack.c.l.b16 %v2981
    %v3048 = vunpack.c.h.b16 %v2981
    %v3049 = vunpack.c.l.b16 %v2982
    %v3050 = vunpack.c.h.b16 %v2982
    %v3051 = vunpack.c.l.b16 %v2983
    %v3052 = vunpack.c.h.b16 %v2983
    %v3053 = vunpack.c.l.b16 %v2984
    %v3054 = vunpack.c.h.b16 %v2984
    %v3055 = vunpack.c.l.b16 %v2985
    %v3056 = vunpack.c.h.b16 %v2985
    %v3057 = vunpack.c.l.b16 %v2986
    %v3058 = vunpack.c.h.b16 %v2986
    %v3059 = vunpack.c.l.b16 %v2987
    %v3060 = vunpack.c.h.b16 %v2987
    %v3061 = vunpack.c.l.b16 %v2988
    %v3062 = vunpack.c.h.b16 %v2988
    %v3063 = vunpack.c.l.b16 %v2989
    %v3064 = vunpack.c.h.b16 %v2989
    %v3065 = vunpack.c.l.b16 %v2990
    %v3066 = vunpack.c.h.b16 %v2990
    %v3067 = vunpack.c.l.b16 %v2991
    %v3068 = vunpack.c.h.b16 %v2991
    %v3069 = vunpack.c.l.b16 %v2992
    %v3070 = vunpack.c.h.b16 %v2992
    %v3071 = vunpack.c.l.b16 %v2993
    %v3072 = vunpack.c.h.b16 %v2993
    %v3073 = vunpack.c.l.b16 %v2994
    %v3074 = vunpack.c.h.b16 %v2994
    %v3075 = vunpack.c.l.b16 %v2995
    %v3076 = vunpack.c.h.b16 %v2995
    %v3077 = vunpack.c.l.b16 %v2996
    %v3078 = vunpack.c.h.b16 %v2996
    %v3079 = vunpack.c.l.b16 %v2997
    %v3080 = vunpack.c.h.b16 %v2997
    %v3081 = vunpack.c.l.b16 %v2998
    %v3082 = vunpack.c.h.b16 %v2998
    %v3083 = vunpack.c.l.b16 %v2999
    %v3084 = vunpack.c.h.b16 %v2999
    %v3085 = vunpack.c.l.b16 %v3000
    %v3086 = vunpack.c.h.b16 %v3000
    %v3087 = vunpack.c.l.b16 %v3001
    %v3088 = vunpack.c.h.b16 %v3001
    %v3089 = vunpack.c.l.b16 %v3002
    %v3090 = vunpack.c.h.b16 %v3002
    %v3091 = vunpack.c.l.b16 %v3003
    %v3092 = vunpack.c.h.b16 %v3003
    %v3093 = vunpack.c.l.b16 %v3004
    %v3094 = vunpack.c.h.b16 %v3004
    %v3095 = vunpack.c.l.b16 %v3005
    %v3096 = vunpack.c.h.b16 %v3005
    %v3097 = vunpack.c.l.b16 %v3006
    %v3098 = vunpack.c.h.b16 %v3006
    %v3099 = vunpack.c.l.b16 %v3007
    %v3100 = vunpack.c.h.b16 %v3007
    %v3101 = vunpack.c.l.b16 %v3008
    %v3102 = vunpack.c.h.b16 %v3008
    %v3103 = vunpack.c.l.b16 %v3009
    %v3104 = vunpack.c.h.b16 %v3009
    %v3105 = vunpack.c.l.b16 %v3010
    %v3106 = vunpack.c.h.b16 %v3010
    %v3107 = vpack.c.b16 %v3047, %v3043
    %v3108 = vpack.c.b16 %v3048, %v3044
    %v3109 = vpack.c.b16 %v3049, %v3045
    %v3110 = vpack.c.b16 %v3050, %v3046
    %v3111 = vpack.c.b16 %v3055, %v3051
    %v3112 = vpack.c.b16 %v3056, %v3052
    %v3113 = vpack.c.b16 %v3057, %v3053
    %v3114 = vpack.c.b16 %v3058, %v3054
    %v3115 = vpack.c.b16 %v3063, %v3059
    %v3116 = vpack.c.b16 %v3064, %v3060
    %v3117 = vpack.c.b16 %v3065, %v3061
    %v3118 = vpack.c.b16 %v3066, %v3062
    %v3119 = vpack.c.b16 %v3071, %v3067
    %v3120 = vpack.c.b16 %v3072, %v3068
    %v3121 = vpack.c.b16 %v3073, %v3069
    %v3122 = vpack.c.b16 %v3074, %v3070
    %v3123 = vpack.c.b16 %v3079, %v3075
    %v3124 = vpack.c.b16 %v3080, %v3076
    %v3125 = vpack.c.b16 %v3081, %v3077
    %v3126 = vpack.c.b16 %v3082, %v3078
    %v3127 = vpack.c.b16 %v3087, %v3083
    %v3128 = vpack.c.b16 %v3088, %v3084
    %v3129 = vpack.c.b16 %v3089, %v3085
    %v3130 = vpack.c.b16 %v3090, %v3086
    %v3131 = vpack.c.b16 %v3095, %v3091
    %v3132 = vpack.c.b16 %v3096, %v3092
    %v3133 = vpack.c.b16 %v3097, %v3093
    %v3134 = vpack.c.b16 %v3098, %v3094
    %v3135 = vpack.c.b16 %v3103, %v3099
    %v3136 = vpack.c.b16 %v3104, %v3100
    %v3137 = vpack.c.b16 %v3105, %v3101
    %v3138 = vpack.c.b16 %v3106, %v3102
    %3171 = vmatprep.subr.bf16.mxu0 %v3108
    %3172 = vmatpush1.bf16.msra.mxu0 %v3107
    %3173 = vmatprep.subr.bf16.mxu0 %v3112
    %3174 = vmatpush1.bf16.msra.mxu0 %v3111
    %3175 = vmatprep.subr.bf16.mxu0 %v3116
    %3176 = vmatpush1.bf16.msra.mxu0 %v3115
    %3177 = vmatprep.subr.bf16.mxu0 %v3120
    %3178 = vmatpush1.bf16.msra.mxu0 %v3119
    %3179 = vmatprep.subr.bf16.mxu0 %v3124
    %3180 = vmatpush1.bf16.msra.mxu0 %v3123
    %3181 = vmatprep.subr.bf16.mxu0 %v3128
    %3182 = vmatpush1.bf16.msra.mxu0 %v3127
    %3183 = vmatprep.subr.bf16.mxu0 %v3132
    %3184 = vmatpush1.bf16.msra.mxu0 %v3131
    %3185 = vmatprep.subr.bf16.mxu0 %v3136
    %3186 = vmatpush1.bf16.msra.mxu0 %v3135
    %3187 = vmatprep.subr.bf16.mxu0 0
    %3188 = vmatpush1.bf16.msra.mxu0 0
    %3189 = vmatprep.subr.bf16.mxu0 0
    %3190 = vmatpush1.bf16.msra.mxu0 0
    %3191 = vmatprep.subr.bf16.mxu0 0
    %3192 = vmatpush1.bf16.msra.mxu0 0
    %3193 = vmatprep.subr.bf16.mxu0 0
    %3194 = vmatpush1.bf16.msra.mxu0 0
    %3195 = vmatprep.subr.bf16.mxu0 0
    %3196 = vmatpush1.bf16.msra.mxu0 0
    %3197 = vmatprep.subr.bf16.mxu0 0
    %3198 = vmatpush1.bf16.msra.mxu0 0
    %3199 = vmatprep.subr.bf16.mxu0 0
    %3200 = vmatpush1.bf16.msra.mxu0 0
    %3201 = vmatprep.subr.bf16.mxu0 0
    %3202 = vmatpush1.bf16.msra.mxu0 0
    %3203 = vmatprep.mubr.bf16.mxu0 0
    %3204 = vmatmul.mubr.bf16.gmra.mrb[0].mxu0 0
    %v3205 = vpop.f32.mrb[0].mxu0
    %v3206 = vadd.f32 0.0, %v3205
    %v3207 = vpop.f32.mrb[0].mxu0
    %v3208 = vadd.f32 0.0, %v3207
    %v3209 = vpop.f32.mrb[0].mxu0
    %v3210 = vpop.f32.mrb[0].mxu0
    %3211 = vdwg.mxu0
    %3212 = vmatprep.subr.bf16.mxu0 %v3110
    %3213 = vmatpush1.bf16.msra.mxu0 %v3109
    %3214 = vmatprep.subr.bf16.mxu0 %v3114
    %3215 = vmatpush1.bf16.msra.mxu0 %v3113
    %3216 = vmatprep.subr.bf16.mxu0 %v3118
    %3217 = vmatpush1.bf16.msra.mxu0 %v3117
    %3218 = vmatprep.subr.bf16.mxu0 %v3122
    %3219 = vmatpush1.bf16.msra.mxu0 %v3121
    %3220 = vmatprep.subr.bf16.mxu0 %v3126
    %3221 = vmatpush1.bf16.msra.mxu0 %v3125
    %3222 = vmatprep.subr.bf16.mxu0 %v3130
    %3223 = vmatpush1.bf16.msra.mxu0 %v3129
    %3224 = vmatprep.subr.bf16.mxu0 %v3134
    %3225 = vmatpush1.bf16.msra.mxu0 %v3133
    %3226 = vmatprep.subr.bf16.mxu0 %v3138
    %3227 = vmatpush1.bf16.msra.mxu0 %v3137
    %3228 = vmatprep.subr.bf16.mxu0 0
    %3229 = vmatpush1.bf16.msra.mxu0 0
    %3230 = vmatprep.subr.bf16.mxu0 0
    %3231 = vmatpush1.bf16.msra.mxu0 0
    %3232 = vmatprep.subr.bf16.mxu0 0
    %3233 = vmatpush1.bf16.msra.mxu0 0
    %3234 = vmatprep.subr.bf16.mxu0 0
    %3235 = vmatpush1.bf16.msra.mxu0 0
    %3236 = vmatprep.subr.bf16.mxu0 0
    %3237 = vmatpush1.bf16.msra.mxu0 0
    %3238 = vmatprep.subr.bf16.mxu0 0
    %3239 = vmatpush1.bf16.msra.mxu0 0
    %3240 = vmatprep.subr.bf16.mxu0 0
    %3241 = vmatpush1.bf16.msra.mxu0 0
    %3242 = vmatprep.subr.bf16.mxu0 0
    %3243 = vmatpush1.bf16.msra.mxu0 0
    %3244 = vmatprep.mubr.bf16.mxu0 0
    %3245 = vmatmul.mubr.bf16.gmra.mrb[0].mxu0 0
    %v3246 = vpop.f32.mrb[0].mxu0
    %v3247 = vadd.f32 0.0, %v3246
    %v3248 = vpop.f32.mrb[0].mxu0
    %v3249 = vadd.f32 0.0, %v3248
    %v3250 = vpop.f32.mrb[0].mxu0
    %v3251 = vpop.f32.mrb[0].mxu0
    %3252 = vdwg.mxu0
    %v3253 = vadd.f32 %v2975, %v3206
    %v3254 = vadd.f32 %v2976, %v3208
    %v3255 = vadd.f32 %v2977, %v3247
    %v3256 = vadd.f32 %v2978, %v3249
    %v3257 = vxor.u32 %v3253, 2147483648
    %v3258 = vxor.u32 %v3254, 2147483648
    %v3259 = vmul.f32 %v3257, 1.442695
    %v3260 = vpow.pop %v3259
    %v3261 = vmul.f32 %v3258, 1.442695
    %v3262 = vpow.pop %v3261
    %v3263 = vadd.f32 %v3260, 1.0
    %v3264 = vadd.f32 %v3262, 1.0
    %v3265 = vrcp.pop %v3263
    %v3266 = vmul.f32 1.0, %v3265
    %v3267 = vrcp.pop %v3264
    %v3268 = vmul.f32 1.0, %v3267
    %v3269 = vtanh.pop %v3255
    %v3270 = vxor.u32 %v3256, 2147483648
    %v3271 = vmul.f32 %v3270, 1.442695
    %v3272 = vpow.pop %v3271
    %v3273 = vadd.f32 %v3272, 1.0
    %v3274 = vrcp.pop %v3273
    %v3275 = vmul.f32 1.0, %v3274
    %v3276 = vmul.f32 %v3268, 0.0
    %v3277 = vmul.f32 %v3266, %v3269
    %v3278 = vadd.f32 %v3276, %v3277
    %v3279 = vtanh.pop %v3278
    %v3280 = vmul.f32 %v3275, %v3279
    %v3281 = vpack.c.bf16 %v3280, %v3280
    %3282 = vst [vmem:[#allocation2] sm:$0xf] %v3281
    %v3283 = vld [vmem:[#allocation3 + $0x20] sm:$0xff]
    %v3284 = vld [vmem:[#allocation3 + $0x28] sm:$0xff]
    %v3285 = vld [vmem:[#allocation3 + $0x30] sm:$0xff]
    %v3286 = vld [vmem:[#allocation3 + $0x38] sm:$0xff]
    %v3287 = vld [vmem:[#allocation10] sm:$0xff]
    %v3288 = vld [vmem:[#allocation10 + $0x8] sm:$0xff]
    %v3289 = vld [vmem:[#allocation10 + $0x10] sm:$0xff]
    %v3290 = vld [vmem:[#allocation10 + $0x18] sm:$0xff]
    %v3291 = vld [vmem:[#allocation10 + $0x20] sm:$0xff]
    %v3292 = vld [vmem:[#allocation10 + $0x28] sm:$0xff]
    %v3293 = vld [vmem:[#allocation10 + $0x30] sm:$0xff]
    %v3294 = vld [vmem:[#allocation10 + $0x38] sm:$0xff]
    %v3295 = vld [vmem:[#allocation10 + $0x40] sm:$0xff]
    %v3296 = vld [vmem:[#allocation10 + $0x48] sm:$0xff]
    %v3297 = vld [vmem:[#allocation10 + $0x50] sm:$0xff]
    %v3298 = vld [vmem:[#allocation10 + $0x58] sm:$0xff]
    %v3299 = vld [vmem:[#allocation10 + $0x60] sm:$0xff]
    %v3300 = vld [vmem:[#allocation10 + $0x68] sm:$0xff]
    %v3301 = vld [vmem:[#allocation10 + $0x70] sm:$0xff]
    %v3302 = vld [vmem:[#allocation10 + $0x78] sm:$0xff]
    %v3303 = vld [vmem:[#allocation10 + $0x80] sm:$0xff]
    %v3304 = vld [vmem:[#allocation10 + $0x88] sm:$0xff]
    %v3305 = vld [vmem:[#allocation10 + $0x90] sm:$0xff]
    %v3306 = vld [vmem:[#allocation10 + $0x98] sm:$0xff]
    %v3307 = vld [vmem:[#allocation10 + $0xa0] sm:$0xff]
    %v3308 = vld [vmem:[#allocation10 + $0xa8] sm:$0xff]
    %v3309 = vld [vmem:[#allocation10 + $0xb0] sm:$0xff]
    %v3310 = vld [vmem:[#allocation10 + $0xb8] sm:$0xff]
    %v3311 = vld [vmem:[#allocation10 + $0xc0] sm:$0xff]
    %v3312 = vld [vmem:[#allocation10 + $0xc8] sm:$0xff]
    %v3313 = vld [vmem:[#allocation10 + $0xd0] sm:$0xff]
    %v3314 = vld [vmem:[#allocation10 + $0xd8] sm:$0xff]
    %v3315 = vld [vmem:[#allocation10 + $0xe0] sm:$0xff]
    %v3316 = vld [vmem:[#allocation10 + $0xe8] sm:$0xff]
    %v3317 = vld [vmem:[#allocation10 + $0xf0] sm:$0xff]
    %v3318 = vld [vmem:[#allocation10 + $0xf8] sm:$0xff]
    %v3351 = vunpack.c.l.b16 %v3287
    %v3352 = vunpack.c.h.b16 %v3287
    %v3353 = vunpack.c.l.b16 %v3288
    %v3354 = vunpack.c.h.b16 %v3288
    %v3355 = vunpack.c.l.b16 %v3289
    %v3356 = vunpack.c.h.b16 %v3289
    %v3357 = vunpack.c.l.b16 %v3290
    %v3358 = vunpack.c.h.b16 %v3290
    %v3359 = vunpack.c.l.b16 %v3291
    %v3360 = vunpack.c.h.b16 %v3291
    %v3361 = vunpack.c.l.b16 %v3292
    %v3362 = vunpack.c.h.b16 %v3292
    %v3363 = vunpack.c.l.b16 %v3293
    %v3364 = vunpack.c.h.b16 %v3293
    %v3365 = vunpack.c.l.b16 %v3294
    %v3366 = vunpack.c.h.b16 %v3294
    %v3367 = vunpack.c.l.b16 %v3295
    %v3368 = vunpack.c.h.b16 %v3295
    %v3369 = vunpack.c.l.b16 %v3296
    %v3370 = vunpack.c.h.b16 %v3296
    %v3371 = vunpack.c.l.b16 %v3297
    %v3372 = vunpack.c.h.b16 %v3297
    %v3373 = vunpack.c.l.b16 %v3298
    %v3374 = vunpack.c.h.b16 %v3298
    %v3375 = vunpack.c.l.b16 %v3299
    %v3376 = vunpack.c.h.b16 %v3299
    %v3377 = vunpack.c.l.b16 %v3300
    %v3378 = vunpack.c.h.b16 %v3300
    %v3379 = vunpack.c.l.b16 %v3301
    %v3380 = vunpack.c.h.b16 %v3301
    %v3381 = vunpack.c.l.b16 %v3302
    %v3382 = vunpack.c.h.b16 %v3302
    %v3383 = vunpack.c.l.b16 %v3303
    %v3384 = vunpack.c.h.b16 %v3303
    %v3385 = vunpack.c.l.b16 %v3304
    %v3386 = vunpack.c.h.b16 %v3304
    %v3387 = vunpack.c.l.b16 %v3305
    %v3388 = vunpack.c.h.b16 %v3305
    %v3389 = vunpack.c.l.b16 %v3306
    %v3390 = vunpack.c.h.b16 %v3306
    %v3391 = vunpack.c.l.b16 %v3307
    %v3392 = vunpack.c.h.b16 %v3307
    %v3393 = vunpack.c.l.b16 %v3308
    %v3394 = vunpack.c.h.b16 %v3308
    %v3395 = vunpack.c.l.b16 %v3309
    %v3396 = vunpack.c.h.b16 %v3309
    %v3397 = vunpack.c.l.b16 %v3310
    %v3398 = vunpack.c.h.b16 %v3310
    %v3399 = vunpack.c.l.b16 %v3311
    %v3400 = vunpack.c.h.b16 %v3311
    %v3401 = vunpack.c.l.b16 %v3312
    %v3402 = vunpack.c.h.b16 %v3312
    %v3403 = vunpack.c.l.b16 %v3313
    %v3404 = vunpack.c.h.b16 %v3313
    %v3405 = vunpack.c.l.b16 %v3314
    %v3406 = vunpack.c.h.b16 %v3314
    %v3407 = vunpack.c.l.b16 %v3315
    %v3408 = vunpack.c.h.b16 %v3315
    %v3409 = vunpack.c.l.b16 %v3316
    %v3410 = vunpack.c.h.b16 %v3316
    %v3411 = vunpack.c.l.b16 %v3317
    %v3412 = vunpack.c.h.b16 %v3317
    %v3413 = vunpack.c.l.b16 %v3318
    %v3414 = vunpack.c.h.b16 %v3318
    %v3415 = vpack.c.b16 %v3355, %v3351
    %v3416 = vpack.c.b16 %v3356, %v3352
    %v3417 = vpack.c.b16 %v3357, %v3353
    %v3418 = vpack.c.b16 %v3358, %v3354
    %v3419 = vpack.c.b16 %v3363, %v3359
    %v3420 = vpack.c.b16 %v3364, %v3360
    %v3421 = vpack.c.b16 %v3365, %v3361
    %v3422 = vpack.c.b16 %v3366, %v3362
    %v3423 = vpack.c.b16 %v3371, %v3367
    %v3424 = vpack.c.b16 %v3372, %v3368
    %v3425 = vpack.c.b16 %v3373, %v3369
    %v3426 = vpack.c.b16 %v3374, %v3370
    %v3427 = vpack.c.b16 %v3379, %v3375
    %v3428 = vpack.c.b16 %v3380, %v3376
    %v3429 = vpack.c.b16 %v3381, %v3377
    %v3430 = vpack.c.b16 %v3382, %v3378
    %v3431 = vpack.c.b16 %v3387, %v3383
    %v3432 = vpack.c.b16 %v3388, %v3384
    %v3433 = vpack.c.b16 %v3389, %v3385
    %v3434 = vpack.c.b16 %v3390, %v3386
    %v3435 = vpack.c.b16 %v3395, %v3391
    %v3436 = vpack.c.b16 %v3396, %v3392
    %v3437 = vpack.c.b16 %v3397, %v3393
    %v3438 = vpack.c.b16 %v3398, %v3394
    %v3439 = vpack.c.b16 %v3403, %v3399
    %v3440 = vpack.c.b16 %v3404, %v3400
    %v3441 = vpack.c.b16 %v3405, %v3401
    %v3442 = vpack.c.b16 %v3406, %v3402
    %v3443 = vpack.c.b16 %v3411, %v3407
    %v3444 = vpack.c.b16 %v3412, %v3408
    %v3445 = vpack.c.b16 %v3413, %v3409
    %v3446 = vpack.c.b16 %v3414, %v3410
    %3479 = vmatprep.subr.bf16.mxu0 %v3416
    %3480 = vmatpush1.bf16.msra.mxu0 %v3415
    %3481 = vmatprep.subr.bf16.mxu0 %v3420
    %3482 = vmatpush1.bf16.msra.mxu0 %v3419
    %3483 = vmatprep.subr.bf16.mxu0 %v3424
    %3484 = vmatpush1.bf16.msra.mxu0 %v3423
    %3485 = vmatprep.subr.bf16.mxu0 %v3428
    %3486 = vmatpush1.bf16.msra.mxu0 %v3427
    %3487 = vmatprep.subr.bf16.mxu0 %v3432
    %3488 = vmatpush1.bf16.msra.mxu0 %v3431
    %3489 = vmatprep.subr.bf16.mxu0 %v3436
    %3490 = vmatpush1.bf16.msra.mxu0 %v3435
    %3491 = vmatprep.subr.bf16.mxu0 %v3440
    %3492 = vmatpush1.bf16.msra.mxu0 %v3439
    %3493 = vmatprep.subr.bf16.mxu0 %v3444
    %3494 = vmatpush1.bf16.msra.mxu0 %v3443
    %3495 = vmatprep.subr.bf16.mxu0 0
    %3496 = vmatpush1.bf16.msra.mxu0 0
    %3497 = vmatprep.subr.bf16.mxu0 0
    %3498 = vmatpush1.bf16.msra.mxu0 0
    %3499 = vmatprep.subr.bf16.mxu0 0
    %3500 = vmatpush1.bf16.msra.mxu0 0
    %3501 = vmatprep.subr.bf16.mxu0 0
    %3502 = vmatpush1.bf16.msra.mxu0 0
    %3503 = vmatprep.subr.bf16.mxu0 0
    %3504 = vmatpush1.bf16.msra.mxu0 0
    %3505 = vmatprep.subr.bf16.mxu0 0
    %3506 = vmatpush1.bf16.msra.mxu0 0
    %3507 = vmatprep.subr.bf16.mxu0 0
    %3508 = vmatpush1.bf16.msra.mxu0 0
    %3509 = vmatprep.subr.bf16.mxu0 0
    %3510 = vmatpush1.bf16.msra.mxu0 0
    %3511 = vmatprep.mubr.bf16.mxu0 0
    %3512 = vmatmul.mubr.bf16.gmra.mrb[0].mxu0 %v3281
    %v3513 = vpop.f32.mrb[0].mxu0
    %v3514 = vadd.f32 0.0, %v3513
    %v3515 = vpop.f32.mrb[0].mxu0
    %v3516 = vadd.f32 0.0, %v3515
    %v3517 = vpop.f32.mrb[0].mxu0
    %v3518 = vpop.f32.mrb[0].mxu0
    %3519 = vdwg.mxu0
    %3520 = vmatprep.subr.bf16.mxu0 %v3418
    %3521 = vmatpush1.bf16.msra.mxu0 %v3417
    %3522 = vmatprep.subr.bf16.mxu0 %v3422
    %3523 = vmatpush1.bf16.msra.mxu0 %v3421
    %3524 = vmatprep.subr.bf16.mxu0 %v3426
    %3525 = vmatpush1.bf16.msra.mxu0 %v3425
    %3526 = vmatprep.subr.bf16.mxu0 %v3430
    %3527 = vmatpush1.bf16.msra.mxu0 %v3429
    %3528 = vmatprep.subr.bf16.mxu0 %v3434
    %3529 = vmatpush1.bf16.msra.mxu0 %v3433
    %3530 = vmatprep.subr.bf16.mxu0 %v3438
    %3531 = vmatpush1.bf16.msra.mxu0 %v3437
    %3532 = vmatprep.subr.bf16.mxu0 %v3442
    %3533 = vmatpush1.bf16.msra.mxu0 %v3441
    %3534 = vmatprep.subr.bf16.mxu0 %v3446
    %3535 = vmatpush1.bf16.msra.mxu0 %v3445
    %3536 = vmatprep.subr.bf16.mxu0 0
    %3537 = vmatpush1.bf16.msra.mxu0 0
    %3538 = vmatprep.subr.bf16.mxu0 0
    %3539 = vmatpush1.bf16.msra.mxu0 0
    %3540 = vmatprep.subr.bf16.mxu0 0
    %3541 = vmatpush1.bf16.msra.mxu0 0
    %3542 = vmatprep.subr.bf16.mxu0 0
    %3543 = vmatpush1.bf16.msra.mxu0 0
    %3544 = vmatprep.subr.bf16.mxu0 0
    %3545 = vmatpush1.bf16.msra.mxu0 0
    %3546 = vmatprep.subr.bf16.mxu0 0
    %3547 = vmatpush1.bf16.msra.mxu0 0
    %3548 = vmatprep.subr.bf16.mxu0 0
    %3549 = vmatpush1.bf16.msra.mxu0 0
    %3550 = vmatprep.subr.bf16.mxu0 0
    %3551 = vmatpush1.bf16.msra.mxu0 0
    %3552 = vmatprep.mubr.bf16.mxu0 0
    %3553 = vmatmul.mubr.bf16.gmra.mrb[0].mxu0 %v3281
    %v3554 = vpop.f32.mrb[0].mxu0
    %v3555 = vadd.f32 0.0, %v3554
    %v3556 = vpop.f32.mrb[0].mxu0
    %v3557 = vadd.f32 0.0, %v3556
    %v3558 = vpop.f32.mrb[0].mxu0
    %v3559 = vpop.f32.mrb[0].mxu0
    %3560 = vdwg.mxu0
    %v3561 = vadd.f32 %v3283, %v3514
    %v3562 = vadd.f32 %v3284, %v3516
    %v3563 = vadd.f32 %v3285, %v3555
    %v3564 = vadd.f32 %v3286, %v3557
    %v3565 = vxor.u32 %v3561, 2147483648
    %v3566 = vxor.u32 %v3562, 2147483648
    %v3567 = vmul.f32 %v3565, 1.442695
    %v3568 = vpow.pop %v3567
    %v3569 = vmul.f32 %v3566, 1.442695
    %v3570 = vpow.pop %v3569
    %v3571 = vadd.f32 %v3568, 1.0
    %v3572 = vadd.f32 %v3570, 1.0
    %v3573 = vrcp.pop %v3571
    %v3574 = vmul.f32 1.0, %v3573
    %v3575 = vrcp.pop %v3572
    %v3576 = vmul.f32 1.0, %v3575
    %v3577 = vtanh.pop %v3563
    %v3578 = vxor.u32 %v3564, 2147483648
    %v3579 = vmul.f32 %v3578, 1.442695
    %v3580 = vpow.pop %v3579
    %v3581 = vadd.f32 %v3580, 1.0
    %v3582 = vrcp.pop %v3581
    %v3583 = vmul.f32 1.0, %v3582
    %v3584 = vmul.f32 %v3576, %v3278
    %v3585 = vmul.f32 %v3574, %v3577
    %v3586 = vadd.f32 %v3584, %v3585
    %v3587 = vtanh.pop %v3586
    %v3588 = vmul.f32 %v3583, %v3587
    %v3589 = vpack.c.bf16 %v3588, %v3588
    %v3591 = vrot.slane %v3589, 4
    %3593 = vst [vmem:[#allocation2] sm:$0xf0] %v3591
    %v3594 = vld [vmem:[#allocation3 + $0x40] sm:$0xff]
    %v3595 = vld [vmem:[#allocation3 + $0x48] sm:$0xff]
    %v3596 = vld [vmem:[#allocation3 + $0x50] sm:$0xff]
    %v3597 = vld [vmem:[#allocation3 + $0x58] sm:$0xff]
    %v3598 = vld [vmem:[#allocation10] sm:$0xff]
    %v3599 = vld [vmem:[#allocation10 + $0x8] sm:$0xff]
    %v3600 = vld [vmem:[#allocation10 + $0x10] sm:$0xff]
    %v3601 = vld [vmem:[#allocation10 + $0x18] sm:$0xff]
    %v3602 = vld [vmem:[#allocation10 + $0x20] sm:$0xff]
    %v3603 = vld [vmem:[#allocation10 + $0x28] sm:$0xff]
    %v3604 = vld [vmem:[#allocation10 + $0x30] sm:$0xff]
    %v3605 = vld [vmem:[#allocation10 + $0x38] sm:$0xff]
    %v3606 = vld [vmem:[#allocation10 + $0x40] sm:$0xff]
    %v3607 = vld [vmem:[#allocation10 + $0x48] sm:$0xff]
    %v3608 = vld [vmem:[#allocation10 + $0x50] sm:$0xff]
    %v3609 = vld [vmem:[#allocation10 + $0x58] sm:$0xff]
    %v3610 = vld [vmem:[#allocation10 + $0x60] sm:$0xff]
    %v3611 = vld [vmem:[#allocation10 + $0x68] sm:$0xff]
    %v3612 = vld [vmem:[#allocation10 + $0x70] sm:$0xff]
    %v3613 = vld [vmem:[#allocation10 + $0x78] sm:$0xff]
    %v3614 = vld [vmem:[#allocation10 + $0x80] sm:$0xff]
    %v3615 = vld [vmem:[#allocation10 + $0x88] sm:$0xff]
    %v3616 = vld [vmem:[#allocation10 + $0x90] sm:$0xff]
    %v3617 = vld [vmem:[#allocation10 + $0x98] sm:$0xff]
    %v3618 = vld [vmem:[#allocation10 + $0xa0] sm:$0xff]
    %v3619 = vld [vmem:[#allocation10 + $0xa8] sm:$0xff]
    %v3620 = vld [vmem:[#allocation10 + $0xb0] sm:$0xff]
    %v3621 = vld [vmem:[#allocation10 + $0xb8] sm:$0xff]
    %v3622 = vld [vmem:[#allocation10 + $0xc0] sm:$0xff]
    %v3623 = vld [vmem:[#allocation10 + $0xc8] sm:$0xff]
    %v3624 = vld [vmem:[#allocation10 + $0xd0] sm:$0xff]
    %v3625 = vld [vmem:[#allocation10 + $0xd8] sm:$0xff]
    %v3626 = vld [vmem:[#allocation10 + $0xe0] sm:$0xff]
    %v3627 = vld [vmem:[#allocation10 + $0xe8] sm:$0xff]
    %v3628 = vld [vmem:[#allocation10 + $0xf0] sm:$0xff]
    %v3629 = vld [vmem:[#allocation10 + $0xf8] sm:$0xff]
    %v3662 = vunpack.c.l.b16 %v3598
    %v3663 = vunpack.c.h.b16 %v3598
    %v3664 = vunpack.c.l.b16 %v3599
    %v3665 = vunpack.c.h.b16 %v3599
    %v3666 = vunpack.c.l.b16 %v3600
    %v3667 = vunpack.c.h.b16 %v3600
    %v3668 = vunpack.c.l.b16 %v3601
    %v3669 = vunpack.c.h.b16 %v3601
    %v3670 = vunpack.c.l.b16 %v3602
    %v3671 = vunpack.c.h.b16 %v3602
    %v3672 = vunpack.c.l.b16 %v3603
    %v3673 = vunpack.c.h.b16 %v3603
    %v3674 = vunpack.c.l.b16 %v3604
    %v3675 = vunpack.c.h.b16 %v3604
    %v3676 = vunpack.c.l.b16 %v3605
    %v3677 = vunpack.c.h.b16 %v3605
    %v3678 = vunpack.c.l.b16 %v3606
    %v3679 = vunpack.c.h.b16 %v3606
    %v3680 = vunpack.c.l.b16 %v3607
    %v3681 = vunpack.c.h.b16 %v3607
    %v3682 = vunpack.c.l.b16 %v3608
    %v3683 = vunpack.c.h.b16 %v3608
    %v3684 = vunpack.c.l.b16 %v3609
    %v3685 = vunpack.c.h.b16 %v3609
    %v3686 = vunpack.c.l.b16 %v3610
    %v3687 = vunpack.c.h.b16 %v3610
    %v3688 = vunpack.c.l.b16 %v3611
    %v3689 = vunpack.c.h.b16 %v3611
    %v3690 = vunpack.c.l.b16 %v3612
    %v3691 = vunpack.c.h.b16 %v3612
    %v3692 = vunpack.c.l.b16 %v3613
    %v3693 = vunpack.c.h.b16 %v3613
    %v3694 = vunpack.c.l.b16 %v3614
    %v3695 = vunpack.c.h.b16 %v3614
    %v3696 = vunpack.c.l.b16 %v3615
    %v3697 = vunpack.c.h.b16 %v3615
    %v3698 = vunpack.c.l.b16 %v3616
    %v3699 = vunpack.c.h.b16 %v3616
    %v3700 = vunpack.c.l.b16 %v3617
    %v3701 = vunpack.c.h.b16 %v3617
    %v3702 = vunpack.c.l.b16 %v3618
    %v3703 = vunpack.c.h.b16 %v3618
    %v3704 = vunpack.c.l.b16 %v3619
    %v3705 = vunpack.c.h.b16 %v3619
    %v3706 = vunpack.c.l.b16 %v3620
    %v3707 = vunpack.c.h.b16 %v3620
    %v3708 = vunpack.c.l.b16 %v3621
    %v3709 = vunpack.c.h.b16 %v3621
    %v3710 = vunpack.c.l.b16 %v3622
    %v3711 = vunpack.c.h.b16 %v3622
    %v3712 = vunpack.c.l.b16 %v3623
    %v3713 = vunpack.c.h.b16 %v3623
    %v3714 = vunpack.c.l.b16 %v3624
    %v3715 = vunpack.c.h.b16 %v3624
    %v3716 = vunpack.c.l.b16 %v3625
    %v3717 = vunpack.c.h.b16 %v3625
    %v3718 = vunpack.c.l.b16 %v3626
    %v3719 = vunpack.c.h.b16 %v3626
    %v3720 = vunpack.c.l.b16 %v3627
    %v3721 = vunpack.c.h.b16 %v3627
    %v3722 = vunpack.c.l.b16 %v3628
    %v3723 = vunpack.c.h.b16 %v3628
    %v3724 = vunpack.c.l.b16 %v3629
    %v3725 = vunpack.c.h.b16 %v3629
    %v3726 = vpack.c.b16 %v3666, %v3662
    %v3727 = vpack.c.b16 %v3667, %v3663
    %v3728 = vpack.c.b16 %v3668, %v3664
    %v3729 = vpack.c.b16 %v3669, %v3665
    %v3730 = vpack.c.b16 %v3674, %v3670
    %v3731 = vpack.c.b16 %v3675, %v3671
    %v3732 = vpack.c.b16 %v3676, %v3672
    %v3733 = vpack.c.b16 %v3677, %v3673
    %v3734 = vpack.c.b16 %v3682, %v3678
    %v3735 = vpack.c.b16 %v3683, %v3679
    %v3736 = vpack.c.b16 %v3684, %v3680
    %v3737 = vpack.c.b16 %v3685, %v3681
    %v3738 = vpack.c.b16 %v3690, %v3686
    %v3739 = vpack.c.b16 %v3691, %v3687
    %v3740 = vpack.c.b16 %v3692, %v3688
    %v3741 = vpack.c.b16 %v3693, %v3689
    %v3742 = vpack.c.b16 %v3698, %v3694
    %v3743 = vpack.c.b16 %v3699, %v3695
    %v3744 = vpack.c.b16 %v3700, %v3696
    %v3745 = vpack.c.b16 %v3701, %v3697
    %v3746 = vpack.c.b16 %v3706, %v3702
    %v3747 = vpack.c.b16 %v3707, %v3703
    %v3748 = vpack.c.b16 %v3708, %v3704
    %v3749 = vpack.c.b16 %v3709, %v3705
    %v3750 = vpack.c.b16 %v3714, %v3710
    %v3751 = vpack.c.b16 %v3715, %v3711
    %v3752 = vpack.c.b16 %v3716, %v3712
    %v3753 = vpack.c.b16 %v3717, %v3713
    %v3754 = vpack.c.b16 %v3722, %v3718
    %v3755 = vpack.c.b16 %v3723, %v3719
    %v3756 = vpack.c.b16 %v3724, %v3720
    %v3757 = vpack.c.b16 %v3725, %v3721
    %3790 = vmatprep.subr.bf16.mxu0 %v3727
    %3791 = vmatpush1.bf16.msra.mxu0 %v3726
    %3792 = vmatprep.subr.bf16.mxu0 %v3731
    %3793 = vmatpush1.bf16.msra.mxu0 %v3730
    %3794 = vmatprep.subr.bf16.mxu0 %v3735
    %3795 = vmatpush1.bf16.msra.mxu0 %v3734
    %3796 = vmatprep.subr.bf16.mxu0 %v3739
    %3797 = vmatpush1.bf16.msra.mxu0 %v3738
    %3798 = vmatprep.subr.bf16.mxu0 %v3743
    %3799 = vmatpush1.bf16.msra.mxu0 %v3742
    %3800 = vmatprep.subr.bf16.mxu0 %v3747
    %3801 = vmatpush1.bf16.msra.mxu0 %v3746
    %3802 = vmatprep.subr.bf16.mxu0 %v3751
    %3803 = vmatpush1.bf16.msra.mxu0 %v3750
    %3804 = vmatprep.subr.bf16.mxu0 %v3755
    %3805 = vmatpush1.bf16.msra.mxu0 %v3754
    %3806 = vmatprep.subr.bf16.mxu0 0
    %3807 = vmatpush1.bf16.msra.mxu0 0
    %3808 = vmatprep.subr.bf16.mxu0 0
    %3809 = vmatpush1.bf16.msra.mxu0 0
    %3810 = vmatprep.subr.bf16.mxu0 0
    %3811 = vmatpush1.bf16.msra.mxu0 0
    %3812 = vmatprep.subr.bf16.mxu0 0
    %3813 = vmatpush1.bf16.msra.mxu0 0
    %3814 = vmatprep.subr.bf16.mxu0 0
    %3815 = vmatpush1.bf16.msra.mxu0 0
    %3816 = vmatprep.subr.bf16.mxu0 0
    %3817 = vmatpush1.bf16.msra.mxu0 0
    %3818 = vmatprep.subr.bf16.mxu0 0
    %3819 = vmatpush1.bf16.msra.mxu0 0
    %3820 = vmatprep.subr.bf16.mxu0 0
    %3821 = vmatpush1.bf16.msra.mxu0 0
    %3822 = vmatprep.mubr.bf16.mxu0 0
    %3823 = vmatmul.mubr.bf16.gmra.mrb[0].mxu0 %v3589
    %v3824 = vpop.f32.mrb[0].mxu0
    %v3825 = vadd.f32 0.0, %v3824
    %v3826 = vpop.f32.mrb[0].mxu0
    %v3827 = vadd.f32 0.0, %v3826
    %v3828 = vpop.f32.mrb[0].mxu0
    %v3829 = vpop.f32.mrb[0].mxu0
    %3830 = vdwg.mxu0
    %3831 = vmatprep.subr.bf16.mxu0 %v3729
    %3832 = vmatpush1.bf16.msra.mxu0 %v3728
    %3833 = vmatprep.subr.bf16.mxu0 %v3733
    %3834 = vmatpush1.bf16.msra.mxu0 %v3732
    %3835 = vmatprep.subr.bf16.mxu0 %v3737
    %3836 = vmatpush1.bf16.msra.mxu0 %v3736
    %3837 = vmatprep.subr.bf16.mxu0 %v3741
    %3838 = vmatpush1.bf16.msra.mxu0 %v3740
    %3839 = vmatprep.subr.bf16.mxu0 %v3745
    %3840 = vmatpush1.bf16.msra.mxu0 %v3744
    %3841 = vmatprep.subr.bf16.mxu0 %v3749
    %3842 = vmatpush1.bf16.msra.mxu0 %v3748
    %3843 = vmatprep.subr.bf16.mxu0 %v3753
    %3844 = vmatpush1.bf16.msra.mxu0 %v3752
    %3845 = vmatprep.subr.bf16.mxu0 %v3757
    %3846 = vmatpush1.bf16.msra.mxu0 %v3756
    %3847 = vmatprep.subr.bf16.mxu0 0
    %3848 = vmatpush1.bf16.msra.mxu0 0
    %3849 = vmatprep.subr.bf16.mxu0 0
    %3850 = vmatpush1.bf16.msra.mxu0 0
    %3851 = vmatprep.subr.bf16.mxu0 0
    %3852 = vmatpush1.bf16.msra.mxu0 0
    %3853 = vmatprep.subr.bf16.mxu0 0
    %3854 = vmatpush1.bf16.msra.mxu0 0
    %3855 = vmatprep.subr.bf16.mxu0 0
    %3856 = vmatpush1.bf16.msra.mxu0 0
    %3857 = vmatprep.subr.bf16.mxu0 0
    %3858 = vmatpush1.bf16.msra.mxu0 0
    %3859 = vmatprep.subr.bf16.mxu0 0
    %3860 = vmatpush1.bf16.msra.mxu0 0
    %3861 = vmatprep.subr.bf16.mxu0 0
    %3862 = vmatpush1.bf16.msra.mxu0 0
    %3863 = vmatprep.mubr.bf16.mxu0 0
    %3864 = vmatmul.mubr.bf16.gmra.mrb[0].mxu0 %v3589
    %v3865 = vpop.f32.mrb[0].mxu0
    %v3866 = vadd.f32 0.0, %v3865
    %v3867 = vpop.f32.mrb[0].mxu0
    %v3868 = vadd.f32 0.0, %v3867
    %v3869 = vpop.f32.mrb[0].mxu0
    %v3870 = vpop.f32.mrb[0].mxu0
    %3871 = vdwg.mxu0
    %v3872 = vadd.f32 %v3594, %v3825
    %v3873 = vadd.f32 %v3595, %v3827
    %v3874 = vadd.f32 %v3596, %v3866
    %v3875 = vadd.f32 %v3597, %v3868
    %v3876 = vxor.u32 %v3872, 2147483648
    %v3877 = vxor.u32 %v3873, 2147483648
    %v3878 = vmul.f32 %v3876, 1.442695
    %v3879 = vpow.pop %v3878
    %v3880 = vmul.f32 %v3877, 1.442695
    %v3881 = vpow.pop %v3880
    %v3882 = vadd.f32 %v3879, 1.0
    %v3883 = vadd.f32 %v3881, 1.0
    %v3884 = vrcp.pop %v3882
    %v3885 = vmul.f32 1.0, %v3884
    %v3886 = vrcp.pop %v3883
    %v3887 = vmul.f32 1.0, %v3886
    %v3888 = vtanh.pop %v3874
    %v3889 = vxor.u32 %v3875, 2147483648
    %v3890 = vmul.f32 %v3889, 1.442695
    %v3891 = vpow.pop %v3890
    %v3892 = vadd.f32 %v3891, 1.0
    %v3893 = vrcp.pop %v3892
    %v3894 = vmul.f32 1.0, %v3893
    %v3895 = vmul.f32 %v3887, %v3586
    %v3896 = vmul.f32 %v3885, %v3888
    %v3897 = vadd.f32 %v3895, %v3896
    %v3898 = vtanh.pop %v3897
    %v3899 = vmul.f32 %v3894, %v3898
    %v3900 = vpack.c.bf16 %v3899, %v3899
    %3901 = vst [vmem:[#allocation2 + $0x8] sm:$0xf] %v3900
    %v3902 = vld [vmem:[#allocation3 + $0x60] sm:$0xff]
    %v3903 = vld [vmem:[#allocation3 + $0x68] sm:$0xff]
    %v3904 = vld [vmem:[#allocation3 + $0x70] sm:$0xff]
    %v3905 = vld [vmem:[#allocation3 + $0x78] sm:$0xff]
    %v3906 = vld [vmem:[#allocation10] sm:$0xff]
    %v3907 = vld [vmem:[#allocation10 + $0x8] sm:$0xff]
    %v3908 = vld [vmem:[#allocation10 + $0x10] sm:$0xff]
    %v3909 = vld [vmem:[#allocation10 + $0x18] sm:$0xff]
    %v3910 = vld [vmem:[#allocation10 + $0x20] sm:$0xff]
    %v3911 = vld [vmem:[#allocation10 + $0x28] sm:$0xff]
    %v3912 = vld [vmem:[#allocation10 + $0x30] sm:$0xff]
    %v3913 = vld [vmem:[#allocation10 + $0x38] sm:$0xff]
    %v3914 = vld [vmem:[#allocation10 + $0x40] sm:$0xff]
    %v3915 = vld [vmem:[#allocation10 + $0x48] sm:$0xff]
    %v3916 = vld [vmem:[#allocation10 + $0x50] sm:$0xff]
    %v3917 = vld [vmem:[#allocation10 + $0x58] sm:$0xff]
    %v3918 = vld [vmem:[#allocation10 + $0x60] sm:$0xff]
    %v3919 = vld [vmem:[#allocation10 + $0x68] sm:$0xff]
    %v3920 = vld [vmem:[#allocation10 + $0x70] sm:$0xff]
    %v3921 = vld [vmem:[#allocation10 + $0x78] sm:$0xff]
    %v3922 = vld [vmem:[#allocation10 + $0x80] sm:$0xff]
    %v3923 = vld [vmem:[#allocation10 + $0x88] sm:$0xff]
    %v3924 = vld [vmem:[#allocation10 + $0x90] sm:$0xff]
    %v3925 = vld [vmem:[#allocation10 + $0x98] sm:$0xff]
    %v3926 = vld [vmem:[#allocation10 + $0xa0] sm:$0xff]
    %v3927 = vld [vmem:[#allocation10 + $0xa8] sm:$0xff]
    %v3928 = vld [vmem:[#allocation10 + $0xb0] sm:$0xff]
    %v3929 = vld [vmem:[#allocation10 + $0xb8] sm:$0xff]
    %v3930 = vld [vmem:[#allocation10 + $0xc0] sm:$0xff]
    %v3931 = vld [vmem:[#allocation10 + $0xc8] sm:$0xff]
    %v3932 = vld [vmem:[#allocation10 + $0xd0] sm:$0xff]
    %v3933 = vld [vmem:[#allocation10 + $0xd8] sm:$0xff]
    %v3934 = vld [vmem:[#allocation10 + $0xe0] sm:$0xff]
    %v3935 = vld [vmem:[#allocation10 + $0xe8] sm:$0xff]
    %v3936 = vld [vmem:[#allocation10 + $0xf0] sm:$0xff]
    %v3937 = vld [vmem:[#allocation10 + $0xf8] sm:$0xff]
    %v3970 = vunpack.c.l.b16 %v3906
    %v3971 = vunpack.c.h.b16 %v3906
    %v3972 = vunpack.c.l.b16 %v3907
    %v3973 = vunpack.c.h.b16 %v3907
    %v3974 = vunpack.c.l.b16 %v3908
    %v3975 = vunpack.c.h.b16 %v3908
    %v3976 = vunpack.c.l.b16 %v3909
    %v3977 = vunpack.c.h.b16 %v3909
    %v3978 = vunpack.c.l.b16 %v3910
    %v3979 = vunpack.c.h.b16 %v3910
    %v3980 = vunpack.c.l.b16 %v3911
    %v3981 = vunpack.c.h.b16 %v3911
    %v3982 = vunpack.c.l.b16 %v3912
    %v3983 = vunpack.c.h.b16 %v3912
    %v3984 = vunpack.c.l.b16 %v3913
    %v3985 = vunpack.c.h.b16 %v3913
    %v3986 = vunpack.c.l.b16 %v3914
    %v3987 = vunpack.c.h.b16 %v3914
    %v3988 = vunpack.c.l.b16 %v3915
    %v3989 = vunpack.c.h.b16 %v3915
    %v3990 = vunpack.c.l.b16 %v3916
    %v3991 = vunpack.c.h.b16 %v3916
    %v3992 = vunpack.c.l.b16 %v3917
    %v3993 = vunpack.c.h.b16 %v3917
    %v3994 = vunpack.c.l.b16 %v3918
    %v3995 = vunpack.c.h.b16 %v3918
    %v3996 = vunpack.c.l.b16 %v3919
    %v3997 = vunpack.c.h.b16 %v3919
    %v3998 = vunpack.c.l.b16 %v3920
    %v3999 = vunpack.c.h.b16 %v3920
    %v4000 = vunpack.c.l.b16 %v3921
    %v4001 = vunpack.c.h.b16 %v3921
    %v4002 = vunpack.c.l.b16 %v3922
    %v4003 = vunpack.c.h.b16 %v3922
    %v4004 = vunpack.c.l.b16 %v3923
    %v4005 = vunpack.c.h.b16 %v3923
    %v4006 = vunpack.c.l.b16 %v3924
    %v4007 = vunpack.c.h.b16 %v3924
    %v4008 = vunpack.c.l.b16 %v3925
    %v4009 = vunpack.c.h.b16 %v3925
    %v4010 = vunpack.c.l.b16 %v3926
    %v4011 = vunpack.c.h.b16 %v3926
    %v4012 = vunpack.c.l.b16 %v3927
    %v4013 = vunpack.c.h.b16 %v3927
    %v4014 = vunpack.c.l.b16 %v3928
    %v4015 = vunpack.c.h.b16 %v3928
    %v4016 = vunpack.c.l.b16 %v3929
    %v4017 = vunpack.c.h.b16 %v3929
    %v4018 = vunpack.c.l.b16 %v3930
    %v4019 = vunpack.c.h.b16 %v3930
    %v4020 = vunpack.c.l.b16 %v3931
    %v4021 = vunpack.c.h.b16 %v3931
    %v4022 = vunpack.c.l.b16 %v3932
    %v4023 = vunpack.c.h.b16 %v3932
    %v4024 = vunpack.c.l.b16 %v3933
    %v4025 = vunpack.c.h.b16 %v3933
    %v4026 = vunpack.c.l.b16 %v3934
    %v4027 = vunpack.c.h.b16 %v3934
    %v4028 = vunpack.c.l.b16 %v3935
    %v4029 = vunpack.c.h.b16 %v3935
    %v4030 = vunpack.c.l.b16 %v3936
    %v4031 = vunpack.c.h.b16 %v3936
    %v4032 = vunpack.c.l.b16 %v3937
    %v4033 = vunpack.c.h.b16 %v3937
    %v4034 = vpack.c.b16 %v3974, %v3970
    %v4035 = vpack.c.b16 %v3975, %v3971
    %v4036 = vpack.c.b16 %v3976, %v3972
    %v4037 = vpack.c.b16 %v3977, %v3973
    %v4038 = vpack.c.b16 %v3982, %v3978
    %v4039 = vpack.c.b16 %v3983, %v3979
    %v4040 = vpack.c.b16 %v3984, %v3980
    %v4041 = vpack.c.b16 %v3985, %v3981
    %v4042 = vpack.c.b16 %v3990, %v3986
    %v4043 = vpack.c.b16 %v3991, %v3987
    %v4044 = vpack.c.b16 %v3992, %v3988
    %v4045 = vpack.c.b16 %v3993, %v3989
    %v4046 = vpack.c.b16 %v3998, %v3994
    %v4047 = vpack.c.b16 %v3999, %v3995
    %v4048 = vpack.c.b16 %v4000, %v3996
    %v4049 = vpack.c.b16 %v4001, %v3997
    %v4050 = vpack.c.b16 %v4006, %v4002
    %v4051 = vpack.c.b16 %v4007, %v4003
    %v4052 = vpack.c.b16 %v4008, %v4004
    %v4053 = vpack.c.b16 %v4009, %v4005
    %v4054 = vpack.c.b16 %v4014, %v4010
    %v4055 = vpack.c.b16 %v4015, %v4011
    %v4056 = vpack.c.b16 %v4016, %v4012
    %v4057 = vpack.c.b16 %v4017, %v4013
    %v4058 = vpack.c.b16 %v4022, %v4018
    %v4059 = vpack.c.b16 %v4023, %v4019
    %v4060 = vpack.c.b16 %v4024, %v4020
    %v4061 = vpack.c.b16 %v4025, %v4021
    %v4062 = vpack.c.b16 %v4030, %v4026
    %v4063 = vpack.c.b16 %v4031, %v4027
    %v4064 = vpack.c.b16 %v4032, %v4028
    %v4065 = vpack.c.b16 %v4033, %v4029
    %4098 = vmatprep.subr.bf16.mxu0 %v4035
    %4099 = vmatpush1.bf16.msra.mxu0 %v4034
    %4100 = vmatprep.subr.bf16.mxu0 %v4039
    %4101 = vmatpush1.bf16.msra.mxu0 %v4038
    %4102 = vmatprep.subr.bf16.mxu0 %v4043
    %4103 = vmatpush1.bf16.msra.mxu0 %v4042
    %4104 = vmatprep.subr.bf16.mxu0 %v4047
    %4105 = vmatpush1.bf16.msra.mxu0 %v4046
    %4106 = vmatprep.subr.bf16.mxu0 %v4051
    %4107 = vmatpush1.bf16.msra.mxu0 %v4050
    %4108 = vmatprep.subr.bf16.mxu0 %v4055
    %4109 = vmatpush1.bf16.msra.mxu0 %v4054
    %4110 = vmatprep.subr.bf16.mxu0 %v4059
    %4111 = vmatpush1.bf16.msra.mxu0 %v4058
    %4112 = vmatprep.subr.bf16.mxu0 %v4063
    %4113 = vmatpush1.bf16.msra.mxu0 %v4062
    %4114 = vmatprep.subr.bf16.mxu0 0
    %4115 = vmatpush1.bf16.msra.mxu0 0
    %4116 = vmatprep.subr.bf16.mxu0 0
    %4117 = vmatpush1.bf16.msra.mxu0 0
    %4118 = vmatprep.subr.bf16.mxu0 0
    %4119 = vmatpush1.bf16.msra.mxu0 0
    %4120 = vmatprep.subr.bf16.mxu0 0
    %4121 = vmatpush1.bf16.msra.mxu0 0
    %4122 = vmatprep.subr.bf16.mxu0 0
    %4123 = vmatpush1.bf16.msra.mxu0 0
    %4124 = vmatprep.subr.bf16.mxu0 0
    %4125 = vmatpush1.bf16.msra.mxu0 0
    %4126 = vmatprep.subr.bf16.mxu0 0
    %4127 = vmatpush1.bf16.msra.mxu0 0
    %4128 = vmatprep.subr.bf16.mxu0 0
    %4129 = vmatpush1.bf16.msra.mxu0 0
    %4130 = vmatprep.mubr.bf16.mxu0 0
    %4131 = vmatmul.mubr.bf16.gmra.mrb[0].mxu0 %v3900
    %v4132 = vpop.f32.mrb[0].mxu0
    %v4133 = vadd.f32 0.0, %v4132
    %v4134 = vpop.f32.mrb[0].mxu0
    %v4135 = vadd.f32 0.0, %v4134
    %v4136 = vpop.f32.mrb[0].mxu0
    %v4137 = vpop.f32.mrb[0].mxu0
    %4138 = vdwg.mxu0
    %4139 = vmatprep.subr.bf16.mxu0 %v4037
    %4140 = vmatpush1.bf16.msra.mxu0 %v4036
    %4141 = vmatprep.subr.bf16.mxu0 %v4041
    %4142 = vmatpush1.bf16.msra.mxu0 %v4040
    %4143 = vmatprep.subr.bf16.mxu0 %v4045
    %4144 = vmatpush1.bf16.msra.mxu0 %v4044
    %4145 = vmatprep.subr.bf16.mxu0 %v4049
    %4146 = vmatpush1.bf16.msra.mxu0 %v4048
    %4147 = vmatprep.subr.bf16.mxu0 %v4053
    %4148 = vmatpush1.bf16.msra.mxu0 %v4052
    %4149 = vmatprep.subr.bf16.mxu0 %v4057
    %4150 = vmatpush1.bf16.msra.mxu0 %v4056
    %4151 = vmatprep.subr.bf16.mxu0 %v4061
    %4152 = vmatpush1.bf16.msra.mxu0 %v4060
    %4153 = vmatprep.subr.bf16.mxu0 %v4065
    %4154 = vmatpush1.bf16.msra.mxu0 %v4064
    %4155 = vmatprep.subr.bf16.mxu0 0
    %4156 = vmatpush1.bf16.msra.mxu0 0
    %4157 = vmatprep.subr.bf16.mxu0 0
    %4158 = vmatpush1.bf16.msra.mxu0 0
    %4159 = vmatprep.subr.bf16.mxu0 0
    %4160 = vmatpush1.bf16.msra.mxu0 0
    %4161 = vmatprep.subr.bf16.mxu0 0
    %4162 = vmatpush1.bf16.msra.mxu0 0
    %4163 = vmatprep.subr.bf16.mxu0 0
    %4164 = vmatpush1.bf16.msra.mxu0 0
    %4165 = vmatprep.subr.bf16.mxu0 0
    %4166 = vmatpush1.bf16.msra.mxu0 0
    %4167 = vmatprep.subr.bf16.mxu0 0
    %4168 = vmatpush1.bf16.msra.mxu0 0
    %4169 = vmatprep.subr.bf16.mxu0 0
    %4170 = vmatpush1.bf16.msra.mxu0 0
    %4171 = vmatprep.mubr.bf16.mxu0 0
    %4172 = vmatmul.mubr.bf16.gmra.mrb[0].mxu0 %v3900
    %v4173 = vpop.f32.mrb[0].mxu0
    %v4174 = vadd.f32 0.0, %v4173
    %v4175 = vpop.f32.mrb[0].mxu0
    %v4176 = vadd.f32 0.0, %v4175
    %v4177 = vpop.f32.mrb[0].mxu0
    %v4178 = vpop.f32.mrb[0].mxu0
    %4179 = vdwg.mxu0
    %v4180 = vadd.f32 %v3902, %v4133
    %v4181 = vadd.f32 %v3903, %v4135
    %v4182 = vadd.f32 %v3904, %v4174
    %v4183 = vadd.f32 %v3905, %v4176
    %v4184 = vxor.u32 %v4180, 2147483648
    %v4185 = vxor.u32 %v4181, 2147483648
    %v4186 = vmul.f32 %v4184, 1.442695
    %v4187 = vpow.pop %v4186
    %v4188 = vmul.f32 %v4185, 1.442695
    %v4189 = vpow.pop %v4188
    %v4190 = vadd.f32 %v4187, 1.0
    %v4191 = vadd.f32 %v4189, 1.0
    %v4192 = vrcp.pop %v4190
    %v4193 = vmul.f32 1.0, %v4192
    %v4194 = vrcp.pop %v4191
    %v4195 = vmul.f32 1.0, %v4194
    %v4196 = vtanh.pop %v4182
    %v4197 = vxor.u32 %v4183, 2147483648
    %v4198 = vmul.f32 %v4197, 1.442695
    %v4199 = vpow.pop %v4198
    %v4200 = vadd.f32 %v4199, 1.0
    %v4201 = vrcp.pop %v4200
    %v4202 = vmul.f32 1.0, %v4201
    %v4203 = vmul.f32 %v4195, %v3897
    %v4204 = vmul.f32 %v4193, %v4196
    %v4205 = vadd.f32 %v4203, %v4204
    %v4206 = vtanh.pop %v4205
    %v4207 = vmul.f32 %v4202, %v4206
    %v4208 = vpack.c.bf16 %v4207, %v4207
    %v4210 = vrot.slane %v4208, 4
    %4212 = vst [vmem:[#allocation2 + $0x8] sm:$0xf0] %v4210
    %v4213 = vld [vmem:[#allocation3 + $0x80] sm:$0xff]
    %v4214 = vld [vmem:[#allocation3 + $0x88] sm:$0xff]
    %v4215 = vld [vmem:[#allocation3 + $0x90] sm:$0xff]
    %v4216 = vld [vmem:[#allocation3 + $0x98] sm:$0xff]
    %v4217 = vld [vmem:[#allocation10] sm:$0xff]
    %v4218 = vld [vmem:[#allocation10 + $0x8] sm:$0xff]
    %v4219 = vld [vmem:[#allocation10 + $0x10] sm:$0xff]
    %v4220 = vld [vmem:[#allocation10 + $0x18] sm:$0xff]
    %v4221 = vld [vmem:[#allocation10 + $0x20] sm:$0xff]
    %v4222 = vld [vmem:[#allocation10 + $0x28] sm:$0xff]
    %v4223 = vld [vmem:[#allocation10 + $0x30] sm:$0xff]
    %v4224 = vld [vmem:[#allocation10 + $0x38] sm:$0xff]
    %v4225 = vld [vmem:[#allocation10 + $0x40] sm:$0xff]
    %v4226 = vld [vmem:[#allocation10 + $0x48] sm:$0xff]
    %v4227 = vld [vmem:[#allocation10 + $0x50] sm:$0xff]
    %v4228 = vld [vmem:[#allocation10 + $0x58] sm:$0xff]
    %v4229 = vld [vmem:[#allocation10 + $0x60] sm:$0xff]
    %v4230 = vld [vmem:[#allocation10 + $0x68] sm:$0xff]
    %v4231 = vld [vmem:[#allocation10 + $0x70] sm:$0xff]
    %v4232 = vld [vmem:[#allocation10 + $0x78] sm:$0xff]
    %v4233 = vld [vmem:[#allocation10 + $0x80] sm:$0xff]
    %v4234 = vld [vmem:[#allocation10 + $0x88] sm:$0xff]
    %v4235 = vld [vmem:[#allocation10 + $0x90] sm:$0xff]
    %v4236 = vld [vmem:[#allocation10 + $0x98] sm:$0xff]
    %v4237 = vld [vmem:[#allocation10 + $0xa0] sm:$0xff]
    %v4238 = vld [vmem:[#allocation10 + $0xa8] sm:$0xff]
    %v4239 = vld [vmem:[#allocation10 + $0xb0] sm:$0xff]
    %v4240 = vld [vmem:[#allocation10 + $0xb8] sm:$0xff]
    %v4241 = vld [vmem:[#allocation10 + $0xc0] sm:$0xff]
    %v4242 = vld [vmem:[#allocation10 + $0xc8] sm:$0xff]
    %v4243 = vld [vmem:[#allocation10 + $0xd0] sm:$0xff]
    %v4244 = vld [vmem:[#allocation10 + $0xd8] sm:$0xff]
    %v4245 = vld [vmem:[#allocation10 + $0xe0] sm:$0xff]
    %v4246 = vld [vmem:[#allocation10 + $0xe8] sm:$0xff]
    %v4247 = vld [vmem:[#allocation10 + $0xf0] sm:$0xff]
    %v4248 = vld [vmem:[#allocation10 + $0xf8] sm:$0xff]
    %v4281 = vunpack.c.l.b16 %v4217
    %v4282 = vunpack.c.h.b16 %v4217
    %v4283 = vunpack.c.l.b16 %v4218
    %v4284 = vunpack.c.h.b16 %v4218
    %v4285 = vunpack.c.l.b16 %v4219
    %v4286 = vunpack.c.h.b16 %v4219
    %v4287 = vunpack.c.l.b16 %v4220
    %v4288 = vunpack.c.h.b16 %v4220
    %v4289 = vunpack.c.l.b16 %v4221
    %v4290 = vunpack.c.h.b16 %v4221
    %v4291 = vunpack.c.l.b16 %v4222
    %v4292 = vunpack.c.h.b16 %v4222
    %v4293 = vunpack.c.l.b16 %v4223
    %v4294 = vunpack.c.h.b16 %v4223
    %v4295 = vunpack.c.l.b16 %v4224
    %v4296 = vunpack.c.h.b16 %v4224
    %v4297 = vunpack.c.l.b16 %v4225
    %v4298 = vunpack.c.h.b16 %v4225
    %v4299 = vunpack.c.l.b16 %v4226
    %v4300 = vunpack.c.h.b16 %v4226
    %v4301 = vunpack.c.l.b16 %v4227
    %v4302 = vunpack.c.h.b16 %v4227
    %v4303 = vunpack.c.l.b16 %v4228
    %v4304 = vunpack.c.h.b16 %v4228
    %v4305 = vunpack.c.l.b16 %v4229
    %v4306 = vunpack.c.h.b16 %v4229
    %v4307 = vunpack.c.l.b16 %v4230
    %v4308 = vunpack.c.h.b16 %v4230
    %v4309 = vunpack.c.l.b16 %v4231
    %v4310 = vunpack.c.h.b16 %v4231
    %v4311 = vunpack.c.l.b16 %v4232
    %v4312 = vunpack.c.h.b16 %v4232
    %v4313 = vunpack.c.l.b16 %v4233
    %v4314 = vunpack.c.h.b16 %v4233
    %v4315 = vunpack.c.l.b16 %v4234
    %v4316 = vunpack.c.h.b16 %v4234
    %v4317 = vunpack.c.l.b16 %v4235
    %v4318 = vunpack.c.h.b16 %v4235
    %v4319 = vunpack.c.l.b16 %v4236
    %v4320 = vunpack.c.h.b16 %v4236
    %v4321 = vunpack.c.l.b16 %v4237
    %v4322 = vunpack.c.h.b16 %v4237
    %v4323 = vunpack.c.l.b16 %v4238
    %v4324 = vunpack.c.h.b16 %v4238
    %v4325 = vunpack.c.l.b16 %v4239
    %v4326 = vunpack.c.h.b16 %v4239
    %v4327 = vunpack.c.l.b16 %v4240
    %v4328 = vunpack.c.h.b16 %v4240
    %v4329 = vunpack.c.l.b16 %v4241
    %v4330 = vunpack.c.h.b16 %v4241
    %v4331 = vunpack.c.l.b16 %v4242
    %v4332 = vunpack.c.h.b16 %v4242
    %v4333 = vunpack.c.l.b16 %v4243
    %v4334 = vunpack.c.h.b16 %v4243
    %v4335 = vunpack.c.l.b16 %v4244
    %v4336 = vunpack.c.h.b16 %v4244
    %v4337 = vunpack.c.l.b16 %v4245
    %v4338 = vunpack.c.h.b16 %v4245
    %v4339 = vunpack.c.l.b16 %v4246
    %v4340 = vunpack.c.h.b16 %v4246
    %v4341 = vunpack.c.l.b16 %v4247
    %v4342 = vunpack.c.h.b16 %v4247
    %v4343 = vunpack.c.l.b16 %v4248
    %v4344 = vunpack.c.h.b16 %v4248
    %v4345 = vpack.c.b16 %v4285, %v4281
    %v4346 = vpack.c.b16 %v4286, %v4282
    %v4347 = vpack.c.b16 %v4287, %v4283
    %v4348 = vpack.c.b16 %v4288, %v4284
    %v4349 = vpack.c.b16 %v4293, %v4289
    %v4350 = vpack.c.b16 %v4294, %v4290
    %v4351 = vpack.c.b16 %v4295, %v4291
    %v4352 = vpack.c.b16 %v4296, %v4292
    %v4353 = vpack.c.b16 %v4301, %v4297
    %v4354 = vpack.c.b16 %v4302, %v4298
    %v4355 = vpack.c.b16 %v4303, %v4299
    %v4356 = vpack.c.b16 %v4304, %v4300
    %v4357 = vpack.c.b16 %v4309, %v4305
    %v4358 = vpack.c.b16 %v4310, %v4306
    %v4359 = vpack.c.b16 %v4311, %v4307
    %v4360 = vpack.c.b16 %v4312, %v4308
    %v4361 = vpack.c.b16 %v4317, %v4313
    %v4362 = vpack.c.b16 %v4318, %v4314
    %v4363 = vpack.c.b16 %v4319, %v4315
    %v4364 = vpack.c.b16 %v4320, %v4316
    %v4365 = vpack.c.b16 %v4325, %v4321
    %v4366 = vpack.c.b16 %v4326, %v4322
    %v4367 = vpack.c.b16 %v4327, %v4323
    %v4368 = vpack.c.b16 %v4328, %v4324
    %v4369 = vpack.c.b16 %v4333, %v4329
    %v4370 = vpack.c.b16 %v4334, %v4330
    %v4371 = vpack.c.b16 %v4335, %v4331
    %v4372 = vpack.c.b16 %v4336, %v4332
    %v4373 = vpack.c.b16 %v4341, %v4337
    %v4374 = vpack.c.b16 %v4342, %v4338
    %v4375 = vpack.c.b16 %v4343, %v4339
    %v4376 = vpack.c.b16 %v4344, %v4340
    %4409 = vmatprep.subr.bf16.mxu0 %v4346
    %4410 = vmatpush1.bf16.msra.mxu0 %v4345
    %4411 = vmatprep.subr.bf16.mxu0 %v4350
    %4412 = vmatpush1.bf16.msra.mxu0 %v4349
    %4413 = vmatprep.subr.bf16.mxu0 %v4354
    %4414 = vmatpush1.bf16.msra.mxu0 %v4353
    %4415 = vmatprep.subr.bf16.mxu0 %v4358
    %4416 = vmatpush1.bf16.msra.mxu0 %v4357
    %4417 = vmatprep.subr.bf16.mxu0 %v4362
    %4418 = vmatpush1.bf16.msra.mxu0 %v4361
    %4419 = vmatprep.subr.bf16.mxu0 %v4366
    %4420 = vmatpush1.bf16.msra.mxu0 %v4365
    %4421 = vmatprep.subr.bf16.mxu0 %v4370
    %4422 = vmatpush1.bf16.msra.mxu0 %v4369
    %4423 = vmatprep.subr.bf16.mxu0 %v4374
    %4424 = vmatpush1.bf16.msra.mxu0 %v4373
    %4425 = vmatprep.subr.bf16.mxu0 0
    %4426 = vmatpush1.bf16.msra.mxu0 0
    %4427 = vmatprep.subr.bf16.mxu0 0
    %4428 = vmatpush1.bf16.msra.mxu0 0
    %4429 = vmatprep.subr.bf16.mxu0 0
    %4430 = vmatpush1.bf16.msra.mxu0 0
    %4431 = vmatprep.subr.bf16.mxu0 0
    %4432 = vmatpush1.bf16.msra.mxu0 0
    %4433 = vmatprep.subr.bf16.mxu0 0
    %4434 = vmatpush1.bf16.msra.mxu0 0
    %4435 = vmatprep.subr.bf16.mxu0 0
    %4436 = vmatpush1.bf16.msra.mxu0 0
    %4437 = vmatprep.subr.bf16.mxu0 0
    %4438 = vmatpush1.bf16.msra.mxu0 0
    %4439 = vmatprep.subr.bf16.mxu0 0
    %4440 = vmatpush1.bf16.msra.mxu0 0
    %4441 = vmatprep.mubr.bf16.mxu0 0
    %4442 = vmatmul.mubr.bf16.gmra.mrb[0].mxu0 %v4208
    %v4443 = vpop.f32.mrb[0].mxu0
    %v4444 = vadd.f32 0.0, %v4443
    %v4445 = vpop.f32.mrb[0].mxu0
    %v4446 = vadd.f32 0.0, %v4445
    %v4447 = vpop.f32.mrb[0].mxu0
    %v4448 = vpop.f32.mrb[0].mxu0
    %4449 = vdwg.mxu0
    %4450 = vmatprep.subr.bf16.mxu0 %v4348
    %4451 = vmatpush1.bf16.msra.mxu0 %v4347
    %4452 = vmatprep.subr.bf16.mxu0 %v4352
    %4453 = vmatpush1.bf16.msra.mxu0 %v4351
    %4454 = vmatprep.subr.bf16.mxu0 %v4356
    %4455 = vmatpush1.bf16.msra.mxu0 %v4355
    %4456 = vmatprep.subr.bf16.mxu0 %v4360
    %4457 = vmatpush1.bf16.msra.mxu0 %v4359
    %4458 = vmatprep.subr.bf16.mxu0 %v4364
    %4459 = vmatpush1.bf16.msra.mxu0 %v4363
    %4460 = vmatprep.subr.bf16.mxu0 %v4368
    %4461 = vmatpush1.bf16.msra.mxu0 %v4367
    %4462 = vmatprep.subr.bf16.mxu0 %v4372
    %4463 = vmatpush1.bf16.msra.mxu0 %v4371
    %4464 = vmatprep.subr.bf16.mxu0 %v4376
    %4465 = vmatpush1.bf16.msra.mxu0 %v4375
    %4466 = vmatprep.subr.bf16.mxu0 0
    %4467 = vmatpush1.bf16.msra.mxu0 0
    %4468 = vmatprep.subr.bf16.mxu0 0
    %4469 = vmatpush1.bf16.msra.mxu0 0
    %4470 = vmatprep.subr.bf16.mxu0 0
    %4471 = vmatpush1.bf16.msra.mxu0 0
    %4472 = vmatprep.subr.bf16.mxu0 0
    %4473 = vmatpush1.bf16.msra.mxu0 0
    %4474 = vmatprep.subr.bf16.mxu0 0
    %4475 = vmatpush1.bf16.msra.mxu0 0
    %4476 = vmatprep.subr.bf16.mxu0 0
    %4477 = vmatpush1.bf16.msra.mxu0 0
    %4478 = vmatprep.subr.bf16.mxu0 0
    %4479 = vmatpush1.bf16.msra.mxu0 0
    %4480 = vmatprep.subr.bf16.mxu0 0
    %4481 = vmatpush1.bf16.msra.mxu0 0
    %4482 = vmatprep.mubr.bf16.mxu0 0
    %4483 = vmatmul.mubr.bf16.gmra.mrb[0].mxu0 %v4208
    %v4484 = vpop.f32.mrb[0].mxu0
    %v4485 = vadd.f32 0.0, %v4484
    %v4486 = vpop.f32.mrb[0].mxu0
    %v4487 = vadd.f32 0.0, %v4486
    %v4488 = vpop.f32.mrb[0].mxu0
    %v4489 = vpop.f32.mrb[0].mxu0
    %4490 = vdwg.mxu0
    %v4491 = vadd.f32 %v4213, %v4444
    %v4492 = vadd.f32 %v4214, %v4446
    %v4493 = vadd.f32 %v4215, %v4485
    %v4494 = vadd.f32 %v4216, %v4487
    %v4495 = vxor.u32 %v4491, 2147483648
    %v4496 = vxor.u32 %v4492, 2147483648
    %v4497 = vmul.f32 %v4495, 1.442695
    %v4498 = vpow.pop %v4497
    %v4499 = vmul.f32 %v4496, 1.442695
    %v4500 = vpow.pop %v4499
    %v4501 = vadd.f32 %v4498, 1.0
    %v4502 = vadd.f32 %v4500, 1.0
    %v4503 = vrcp.pop %v4501
    %v4504 = vmul.f32 1.0, %v4503
    %v4505 = vrcp.pop %v4502
    %v4506 = vmul.f32 1.0, %v4505
    %v4507 = vtanh.pop %v4493
    %v4508 = vxor.u32 %v4494, 2147483648
    %v4509 = vmul.f32 %v4508, 1.442695
    %v4510 = vpow.pop %v4509
    %v4511 = vadd.f32 %v4510, 1.0
    %v4512 = vrcp.pop %v4511
    %v4513 = vmul.f32 1.0, %v4512
    %v4514 = vmul.f32 %v4506, %v4205
    %v4515 = vmul.f32 %v4504, %v4507
    %v4516 = vadd.f32 %v4514, %v4515
    %v4517 = vtanh.pop %v4516
    %v4518 = vmul.f32 %v4513, %v4517
    %v4519 = vpack.c.bf16 %v4518, %v4518
    %4520 = vst [vmem:[#allocation2 + $0x10] sm:$0xf] %v4519
    %v4521 = vld [vmem:[#allocation3 + $0xa0] sm:$0xff]
    %v4522 = vld [vmem:[#allocation3 + $0xa8] sm:$0xff]
    %v4523 = vld [vmem:[#allocation3 + $0xb0] sm:$0xff]
    %v4524 = vld [vmem:[#allocation3 + $0xb8] sm:$0xff]
    %v4525 = vld [vmem:[#allocation10] sm:$0xff]
    %v4526 = vld [vmem:[#allocation10 + $0x8] sm:$0xff]
    %v4527 = vld [vmem:[#allocation10 + $0x10] sm:$0xff]
    %v4528 = vld [vmem:[#allocation10 + $0x18] sm:$0xff]
    %v4529 = vld [vmem:[#allocation10 + $0x20] sm:$0xff]
    %v4530 = vld [vmem:[#allocation10 + $0x28] sm:$0xff]
    %v4531 = vld [vmem:[#allocation10 + $0x30] sm:$0xff]
    %v4532 = vld [vmem:[#allocation10 + $0x38] sm:$0xff]
    %v4533 = vld [vmem:[#allocation10 + $0x40] sm:$0xff]
    %v4534 = vld [vmem:[#allocation10 + $0x48] sm:$0xff]
    %v4535 = vld [vmem:[#allocation10 + $0x50] sm:$0xff]
    %v4536 = vld [vmem:[#allocation10 + $0x58] sm:$0xff]
    %v4537 = vld [vmem:[#allocation10 + $0x60] sm:$0xff]
    %v4538 = vld [vmem:[#allocation10 + $0x68] sm:$0xff]
    %v4539 = vld [vmem:[#allocation10 + $0x70] sm:$0xff]
    %v4540 = vld [vmem:[#allocation10 + $0x78] sm:$0xff]
    %v4541 = vld [vmem:[#allocation10 + $0x80] sm:$0xff]
    %v4542 = vld [vmem:[#allocation10 + $0x88] sm:$0xff]
    %v4543 = vld [vmem:[#allocation10 + $0x90] sm:$0xff]
    %v4544 = vld [vmem:[#allocation10 + $0x98] sm:$0xff]
    %v4545 = vld [vmem:[#allocation10 + $0xa0] sm:$0xff]
    %v4546 = vld [vmem:[#allocation10 + $0xa8] sm:$0xff]
    %v4547 = vld [vmem:[#allocation10 + $0xb0] sm:$0xff]
    %v4548 = vld [vmem:[#allocation10 + $0xb8] sm:$0xff]
    %v4549 = vld [vmem:[#allocation10 + $0xc0] sm:$0xff]
    %v4550 = vld [vmem:[#allocation10 + $0xc8] sm:$0xff]
    %v4551 = vld [vmem:[#allocation10 + $0xd0] sm:$0xff]
    %v4552 = vld [vmem:[#allocation10 + $0xd8] sm:$0xff]
    %v4553 = vld [vmem:[#allocation10 + $0xe0] sm:$0xff]
    %v4554 = vld [vmem:[#allocation10 + $0xe8] sm:$0xff]
    %v4555 = vld [vmem:[#allocation10 + $0xf0] sm:$0xff]
    %v4556 = vld [vmem:[#allocation10 + $0xf8] sm:$0xff]
    %v4589 = vunpack.c.l.b16 %v4525
    %v4590 = vunpack.c.h.b16 %v4525
    %v4591 = vunpack.c.l.b16 %v4526
    %v4592 = vunpack.c.h.b16 %v4526
    %v4593 = vunpack.c.l.b16 %v4527
    %v4594 = vunpack.c.h.b16 %v4527
    %v4595 = vunpack.c.l.b16 %v4528
    %v4596 = vunpack.c.h.b16 %v4528
    %v4597 = vunpack.c.l.b16 %v4529
    %v4598 = vunpack.c.h.b16 %v4529
    %v4599 = vunpack.c.l.b16 %v4530
    %v4600 = vunpack.c.h.b16 %v4530
    %v4601 = vunpack.c.l.b16 %v4531
    %v4602 = vunpack.c.h.b16 %v4531
    %v4603 = vunpack.c.l.b16 %v4532
    %v4604 = vunpack.c.h.b16 %v4532
    %v4605 = vunpack.c.l.b16 %v4533
    %v4606 = vunpack.c.h.b16 %v4533
    %v4607 = vunpack.c.l.b16 %v4534
    %v4608 = vunpack.c.h.b16 %v4534
    %v4609 = vunpack.c.l.b16 %v4535
    %v4610 = vunpack.c.h.b16 %v4535
    %v4611 = vunpack.c.l.b16 %v4536
    %v4612 = vunpack.c.h.b16 %v4536
    %v4613 = vunpack.c.l.b16 %v4537
    %v4614 = vunpack.c.h.b16 %v4537
    %v4615 = vunpack.c.l.b16 %v4538
    %v4616 = vunpack.c.h.b16 %v4538
    %v4617 = vunpack.c.l.b16 %v4539
    %v4618 = vunpack.c.h.b16 %v4539
    %v4619 = vunpack.c.l.b16 %v4540
    %v4620 = vunpack.c.h.b16 %v4540
    %v4621 = vunpack.c.l.b16 %v4541
    %v4622 = vunpack.c.h.b16 %v4541
    %v4623 = vunpack.c.l.b16 %v4542
    %v4624 = vunpack.c.h.b16 %v4542
    %v4625 = vunpack.c.l.b16 %v4543
    %v4626 = vunpack.c.h.b16 %v4543
    %v4627 = vunpack.c.l.b16 %v4544
    %v4628 = vunpack.c.h.b16 %v4544
    %v4629 = vunpack.c.l.b16 %v4545
    %v4630 = vunpack.c.h.b16 %v4545
    %v4631 = vunpack.c.l.b16 %v4546
    %v4632 = vunpack.c.h.b16 %v4546
    %v4633 = vunpack.c.l.b16 %v4547
    %v4634 = vunpack.c.h.b16 %v4547
    %v4635 = vunpack.c.l.b16 %v4548
    %v4636 = vunpack.c.h.b16 %v4548
    %v4637 = vunpack.c.l.b16 %v4549
    %v4638 = vunpack.c.h.b16 %v4549
    %v4639 = vunpack.c.l.b16 %v4550
    %v4640 = vunpack.c.h.b16 %v4550
    %v4641 = vunpack.c.l.b16 %v4551
    %v4642 = vunpack.c.h.b16 %v4551
    %v4643 = vunpack.c.l.b16 %v4552
    %v4644 = vunpack.c.h.b16 %v4552
    %v4645 = vunpack.c.l.b16 %v4553
    %v4646 = vunpack.c.h.b16 %v4553
    %v4647 = vunpack.c.l.b16 %v4554
    %v4648 = vunpack.c.h.b16 %v4554
    %v4649 = vunpack.c.l.b16 %v4555
    %v4650 = vunpack.c.h.b16 %v4555
    %v4651 = vunpack.c.l.b16 %v4556
    %v4652 = vunpack.c.h.b16 %v4556
    %v4653 = vpack.c.b16 %v4593, %v4589
    %v4654 = vpack.c.b16 %v4594, %v4590
    %v4655 = vpack.c.b16 %v4595, %v4591
    %v4656 = vpack.c.b16 %v4596, %v4592
    %v4657 = vpack.c.b16 %v4601, %v4597
    %v4658 = vpack.c.b16 %v4602, %v4598
    %v4659 = vpack.c.b16 %v4603, %v4599
    %v4660 = vpack.c.b16 %v4604, %v4600
    %v4661 = vpack.c.b16 %v4609, %v4605
    %v4662 = vpack.c.b16 %v4610, %v4606
    %v4663 = vpack.c.b16 %v4611, %v4607
    %v4664 = vpack.c.b16 %v4612, %v4608
    %v4665 = vpack.c.b16 %v4617, %v4613
    %v4666 = vpack.c.b16 %v4618, %v4614
    %v4667 = vpack.c.b16 %v4619, %v4615
    %v4668 = vpack.c.b16 %v4620, %v4616
    %v4669 = vpack.c.b16 %v4625, %v4621
    %v4670 = vpack.c.b16 %v4626, %v4622
    %v4671 = vpack.c.b16 %v4627, %v4623
    %v4672 = vpack.c.b16 %v4628, %v4624
    %v4673 = vpack.c.b16 %v4633, %v4629
    %v4674 = vpack.c.b16 %v4634, %v4630
    %v4675 = vpack.c.b16 %v4635, %v4631
    %v4676 = vpack.c.b16 %v4636, %v4632
    %v4677 = vpack.c.b16 %v4641, %v4637
    %v4678 = vpack.c.b16 %v4642, %v4638
    %v4679 = vpack.c.b16 %v4643, %v4639
    %v4680 = vpack.c.b16 %v4644, %v4640
    %v4681 = vpack.c.b16 %v4649, %v4645
    %v4682 = vpack.c.b16 %v4650, %v4646
    %v4683 = vpack.c.b16 %v4651, %v4647
    %v4684 = vpack.c.b16 %v4652, %v4648
    %4717 = vmatprep.subr.bf16.mxu0 %v4654
    %4718 = vmatpush1.bf16.msra.mxu0 %v4653
    %4719 = vmatprep.subr.bf16.mxu0 %v4658
    %4720 = vmatpush1.bf16.msra.mxu0 %v4657
    %4721 = vmatprep.subr.bf16.mxu0 %v4662
    %4722 = vmatpush1.bf16.msra.mxu0 %v4661
    %4723 = vmatprep.subr.bf16.mxu0 %v4666
    %4724 = vmatpush1.bf16.msra.mxu0 %v4665
    %4725 = vmatprep.subr.bf16.mxu0 %v4670
    %4726 = vmatpush1.bf16.msra.mxu0 %v4669
    %4727 = vmatprep.subr.bf16.mxu0 %v4674
    %4728 = vmatpush1.bf16.msra.mxu0 %v4673
    %4729 = vmatprep.subr.bf16.mxu0 %v4678
    %4730 = vmatpush1.bf16.msra.mxu0 %v4677
    %4731 = vmatprep.subr.bf16.mxu0 %v4682
    %4732 = vmatpush1.bf16.msra.mxu0 %v4681
    %4733 = vmatprep.subr.bf16.mxu0 0
    %4734 = vmatpush1.bf16.msra.mxu0 0
    %4735 = vmatprep.subr.bf16.mxu0 0
    %4736 = vmatpush1.bf16.msra.mxu0 0
    %4737 = vmatprep.subr.bf16.mxu0 0
    %4738 = vmatpush1.bf16.msra.mxu0 0
    %4739 = vmatprep.subr.bf16.mxu0 0
    %4740 = vmatpush1.bf16.msra.mxu0 0
    %4741 = vmatprep.subr.bf16.mxu0 0
    %4742 = vmatpush1.bf16.msra.mxu0 0
    %4743 = vmatprep.subr.bf16.mxu0 0
    %4744 = vmatpush1.bf16.msra.mxu0 0
    %4745 = vmatprep.subr.bf16.mxu0 0
    %4746 = vmatpush1.bf16.msra.mxu0 0
    %4747 = vmatprep.subr.bf16.mxu0 0
    %4748 = vmatpush1.bf16.msra.mxu0 0
    %4749 = vmatprep.mubr.bf16.mxu0 0
    %4750 = vmatmul.mubr.bf16.gmra.mrb[0].mxu0 %v4519
    %v4751 = vpop.f32.mrb[0].mxu0
    %v4752 = vadd.f32 0.0, %v4751
    %v4753 = vpop.f32.mrb[0].mxu0
    %v4754 = vadd.f32 0.0, %v4753
    %v4755 = vpop.f32.mrb[0].mxu0
    %v4756 = vpop.f32.mrb[0].mxu0
    %4757 = vdwg.mxu0
    %4758 = vmatprep.subr.bf16.mxu0 %v4656
    %4759 = vmatpush1.bf16.msra.mxu0 %v4655
    %4760 = vmatprep.subr.bf16.mxu0 %v4660
    %4761 = vmatpush1.bf16.msra.mxu0 %v4659
    %4762 = vmatprep.subr.bf16.mxu0 %v4664
    %4763 = vmatpush1.bf16.msra.mxu0 %v4663
    %4764 = vmatprep.subr.bf16.mxu0 %v4668
    %4765 = vmatpush1.bf16.msra.mxu0 %v4667
    %4766 = vmatprep.subr.bf16.mxu0 %v4672
    %4767 = vmatpush1.bf16.msra.mxu0 %v4671
    %4768 = vmatprep.subr.bf16.mxu0 %v4676
    %4769 = vmatpush1.bf16.msra.mxu0 %v4675
    %4770 = vmatprep.subr.bf16.mxu0 %v4680
    %4771 = vmatpush1.bf16.msra.mxu0 %v4679
    %4772 = vmatprep.subr.bf16.mxu0 %v4684
    %4773 = vmatpush1.bf16.msra.mxu0 %v4683
    %4774 = vmatprep.subr.bf16.mxu0 0
    %4775 = vmatpush1.bf16.msra.mxu0 0
    %4776 = vmatprep.subr.bf16.mxu0 0
    %4777 = vmatpush1.bf16.msra.mxu0 0
    %4778 = vmatprep.subr.bf16.mxu0 0
    %4779 = vmatpush1.bf16.msra.mxu0 0
    %4780 = vmatprep.subr.bf16.mxu0 0
    %4781 = vmatpush1.bf16.msra.mxu0 0
    %4782 = vmatprep.subr.bf16.mxu0 0
    %4783 = vmatpush1.bf16.msra.mxu0 0
    %4784 = vmatprep.subr.bf16.mxu0 0
    %4785 = vmatpush1.bf16.msra.mxu0 0
    %4786 = vmatprep.subr.bf16.mxu0 0
    %4787 = vmatpush1.bf16.msra.mxu0 0
    %4788 = vmatprep.subr.bf16.mxu0 0
    %4789 = vmatpush1.bf16.msra.mxu0 0
    %4790 = vmatprep.mubr.bf16.mxu0 0
    %4791 = vmatmul.mubr.bf16.gmra.mrb[0].mxu0 %v4519
    %v4792 = vpop.f32.mrb[0].mxu0
    %v4793 = vadd.f32 0.0, %v4792
    %v4794 = vpop.f32.mrb[0].mxu0
    %v4795 = vadd.f32 0.0, %v4794
    %v4796 = vpop.f32.mrb[0].mxu0
    %v4797 = vpop.f32.mrb[0].mxu0
    %4798 = vdwg.mxu0
    %v4799 = vadd.f32 %v4521, %v4752
    %v4800 = vadd.f32 %v4522, %v4754
    %v4801 = vadd.f32 %v4523, %v4793
    %v4802 = vadd.f32 %v4524, %v4795
    %v4803 = vxor.u32 %v4799, 2147483648
    %v4804 = vxor.u32 %v4800, 2147483648
    %v4805 = vmul.f32 %v4803, 1.442695
    %v4806 = vpow.pop %v4805
    %v4807 = vmul.f32 %v4804, 1.442695
    %v4808 = vpow.pop %v4807
    %v4809 = vadd.f32 %v4806, 1.0
    %v4810 = vadd.f32 %v4808, 1.0
    %v4811 = vrcp.pop %v4809
    %v4812 = vmul.f32 1.0, %v4811
    %v4813 = vrcp.pop %v4810
    %v4814 = vmul.f32 1.0, %v4813
    %v4815 = vtanh.pop %v4801
    %v4816 = vxor.u32 %v4802, 2147483648
    %v4817 = vmul.f32 %v4816, 1.442695
    %v4818 = vpow.pop %v4817
    %v4819 = vadd.f32 %v4818, 1.0
    %v4820 = vrcp.pop %v4819
    %v4821 = vmul.f32 1.0, %v4820
    %v4822 = vmul.f32 %v4814, %v4516
    %v4823 = vmul.f32 %v4812, %v4815
    %v4824 = vadd.f32 %v4822, %v4823
    %v4825 = vtanh.pop %v4824
    %v4826 = vmul.f32 %v4821, %v4825
    %v4827 = vpack.c.bf16 %v4826, %v4826
    %v4829 = vrot.slane %v4827, 4
    %4831 = vst [vmem:[#allocation2 + $0x10] sm:$0xf0] %v4829
    %v4832 = vld [vmem:[#allocation3 + $0xc0] sm:$0xff]
    %v4833 = vld [vmem:[#allocation3 + $0xc8] sm:$0xff]
    %v4834 = vld [vmem:[#allocation3 + $0xd0] sm:$0xff]
    %v4835 = vld [vmem:[#allocation3 + $0xd8] sm:$0xff]
    %v4836 = vld [vmem:[#allocation10] sm:$0xff]
    %v4837 = vld [vmem:[#allocation10 + $0x8] sm:$0xff]
    %v4838 = vld [vmem:[#allocation10 + $0x10] sm:$0xff]
    %v4839 = vld [vmem:[#allocation10 + $0x18] sm:$0xff]
    %v4840 = vld [vmem:[#allocation10 + $0x20] sm:$0xff]
    %v4841 = vld [vmem:[#allocation10 + $0x28] sm:$0xff]
    %v4842 = vld [vmem:[#allocation10 + $0x30] sm:$0xff]
    %v4843 = vld [vmem:[#allocation10 + $0x38] sm:$0xff]
    %v4844 = vld [vmem:[#allocation10 + $0x40] sm:$0xff]
    %v4845 = vld [vmem:[#allocation10 + $0x48] sm:$0xff]
    %v4846 = vld [vmem:[#allocation10 + $0x50] sm:$0xff]
    %v4847 = vld [vmem:[#allocation10 + $0x58] sm:$0xff]
    %v4848 = vld [vmem:[#allocation10 + $0x60] sm:$0xff]
    %v4849 = vld [vmem:[#allocation10 + $0x68] sm:$0xff]
    %v4850 = vld [vmem:[#allocation10 + $0x70] sm:$0xff]
    %v4851 = vld [vmem:[#allocation10 + $0x78] sm:$0xff]
    %v4852 = vld [vmem:[#allocation10 + $0x80] sm:$0xff]
    %v4853 = vld [vmem:[#allocation10 + $0x88] sm:$0xff]
    %v4854 = vld [vmem:[#allocation10 + $0x90] sm:$0xff]
    %v4855 = vld [vmem:[#allocation10 + $0x98] sm:$0xff]
    %v4856 = vld [vmem:[#allocation10 + $0xa0] sm:$0xff]
    %v4857 = vld [vmem:[#allocation10 + $0xa8] sm:$0xff]
    %v4858 = vld [vmem:[#allocation10 + $0xb0] sm:$0xff]
    %v4859 = vld [vmem:[#allocation10 + $0xb8] sm:$0xff]
    %v4860 = vld [vmem:[#allocation10 + $0xc0] sm:$0xff]
    %v4861 = vld [vmem:[#allocation10 + $0xc8] sm:$0xff]
    %v4862 = vld [vmem:[#allocation10 + $0xd0] sm:$0xff]
    %v4863 = vld [vmem:[#allocation10 + $0xd8] sm:$0xff]
    %v4864 = vld [vmem:[#allocation10 + $0xe0] sm:$0xff]
    %v4865 = vld [vmem:[#allocation10 + $0xe8] sm:$0xff]
    %v4866 = vld [vmem:[#allocation10 + $0xf0] sm:$0xff]
    %v4867 = vld [vmem:[#allocation10 + $0xf8] sm:$0xff]
    %v4900 = vunpack.c.l.b16 %v4836
    %v4901 = vunpack.c.h.b16 %v4836
    %v4902 = vunpack.c.l.b16 %v4837
    %v4903 = vunpack.c.h.b16 %v4837
    %v4904 = vunpack.c.l.b16 %v4838
    %v4905 = vunpack.c.h.b16 %v4838
    %v4906 = vunpack.c.l.b16 %v4839
    %v4907 = vunpack.c.h.b16 %v4839
    %v4908 = vunpack.c.l.b16 %v4840
    %v4909 = vunpack.c.h.b16 %v4840
    %v4910 = vunpack.c.l.b16 %v4841
    %v4911 = vunpack.c.h.b16 %v4841
    %v4912 = vunpack.c.l.b16 %v4842
    %v4913 = vunpack.c.h.b16 %v4842
    %v4914 = vunpack.c.l.b16 %v4843
    %v4915 = vunpack.c.h.b16 %v4843
    %v4916 = vunpack.c.l.b16 %v4844
    %v4917 = vunpack.c.h.b16 %v4844
    %v4918 = vunpack.c.l.b16 %v4845
    %v4919 = vunpack.c.h.b16 %v4845
    %v4920 = vunpack.c.l.b16 %v4846
    %v4921 = vunpack.c.h.b16 %v4846
    %v4922 = vunpack.c.l.b16 %v4847
    %v4923 = vunpack.c.h.b16 %v4847
    %v4924 = vunpack.c.l.b16 %v4848
    %v4925 = vunpack.c.h.b16 %v4848
    %v4926 = vunpack.c.l.b16 %v4849
    %v4927 = vunpack.c.h.b16 %v4849
    %v4928 = vunpack.c.l.b16 %v4850
    %v4929 = vunpack.c.h.b16 %v4850
    %v4930 = vunpack.c.l.b16 %v4851
    %v4931 = vunpack.c.h.b16 %v4851
    %v4932 = vunpack.c.l.b16 %v4852
    %v4933 = vunpack.c.h.b16 %v4852
    %v4934 = vunpack.c.l.b16 %v4853
    %v4935 = vunpack.c.h.b16 %v4853
    %v4936 = vunpack.c.l.b16 %v4854
    %v4937 = vunpack.c.h.b16 %v4854
    %v4938 = vunpack.c.l.b16 %v4855
    %v4939 = vunpack.c.h.b16 %v4855
    %v4940 = vunpack.c.l.b16 %v4856
    %v4941 = vunpack.c.h.b16 %v4856
    %v4942 = vunpack.c.l.b16 %v4857
    %v4943 = vunpack.c.h.b16 %v4857
    %v4944 = vunpack.c.l.b16 %v4858
    %v4945 = vunpack.c.h.b16 %v4858
    %v4946 = vunpack.c.l.b16 %v4859
    %v4947 = vunpack.c.h.b16 %v4859
    %v4948 = vunpack.c.l.b16 %v4860
    %v4949 = vunpack.c.h.b16 %v4860
    %v4950 = vunpack.c.l.b16 %v4861
    %v4951 = vunpack.c.h.b16 %v4861
    %v4952 = vunpack.c.l.b16 %v4862
    %v4953 = vunpack.c.h.b16 %v4862
    %v4954 = vunpack.c.l.b16 %v4863
    %v4955 = vunpack.c.h.b16 %v4863
    %v4956 = vunpack.c.l.b16 %v4864
    %v4957 = vunpack.c.h.b16 %v4864
    %v4958 = vunpack.c.l.b16 %v4865
    %v4959 = vunpack.c.h.b16 %v4865
    %v4960 = vunpack.c.l.b16 %v4866
    %v4961 = vunpack.c.h.b16 %v4866
    %v4962 = vunpack.c.l.b16 %v4867
    %v4963 = vunpack.c.h.b16 %v4867
    %v4964 = vpack.c.b16 %v4904, %v4900
    %v4965 = vpack.c.b16 %v4905, %v4901
    %v4966 = vpack.c.b16 %v4906, %v4902
    %v4967 = vpack.c.b16 %v4907, %v4903
    %v4968 = vpack.c.b16 %v4912, %v4908
    %v4969 = vpack.c.b16 %v4913, %v4909
    %v4970 = vpack.c.b16 %v4914, %v4910
    %v4971 = vpack.c.b16 %v4915, %v4911
    %v4972 = vpack.c.b16 %v4920, %v4916
    %v4973 = vpack.c.b16 %v4921, %v4917
    %v4974 = vpack.c.b16 %v4922, %v4918
    %v4975 = vpack.c.b16 %v4923, %v4919
    %v4976 = vpack.c.b16 %v4928, %v4924
    %v4977 = vpack.c.b16 %v4929, %v4925
    %v4978 = vpack.c.b16 %v4930, %v4926
    %v4979 = vpack.c.b16 %v4931, %v4927
    %v4980 = vpack.c.b16 %v4936, %v4932
    %v4981 = vpack.c.b16 %v4937, %v4933
    %v4982 = vpack.c.b16 %v4938, %v4934
    %v4983 = vpack.c.b16 %v4939, %v4935
    %v4984 = vpack.c.b16 %v4944, %v4940
    %v4985 = vpack.c.b16 %v4945, %v4941
    %v4986 = vpack.c.b16 %v4946, %v4942
    %v4987 = vpack.c.b16 %v4947, %v4943
    %v4988 = vpack.c.b16 %v4952, %v4948
    %v4989 = vpack.c.b16 %v4953, %v4949
    %v4990 = vpack.c.b16 %v4954, %v4950
    %v4991 = vpack.c.b16 %v4955, %v4951
    %v4992 = vpack.c.b16 %v4960, %v4956
    %v4993 = vpack.c.b16 %v4961, %v4957
    %v4994 = vpack.c.b16 %v4962, %v4958
    %v4995 = vpack.c.b16 %v4963, %v4959
    %5028 = vmatprep.subr.bf16.mxu0 %v4965
    %5029 = vmatpush1.bf16.msra.mxu0 %v4964
    %5030 = vmatprep.subr.bf16.mxu0 %v4969
    %5031 = vmatpush1.bf16.msra.mxu0 %v4968
    %5032 = vmatprep.subr.bf16.mxu0 %v4973
    %5033 = vmatpush1.bf16.msra.mxu0 %v4972
    %5034 = vmatprep.subr.bf16.mxu0 %v4977
    %5035 = vmatpush1.bf16.msra.mxu0 %v4976
    %5036 = vmatprep.subr.bf16.mxu0 %v4981
    %5037 = vmatpush1.bf16.msra.mxu0 %v4980
    %5038 = vmatprep.subr.bf16.mxu0 %v4985
    %5039 = vmatpush1.bf16.msra.mxu0 %v4984
    %5040 = vmatprep.subr.bf16.mxu0 %v4989
    %5041 = vmatpush1.bf16.msra.mxu0 %v4988
    %5042 = vmatprep.subr.bf16.mxu0 %v4993
    %5043 = vmatpush1.bf16.msra.mxu0 %v4992
    %5044 = vmatprep.subr.bf16.mxu0 0
    %5045 = vmatpush1.bf16.msra.mxu0 0
    %5046 = vmatprep.subr.bf16.mxu0 0
    %5047 = vmatpush1.bf16.msra.mxu0 0
    %5048 = vmatprep.subr.bf16.mxu0 0
    %5049 = vmatpush1.bf16.msra.mxu0 0
    %5050 = vmatprep.subr.bf16.mxu0 0
    %5051 = vmatpush1.bf16.msra.mxu0 0
    %5052 = vmatprep.subr.bf16.mxu0 0
    %5053 = vmatpush1.bf16.msra.mxu0 0
    %5054 = vmatprep.subr.bf16.mxu0 0
    %5055 = vmatpush1.bf16.msra.mxu0 0
    %5056 = vmatprep.subr.bf16.mxu0 0
    %5057 = vmatpush1.bf16.msra.mxu0 0
    %5058 = vmatprep.subr.bf16.mxu0 0
    %5059 = vmatpush1.bf16.msra.mxu0 0
    %5060 = vmatprep.mubr.bf16.mxu0 0
    %5061 = vmatmul.mubr.bf16.gmra.mrb[0].mxu0 %v4827
    %v5062 = vpop.f32.mrb[0].mxu0
    %v5063 = vadd.f32 0.0, %v5062
    %v5064 = vpop.f32.mrb[0].mxu0
    %v5065 = vadd.f32 0.0, %v5064
    %v5066 = vpop.f32.mrb[0].mxu0
    %v5067 = vpop.f32.mrb[0].mxu0
    %5068 = vdwg.mxu0
    %5069 = vmatprep.subr.bf16.mxu0 %v4967
    %5070 = vmatpush1.bf16.msra.mxu0 %v4966
    %5071 = vmatprep.subr.bf16.mxu0 %v4971
    %5072 = vmatpush1.bf16.msra.mxu0 %v4970
    %5073 = vmatprep.subr.bf16.mxu0 %v4975
    %5074 = vmatpush1.bf16.msra.mxu0 %v4974
    %5075 = vmatprep.subr.bf16.mxu0 %v4979
    %5076 = vmatpush1.bf16.msra.mxu0 %v4978
    %5077 = vmatprep.subr.bf16.mxu0 %v4983
    %5078 = vmatpush1.bf16.msra.mxu0 %v4982
    %5079 = vmatprep.subr.bf16.mxu0 %v4987
    %5080 = vmatpush1.bf16.msra.mxu0 %v4986
    %5081 = vmatprep.subr.bf16.mxu0 %v4991
    %5082 = vmatpush1.bf16.msra.mxu0 %v4990
    %5083 = vmatprep.subr.bf16.mxu0 %v4995
    %5084 = vmatpush1.bf16.msra.mxu0 %v4994
    %5085 = vmatprep.subr.bf16.mxu0 0
    %5086 = vmatpush1.bf16.msra.mxu0 0
    %5087 = vmatprep.subr.bf16.mxu0 0
    %5088 = vmatpush1.bf16.msra.mxu0 0
    %5089 = vmatprep.subr.bf16.mxu0 0
    %5090 = vmatpush1.bf16.msra.mxu0 0
    %5091 = vmatprep.subr.bf16.mxu0 0
    %5092 = vmatpush1.bf16.msra.mxu0 0
    %5093 = vmatprep.subr.bf16.mxu0 0
    %5094 = vmatpush1.bf16.msra.mxu0 0
    %5095 = vmatprep.subr.bf16.mxu0 0
    %5096 = vmatpush1.bf16.msra.mxu0 0
    %5097 = vmatprep.subr.bf16.mxu0 0
    %5098 = vmatpush1.bf16.msra.mxu0 0
    %5099 = vmatprep.subr.bf16.mxu0 0
    %5100 = vmatpush1.bf16.msra.mxu0 0
    %5101 = vmatprep.mubr.bf16.mxu0 0
    %5102 = vmatmul.mubr.bf16.gmra.mrb[0].mxu0 %v4827
    %v5103 = vpop.f32.mrb[0].mxu0
    %v5104 = vadd.f32 0.0, %v5103
    %v5105 = vpop.f32.mrb[0].mxu0
    %v5106 = vadd.f32 0.0, %v5105
    %v5107 = vpop.f32.mrb[0].mxu0
    %v5108 = vpop.f32.mrb[0].mxu0
    %5109 = vdwg.mxu0
    %v5110 = vadd.f32 %v4832, %v5063
    %v5111 = vadd.f32 %v4833, %v5065
    %v5112 = vadd.f32 %v4834, %v5104
    %v5113 = vadd.f32 %v4835, %v5106
    %v5114 = vxor.u32 %v5110, 2147483648
    %v5115 = vxor.u32 %v5111, 2147483648
    %v5116 = vmul.f32 %v5114, 1.442695
    %v5117 = vpow.pop %v5116
    %v5118 = vmul.f32 %v5115, 1.442695
    %v5119 = vpow.pop %v5118
    %v5120 = vadd.f32 %v5117, 1.0
    %v5121 = vadd.f32 %v5119, 1.0
    %v5122 = vrcp.pop %v5120
    %v5123 = vmul.f32 1.0, %v5122
    %v5124 = vrcp.pop %v5121
    %v5125 = vmul.f32 1.0, %v5124
    %v5126 = vtanh.pop %v5112
    %v5127 = vxor.u32 %v5113, 2147483648
    %v5128 = vmul.f32 %v5127, 1.442695
    %v5129 = vpow.pop %v5128
    %v5130 = vadd.f32 %v5129, 1.0
    %v5131 = vrcp.pop %v5130
    %v5132 = vmul.f32 1.0, %v5131
    %v5133 = vmul.f32 %v5125, %v4824
    %v5134 = vmul.f32 %v5123, %v5126
    %v5135 = vadd.f32 %v5133, %v5134
    %v5136 = vtanh.pop %v5135
    %v5137 = vmul.f32 %v5132, %v5136
    %v5138 = vpack.c.bf16 %v5137, %v5137
    %5139 = vst [vmem:[#allocation2 + $0x18] sm:$0xf] %v5138
    %v5140 = vld [vmem:[#allocation3 + $0xe0] sm:$0xff]
    %v5141 = vld [vmem:[#allocation3 + $0xe8] sm:$0xff]
    %v5142 = vld [vmem:[#allocation3 + $0xf0] sm:$0xff]
    %v5143 = vld [vmem:[#allocation3 + $0xf8] sm:$0xff]
    %v5144 = vld [vmem:[#allocation10] sm:$0xff]
    %v5145 = vld [vmem:[#allocation10 + $0x8] sm:$0xff]
    %v5146 = vld [vmem:[#allocation10 + $0x10] sm:$0xff]
    %v5147 = vld [vmem:[#allocation10 + $0x18] sm:$0xff]
    %v5148 = vld [vmem:[#allocation10 + $0x20] sm:$0xff]
    %v5149 = vld [vmem:[#allocation10 + $0x28] sm:$0xff]
    %v5150 = vld [vmem:[#allocation10 + $0x30] sm:$0xff]
    %v5151 = vld [vmem:[#allocation10 + $0x38] sm:$0xff]
    %v5152 = vld [vmem:[#allocation10 + $0x40] sm:$0xff]
    %v5153 = vld [vmem:[#allocation10 + $0x48] sm:$0xff]
    %v5154 = vld [vmem:[#allocation10 + $0x50] sm:$0xff]
    %v5155 = vld [vmem:[#allocation10 + $0x58] sm:$0xff]
    %v5156 = vld [vmem:[#allocation10 + $0x60] sm:$0xff]
    %v5157 = vld [vmem:[#allocation10 + $0x68] sm:$0xff]
    %v5158 = vld [vmem:[#allocation10 + $0x70] sm:$0xff]
    %v5159 = vld [vmem:[#allocation10 + $0x78] sm:$0xff]
    %v5160 = vld [vmem:[#allocation10 + $0x80] sm:$0xff]
    %v5161 = vld [vmem:[#allocation10 + $0x88] sm:$0xff]
    %v5162 = vld [vmem:[#allocation10 + $0x90] sm:$0xff]
    %v5163 = vld [vmem:[#allocation10 + $0x98] sm:$0xff]
    %v5164 = vld [vmem:[#allocation10 + $0xa0] sm:$0xff]
    %v5165 = vld [vmem:[#allocation10 + $0xa8] sm:$0xff]
    %v5166 = vld [vmem:[#allocation10 + $0xb0] sm:$0xff]
    %v5167 = vld [vmem:[#allocation10 + $0xb8] sm:$0xff]
    %v5168 = vld [vmem:[#allocation10 + $0xc0] sm:$0xff]
    %v5169 = vld [vmem:[#allocation10 + $0xc8] sm:$0xff]
    %v5170 = vld [vmem:[#allocation10 + $0xd0] sm:$0xff]
    %v5171 = vld [vmem:[#allocation10 + $0xd8] sm:$0xff]
    %v5172 = vld [vmem:[#allocation10 + $0xe0] sm:$0xff]
    %v5173 = vld [vmem:[#allocation10 + $0xe8] sm:$0xff]
    %v5174 = vld [vmem:[#allocation10 + $0xf0] sm:$0xff]
    %v5175 = vld [vmem:[#allocation10 + $0xf8] sm:$0xff]
    %v5208 = vunpack.c.l.b16 %v5144
    %v5209 = vunpack.c.h.b16 %v5144
    %v5210 = vunpack.c.l.b16 %v5145
    %v5211 = vunpack.c.h.b16 %v5145
    %v5212 = vunpack.c.l.b16 %v5146
    %v5213 = vunpack.c.h.b16 %v5146
    %v5214 = vunpack.c.l.b16 %v5147
    %v5215 = vunpack.c.h.b16 %v5147
    %v5216 = vunpack.c.l.b16 %v5148
    %v5217 = vunpack.c.h.b16 %v5148
    %v5218 = vunpack.c.l.b16 %v5149
    %v5219 = vunpack.c.h.b16 %v5149
    %v5220 = vunpack.c.l.b16 %v5150
    %v5221 = vunpack.c.h.b16 %v5150
    %v5222 = vunpack.c.l.b16 %v5151
    %v5223 = vunpack.c.h.b16 %v5151
    %v5224 = vunpack.c.l.b16 %v5152
    %v5225 = vunpack.c.h.b16 %v5152
    %v5226 = vunpack.c.l.b16 %v5153
    %v5227 = vunpack.c.h.b16 %v5153
    %v5228 = vunpack.c.l.b16 %v5154
    %v5229 = vunpack.c.h.b16 %v5154
    %v5230 = vunpack.c.l.b16 %v5155
    %v5231 = vunpack.c.h.b16 %v5155
    %v5232 = vunpack.c.l.b16 %v5156
    %v5233 = vunpack.c.h.b16 %v5156
    %v5234 = vunpack.c.l.b16 %v5157
    %v5235 = vunpack.c.h.b16 %v5157
    %v5236 = vunpack.c.l.b16 %v5158
    %v5237 = vunpack.c.h.b16 %v5158
    %v5238 = vunpack.c.l.b16 %v5159
    %v5239 = vunpack.c.h.b16 %v5159
    %v5240 = vunpack.c.l.b16 %v5160
    %v5241 = vunpack.c.h.b16 %v5160
    %v5242 = vunpack.c.l.b16 %v5161
    %v5243 = vunpack.c.h.b16 %v5161
    %v5244 = vunpack.c.l.b16 %v5162
    %v5245 = vunpack.c.h.b16 %v5162
    %v5246 = vunpack.c.l.b16 %v5163
    %v5247 = vunpack.c.h.b16 %v5163
    %v5248 = vunpack.c.l.b16 %v5164
    %v5249 = vunpack.c.h.b16 %v5164
    %v5250 = vunpack.c.l.b16 %v5165
    %v5251 = vunpack.c.h.b16 %v5165
    %v5252 = vunpack.c.l.b16 %v5166
    %v5253 = vunpack.c.h.b16 %v5166
    %v5254 = vunpack.c.l.b16 %v5167
    %v5255 = vunpack.c.h.b16 %v5167
    %v5256 = vunpack.c.l.b16 %v5168
    %v5257 = vunpack.c.h.b16 %v5168
    %v5258 = vunpack.c.l.b16 %v5169
    %v5259 = vunpack.c.h.b16 %v5169
    %v5260 = vunpack.c.l.b16 %v5170
    %v5261 = vunpack.c.h.b16 %v5170
    %v5262 = vunpack.c.l.b16 %v5171
    %v5263 = vunpack.c.h.b16 %v5171
    %v5264 = vunpack.c.l.b16 %v5172
    %v5265 = vunpack.c.h.b16 %v5172
    %v5266 = vunpack.c.l.b16 %v5173
    %v5267 = vunpack.c.h.b16 %v5173
    %v5268 = vunpack.c.l.b16 %v5174
    %v5269 = vunpack.c.h.b16 %v5174
    %v5270 = vunpack.c.l.b16 %v5175
    %v5271 = vunpack.c.h.b16 %v5175
    %v5272 = vpack.c.b16 %v5212, %v5208
    %v5273 = vpack.c.b16 %v5213, %v5209
    %v5274 = vpack.c.b16 %v5214, %v5210
    %v5275 = vpack.c.b16 %v5215, %v5211
    %v5276 = vpack.c.b16 %v5220, %v5216
    %v5277 = vpack.c.b16 %v5221, %v5217
    %v5278 = vpack.c.b16 %v5222, %v5218
    %v5279 = vpack.c.b16 %v5223, %v5219
    %v5280 = vpack.c.b16 %v5228, %v5224
    %v5281 = vpack.c.b16 %v5229, %v5225
    %v5282 = vpack.c.b16 %v5230, %v5226
    %v5283 = vpack.c.b16 %v5231, %v5227
    %v5284 = vpack.c.b16 %v5236, %v5232
    %v5285 = vpack.c.b16 %v5237, %v5233
    %v5286 = vpack.c.b16 %v5238, %v5234
    %v5287 = vpack.c.b16 %v5239, %v5235
    %v5288 = vpack.c.b16 %v5244, %v5240
    %v5289 = vpack.c.b16 %v5245, %v5241
    %v5290 = vpack.c.b16 %v5246, %v5242
    %v5291 = vpack.c.b16 %v5247, %v5243
    %v5292 = vpack.c.b16 %v5252, %v5248
    %v5293 = vpack.c.b16 %v5253, %v5249
    %v5294 = vpack.c.b16 %v5254, %v5250
    %v5295 = vpack.c.b16 %v5255, %v5251
    %v5296 = vpack.c.b16 %v5260, %v5256
    %v5297 = vpack.c.b16 %v5261, %v5257
    %v5298 = vpack.c.b16 %v5262, %v5258
    %v5299 = vpack.c.b16 %v5263, %v5259
    %v5300 = vpack.c.b16 %v5268, %v5264
    %v5301 = vpack.c.b16 %v5269, %v5265
    %v5302 = vpack.c.b16 %v5270, %v5266
    %v5303 = vpack.c.b16 %v5271, %v5267
    %5336 = vmatprep.subr.bf16.mxu0 %v5273
    %5337 = vmatpush1.bf16.msra.mxu0 %v5272
    %5338 = vmatprep.subr.bf16.mxu0 %v5277
    %5339 = vmatpush1.bf16.msra.mxu0 %v5276
    %5340 = vmatprep.subr.bf16.mxu0 %v5281
    %5341 = vmatpush1.bf16.msra.mxu0 %v5280
    %5342 = vmatprep.subr.bf16.mxu0 %v5285
    %5343 = vmatpush1.bf16.msra.mxu0 %v5284
    %5344 = vmatprep.subr.bf16.mxu0 %v5289
    %5345 = vmatpush1.bf16.msra.mxu0 %v5288
    %5346 = vmatprep.subr.bf16.mxu0 %v5293
    %5347 = vmatpush1.bf16.msra.mxu0 %v5292
    %5348 = vmatprep.subr.bf16.mxu0 %v5297
    %5349 = vmatpush1.bf16.msra.mxu0 %v5296
    %5350 = vmatprep.subr.bf16.mxu0 %v5301
    %5351 = vmatpush1.bf16.msra.mxu0 %v5300
    %5352 = vmatprep.subr.bf16.mxu0 0
    %5353 = vmatpush1.bf16.msra.mxu0 0
    %5354 = vmatprep.subr.bf16.mxu0 0
    %5355 = vmatpush1.bf16.msra.mxu0 0
    %5356 = vmatprep.subr.bf16.mxu0 0
    %5357 = vmatpush1.bf16.msra.mxu0 0
    %5358 = vmatprep.subr.bf16.mxu0 0
    %5359 = vmatpush1.bf16.msra.mxu0 0
    %5360 = vmatprep.subr.bf16.mxu0 0
    %5361 = vmatpush1.bf16.msra.mxu0 0
    %5362 = vmatprep.subr.bf16.mxu0 0
    %5363 = vmatpush1.bf16.msra.mxu0 0
    %5364 = vmatprep.subr.bf16.mxu0 0
    %5365 = vmatpush1.bf16.msra.mxu0 0
    %5366 = vmatprep.subr.bf16.mxu0 0
    %5367 = vmatpush1.bf16.msra.mxu0 0
    %5368 = vmatprep.mubr.bf16.mxu0 0
    %5369 = vmatmul.mubr.bf16.gmra.mrb[0].mxu0 %v5138
    %v5370 = vpop.f32.mrb[0].mxu0
    %v5371 = vadd.f32 0.0, %v5370
    %v5372 = vpop.f32.mrb[0].mxu0
    %v5373 = vadd.f32 0.0, %v5372
    %v5374 = vpop.f32.mrb[0].mxu0
    %v5375 = vpop.f32.mrb[0].mxu0
    %5376 = vdwg.mxu0
    %5377 = vmatprep.subr.bf16.mxu0 %v5275
    %5378 = vmatpush1.bf16.msra.mxu0 %v5274
    %5379 = vmatprep.subr.bf16.mxu0 %v5279
    %5380 = vmatpush1.bf16.msra.mxu0 %v5278
    %5381 = vmatprep.subr.bf16.mxu0 %v5283
    %5382 = vmatpush1.bf16.msra.mxu0 %v5282
    %5383 = vmatprep.subr.bf16.mxu0 %v5287
    %5384 = vmatpush1.bf16.msra.mxu0 %v5286
    %5385 = vmatprep.subr.bf16.mxu0 %v5291
    %5386 = vmatpush1.bf16.msra.mxu0 %v5290
    %5387 = vmatprep.subr.bf16.mxu0 %v5295
    %5388 = vmatpush1.bf16.msra.mxu0 %v5294
    %5389 = vmatprep.subr.bf16.mxu0 %v5299
    %5390 = vmatpush1.bf16.msra.mxu0 %v5298
    %5391 = vmatprep.subr.bf16.mxu0 %v5303
    %5392 = vmatpush1.bf16.msra.mxu0 %v5302
    %5393 = vmatprep.subr.bf16.mxu0 0
    %5394 = vmatpush1.bf16.msra.mxu0 0
    %5395 = vmatprep.subr.bf16.mxu0 0
    %5396 = vmatpush1.bf16.msra.mxu0 0
    %5397 = vmatprep.subr.bf16.mxu0 0
    %5398 = vmatpush1.bf16.msra.mxu0 0
    %5399 = vmatprep.subr.bf16.mxu0 0
    %5400 = vmatpush1.bf16.msra.mxu0 0
    %5401 = vmatprep.subr.bf16.mxu0 0
    %5402 = vmatpush1.bf16.msra.mxu0 0
    %5403 = vmatprep.subr.bf16.mxu0 0
    %5404 = vmatpush1.bf16.msra.mxu0 0
    %5405 = vmatprep.subr.bf16.mxu0 0
    %5406 = vmatpush1.bf16.msra.mxu0 0
    %5407 = vmatprep.subr.bf16.mxu0 0
    %5408 = vmatpush1.bf16.msra.mxu0 0
    %5409 = vmatprep.mubr.bf16.mxu0 0
    %5410 = vmatmul.mubr.bf16.gmra.mrb[0].mxu0 %v5138
    %v5411 = vpop.f32.mrb[0].mxu0
    %v5412 = vadd.f32 0.0, %v5411
    %v5413 = vpop.f32.mrb[0].mxu0
    %v5414 = vadd.f32 0.0, %v5413
    %v5415 = vpop.f32.mrb[0].mxu0
    %v5416 = vpop.f32.mrb[0].mxu0
    %5417 = vdwg.mxu0
    %v5418 = vadd.f32 %v5140, %v5371
    %v5419 = vadd.f32 %v5141, %v5373
    %v5420 = vadd.f32 %v5142, %v5412
    %v5421 = vadd.f32 %v5143, %v5414
    %v5422 = vxor.u32 %v5418, 2147483648
    %v5423 = vxor.u32 %v5419, 2147483648
    %v5424 = vmul.f32 %v5422, 1.442695
    %v5425 = vpow.pop %v5424
    %v5426 = vmul.f32 %v5423, 1.442695
    %v5427 = vpow.pop %v5426
    %v5428 = vadd.f32 %v5425, 1.0
    %v5429 = vadd.f32 %v5427, 1.0
    %v5430 = vrcp.pop %v5428
    %v5431 = vmul.f32 1.0, %v5430
    %v5432 = vrcp.pop %v5429
    %v5433 = vmul.f32 1.0, %v5432
    %v5434 = vtanh.pop %v5420
    %v5435 = vxor.u32 %v5421, 2147483648
    %v5436 = vmul.f32 %v5435, 1.442695
    %v5437 = vpow.pop %v5436
    %v5438 = vadd.f32 %v5437, 1.0
    %v5439 = vrcp.pop %v5438
    %v5440 = vmul.f32 1.0, %v5439
    %v5441 = vmul.f32 %v5433, %v5135
    %v5442 = vmul.f32 %v5431, %v5434
    %v5443 = vadd.f32 %v5441, %v5442
    %v5444 = vtanh.pop %v5443
    %v5445 = vmul.f32 %v5440, %v5444
    %v5446 = vpack.c.bf16 %v5445, %v5445
    %v5448 = vrot.slane %v5446, 4
    %5450 = vst [vmem:[#allocation2 + $0x18] sm:$0xf0] %v5448
    %v5451 = vld [vmem:[#allocation2] sm:$0xff]
    %v5452 = vld [vmem:[#allocation2 + $0x8] sm:$0xff]
    %v5453 = vld [vmem:[#allocation2 + $0x10] sm:$0xff]
    %v5454 = vld [vmem:[#allocation2 + $0x18] sm:$0xff]
    %v5455 = vld [vmem:[#allocation12] sm:$0xf]
    %v5456 = vld [vmem:[#allocation12 + $0x4] sm:$0xf]
    %v5457 = vld [vmem:[#allocation12 + $0x8] sm:$0xf]
    %v5458 = vld [vmem:[#allocation12 + $0xc] sm:$0xf]
    %v5459 = vld [vmem:[#allocation12 + $0x10] sm:$0xf]
    %v5460 = vld [vmem:[#allocation12 + $0x14] sm:$0xf]
    %v5461 = vld [vmem:[#allocation12 + $0x18] sm:$0xf]
    %v5462 = vld [vmem:[#allocation12 + $0x1c] sm:$0xf]
    %v5463 = vld [vmem:[#allocation12 + $0x20] sm:$0xf]
    %v5464 = vld [vmem:[#allocation12 + $0x24] sm:$0xf]
    %v5465 = vld [vmem:[#allocation12 + $0x28] sm:$0xf]
    %v5466 = vld [vmem:[#allocation12 + $0x2c] sm:$0xf]
    %v5467 = vld [vmem:[#allocation12 + $0x30] sm:$0xf]
    %v5468 = vld [vmem:[#allocation12 + $0x34] sm:$0xf]
    %v5469 = vld [vmem:[#allocation12 + $0x38] sm:$0xf]
    %v5470 = vld [vmem:[#allocation12 + $0x3c] sm:$0xf]
    %v5471 = vld [vmem:[%s6] sm:$0x1]
    %v5473 = vlaneseq
    %v5474 = vshrl.u32 %v5473, 7
    %v5475 = vsub.s32 0, %v5474
    %v5476 = vrot.slane %v5471, %v5475
    %v5494 = vunpack.c.l.b16 %v5455
    %v5495 = vunpack.c.l.b16 %v5456
    %v5496 = vunpack.c.l.b16 %v5457
    %v5497 = vunpack.c.l.b16 %v5458
    %v5498 = vunpack.c.l.b16 %v5459
    %v5499 = vunpack.c.l.b16 %v5460
    %v5500 = vunpack.c.l.b16 %v5461
    %v5501 = vunpack.c.l.b16 %v5462
    %v5502 = vunpack.c.l.b16 %v5463
    %v5503 = vunpack.c.l.b16 %v5464
    %v5504 = vunpack.c.l.b16 %v5465
    %v5505 = vunpack.c.l.b16 %v5466
    %v5506 = vunpack.c.l.b16 %v5467
    %v5507 = vunpack.c.l.b16 %v5468
    %v5508 = vunpack.c.l.b16 %v5469
    %v5509 = vunpack.c.l.b16 %v5470
    %v5510 = vpack.c.b16 %v5495, %v5494
    %v5511 = vpack.c.b16 %v5497, %v5496
    %v5512 = vpack.c.b16 %v5499, %v5498
    %v5513 = vpack.c.b16 %v5501, %v5500
    %v5514 = vpack.c.b16 %v5503, %v5502
    %v5515 = vpack.c.b16 %v5505, %v5504
    %v5516 = vpack.c.b16 %v5507, %v5506
    %v5517 = vpack.c.b16 %v5509, %v5508
    %5526 = vmatprep.subr.bf16.mxu0 0
    %5527 = vmatpush1.bf16.msra.mxu0 %v5510
    %5528 = vmatprep.subr.bf16.mxu0 0
    %5529 = vmatpush1.bf16.msra.mxu0 %v5511
    %5530 = vmatprep.subr.bf16.mxu0 0
    %5531 = vmatpush1.bf16.msra.mxu0 %v5512
    %5532 = vmatprep.subr.bf16.mxu0 0
    %5533 = vmatpush1.bf16.msra.mxu0 %v5513
    %5534 = vmatprep.subr.bf16.mxu0 0
    %5535 = vmatpush1.bf16.msra.mxu0 %v5514
    %5536 = vmatprep.subr.bf16.mxu0 0
    %5537 = vmatpush1.bf16.msra.mxu0 %v5515
    %5538 = vmatprep.subr.bf16.mxu0 0
    %5539 = vmatpush1.bf16.msra.mxu0 %v5516
    %5540 = vmatprep.subr.bf16.mxu0 0
    %5541 = vmatpush1.bf16.msra.mxu0 %v5517
    %5542 = vmatprep.subr.bf16.mxu0 0
    %5543 = vmatpush1.bf16.msra.mxu0 0
    %5544 = vmatprep.subr.bf16.mxu0 0
    %5545 = vmatpush1.bf16.msra.mxu0 0
    %5546 = vmatprep.subr.bf16.mxu0 0
    %5547 = vmatpush1.bf16.msra.mxu0 0
    %5548 = vmatprep.subr.bf16.mxu0 0
    %5549 = vmatpush1.bf16.msra.mxu0 0
    %5550 = vmatprep.subr.bf16.mxu0 0
    %5551 = vmatpush1.bf16.msra.mxu0 0
    %5552 = vmatprep.subr.bf16.mxu0 0
    %5553 = vmatpush1.bf16.msra.mxu0 0
    %5554 = vmatprep.subr.bf16.mxu0 0
    %5555 = vmatpush1.bf16.msra.mxu0 0
    %5556 = vmatprep.subr.bf16.mxu0 0
    %5557 = vmatpush1.bf16.msra.mxu0 0
    %5558 = vmatprep.mubr.bf16.mxu0 0
    %5559 = vmatmul.mubr.bf16.gmra.mrb[0].mxu0 %v5451
    %v5560 = vpop.f32.mrb[0].mxu0
    %v5561 = vadd.f32 %v5476, %v5560
    %v5562 = vpop.f32.mrb[0].mxu0
    %v5563 = vpop.f32.mrb[0].mxu0
    %v5564 = vadd.f32 %v5476, %v5563
    %v5565 = vpop.f32.mrb[0].mxu0
    %5566 = vmatprep.mubr.bf16.mxu0 0
    %5567 = vmatmul.mubr.bf16.gmra.mrb[0].mxu0 %v5452
    %v5568 = vpop.f32.mrb[0].mxu0
    %v5569 = vadd.f32 %v5476, %v5568
    %v5570 = vpop.f32.mrb[0].mxu0
    %v5571 = vpop.f32.mrb[0].mxu0
    %v5572 = vadd.f32 %v5476, %v5571
    %v5573 = vpop.f32.mrb[0].mxu0
    %5574 = vmatprep.mubr.bf16.mxu0 0
    %5575 = vmatmul.mubr.bf16.gmra.mrb[0].mxu0 %v5453
    %v5576 = vpop.f32.mrb[0].mxu0
    %v5577 = vadd.f32 %v5476, %v5576
    %v5578 = vpop.f32.mrb[0].mxu0
    %v5579 = vpop.f32.mrb[0].mxu0
    %v5580 = vadd.f32 %v5476, %v5579
    %v5581 = vpop.f32.mrb[0].mxu0
    %5582 = vmatprep.mubr.bf16.mxu0 0
    %5583 = vmatmul.mubr.bf16.gmra.mrb[0].mxu0 %v5454
    %v5584 = vpop.f32.mrb[0].mxu0
    %v5585 = vadd.f32 %v5476, %v5584
    %v5586 = vpop.f32.mrb[0].mxu0
    %v5587 = vpop.f32.mrb[0].mxu0
    %v5588 = vadd.f32 %v5476, %v5587
    %v5589 = vpop.f32.mrb[0].mxu0
    %5590 = vdwg.mxu0
    %v5591 = vmax.f32 %v5561, 0.0
    %v5592 = vmax.f32 %v5564, 0.0
    %v5593 = vmax.f32 %v5569, 0.0
    %v5594 = vmax.f32 %v5572, 0.0
    %v5595 = vmax.f32 %v5577, 0.0
    %v5596 = vmax.f32 %v5580, 0.0
    %v5597 = vmax.f32 %v5585, 0.0
    %v5598 = vmax.f32 %v5588, 0.0
    %5599 = vst [vmem:[#allocation13] sm:$0xff] %v5591
    %5600 = vst [vmem:[#allocation13 + $0x8] sm:$0xff] %v5592
    %5601 = vst [vmem:[#allocation13 + $0x10] sm:$0xff] %v5593
    %5602 = vst [vmem:[#allocation13 + $0x18] sm:$0xff] %v5594
    %5603 = vst [vmem:[#allocation13 + $0x20] sm:$0xff] %v5595
    %5604 = vst [vmem:[#allocation13 + $0x28] sm:$0xff] %v5596
    %5605 = vst [vmem:[#allocation13 + $0x30] sm:$0xff] %v5597
    %5606 = vst [vmem:[#allocation13 + $0x38] sm:$0xff] %v5598
    // Predicated region
    $region50: #{tpu_custom_call.1} parent=1 // pred_check
      _
    $region51: #{tpu_custom_call.1} parent=1 // pred_check_branch
      %5608 = sbr.rel (0) target = $region53
    $region52: #{tpu_custom_call.1} parent=1 // pred_region
      %s5610 = ssub.s32 1024, 1024
      %5611 = vsyncadd [#allocation6], %s5610
      %s5612 = sshll.u32 [#allocation13], 4
      %s5613 = int_to_ptr.vmem [resolvable:$true] %s5612
      %5618 = dma.vmem_to_hbm [thread:$0]  %s5613, 1024, %s7, [#allocation6], 128, 128, 8
    $region53: #{tpu_custom_call.1} parent=1 // pred_fallthru
      _
    // Predicated region
    $region54: #{tpu_custom_call.1} parent=1 // pred_check
      _
    $region55: #{tpu_custom_call.1} parent=1 // pred_check_branch
      %5620 = sbr.rel (0) target = $region57
    $region56: #{tpu_custom_call.1} parent=1 // pred_region
      %5621 = dma.done [#allocation6], 1024
    $region57: #{tpu_custom_call.1} parent=1 // pred_fallthru
      _
    %5622 = vsyncpa [#allocation5], 1
    %5623 = vsyncpa [#allocation8], 1
    %5624 = vsyncpa [#allocation11], 1
    %5625 = vsyncpa [#allocation6], 1

</llo_original>
